<compile_context>
chip_gen: v7x
topology: tpu7x:2x2x1
jax: 0.10.0
libtpu: 0.0.40
codegen_flags: <defaults>
</compile_context>

<pallas_src>
import functools

import jax
import jax.numpy as jnp
from jax.experimental import pallas as pl
from jax.experimental.pallas import tpu as pltpu


_PAD = 128  # lane padding on each side of the flattened H*W axis (128-aligned)


# -----------------------------------------------------------------------------
# Fused kernel: 4 x (im2col GEMM + folded BN/bias + activation), TB images/step.
# -----------------------------------------------------------------------------
def _fused_generator_kernel(x_ref, *refs, H, W, acts, tb):
    # x_ref : (TB, C0p, H*W)  channel-major input tile, C0p % 8 == 0
    # refs  : for each layer i: (w_i, shift_i) with
    #           w_i     : (Cout_i, 9*Cin_i) bf16 im2col weights, BN scale folded
    #           shift_i : (Cout_i, 1) f32   folded BN shift (+ conv bias)
    #         then o_ref       : (TB, Cout_last, H*W)
    #         then pad_ref     : VMEM f32  (3*max_cin, H*W + 2*_PAD)
    #         then patches_ref : VMEM bf16 (9*max_cin, TB*H*W)
    n_layers = len(acts)
    layer_refs = [refs[2 * i: 2 * i + 2] for i in range(n_layers)]
    o_ref = refs[2 * n_layers]
    pad_ref = refs[2 * n_layers + 1]
    patches_ref = refs[2 * n_layers + 2]
    HW = H * W

    # Zero only the border lanes once per grid step; the interior rows are
    # fully overwritten every layer.  Never gate this on program_id: on v7x
    # each TensorCore owns its own scratch instance.
    nrows = pad_ref.shape[0]
    zblk = jnp.zeros((nrows, _PAD), jnp.float32)
    pad_ref[:, 0:_PAD] = zblk
    pad_ref[:, _PAD + HW:_PAD + HW + _PAD] = zblk

    # Column masks kill the W-direction wraparound of the +-1 lane shifts.
    col = jax.lax.broadcasted_iota(jnp.int32, (1, HW), 1) % W
    not_first_col = (col != 0).astype(jnp.float32)        # for tap dw = -1
    not_last_col = (col != (W - 1)).astype(jnp.float32)   # for tap dw = +1

    a = None  # activation (cin, tb*HW) f32 for layers >= 1
    for li, ((w_ref, t_ref), act) in enumerate(zip(layer_refs, acts)):
        cin = w_ref.shape[1] // 9

        # Build bf16 im2col patches (9*cin, tb*HW) directly in VMEM scratch.
        for t in range(tb):
            if li == 0:
                at = x_ref[t]                             # (C0p, HW) f32
            else:
                at = a[:, t * HW:(t + 1) * HW]            # (cin, HW) f32

            # Center block first, then derive the two dw-shifted variants
            # (2 mask multiplies per image instead of 6).
            pad_ref[cin:2 * cin, _PAD:_PAD + HW] = at
            left = pad_ref[cin:2 * cin, _PAD - 1:_PAD - 1 + HW] * not_first_col
            right = pad_ref[cin:2 * cin, _PAD + 1:_PAD + 1 + HW] * not_last_col
            pad_ref[0:cin, _PAD:_PAD + HW] = left
            pad_ref[2 * cin:3 * cin, _PAD:_PAD + HW] = right

            # Each dh slice of the [left; center; right] block yields all three
            # dw taps in the weight's (dh-major, dw, ci) order.
            for tap, dh in enumerate((-1, 0, 1)):
                base = _PAD + dh * W
                patches_ref[tap * 3 * cin:(tap + 1) * 3 * cin,
                            t * HW:(t + 1) * HW] = (
                    pad_ref[0:3 * cin, base:base + HW].astype(jnp.bfloat16))

        # One lane-dense bf16 GEMM per layer: (Cout, 9*Cin) @ (9*Cin, TB*HW).
        y = jnp.dot(w_ref[...], patches_ref[0:9 * cin, :],
                    preferred_element_type=jnp.float32)
        y = y + t_ref[...]                                # folded BN shift+bias
        if act == "leaky":
            y = jnp.maximum(y, 0.2 * y)                   # LeakyReLU(0.2)
        else:
            # matches torch.nn.Softplus(beta=1, threshold=20)
            y = jnp.where(y > 20.0, y, jnp.log1p(jnp.exp(y)))
        a = y

    for t in range(tb):
        o_ref[t] = a[:, t * HW:(t + 1) * HW].astype(o_ref.dtype)


def fused_generator(x_cm, layers, H, W, tb=1):
    """x_cm: (B, C0, H*W) f32 channel-major input -> (B, 1, H*W) f32."""
    B, C0, HW = x_cm.shape
    assert HW == H * W
    assert W + 1 <= _PAD
    assert B % tb == 0

    # Pad channels to a multiple of 8 so sublane slices stay aligned.
    C0p = ((C0 + 7) // 8) * 8
    if C0p != C0:
        x_cm = jnp.pad(x_cm, ((0, 0), (0, C0p - C0), (0, 0)))

    inputs = [x_cm]
    in_specs = [pl.BlockSpec((tb, C0p, HW), lambda b: (b, 0, 0))]
    acts = []
    max_cin = C0p
    for i, layer in enumerate(layers):
        w = layer["w_hwio"]                               # (3, 3, Cin, Cout)
        if i == 0 and C0p != C0:
            w = jnp.pad(w, ((0, 0), (0, 0), (0, C0p - C0), (0, 0)))
        kh, kw, cin, cout = w.shape
        max_cin = max(max_cin, cin)
        # (Cout, kh, kw, Cin) -> (Cout, 9*Cin): row index = kh*3*Cin + kw*Cin + ci
        w_eff = jnp.transpose(w, (3, 0, 1, 2)).reshape(cout, kh * kw * cin)
        # Fold BN scale into the weights; cast to bf16 for the MXU.
        w_eff = (w_eff * layer["scale"].reshape(cout, 1)).astype(jnp.bfloat16)
        inputs += [w_eff, layer["shift"].reshape(cout, 1)]
        in_specs += [
            pl.BlockSpec((cout, kh * kw * cin), lambda b: (0, 0)),
            pl.BlockSpec((cout, 1), lambda b: (0, 0)),
        ]
        acts.append(layer["act"])

    cout_last = layers[-1]["w_hwio"].shape[-1]
    kernel = functools.partial(_fused_generator_kernel, H=H, W=W,
                               acts=tuple(acts), tb=tb)
    return pl.pallas_call(
        kernel,
        out_shape=jax.ShapeDtypeStruct((B, cout_last, HW), jnp.float32),
        grid=(B // tb,),
        in_specs=in_specs,
        out_specs=pl.BlockSpec((tb, cout_last, HW), lambda b: (b, 0, 0)),
        scratch_shapes=[
            pltpu.VMEM((3 * max_cin, HW + 2 * _PAD), jnp.float32),
            pltpu.VMEM((9 * max_cin, tb * HW), jnp.bfloat16),
        ],
        compiler_params=pltpu.CompilerParams(
            dimension_semantics=("parallel",)),
    )(*inputs)


# -----------------------------------------------------------------------------
# Parameter construction (deterministic, synthetic weights; BN + bias folded).
# -----------------------------------------------------------------------------
def init_generator_params(key, in_channels, covariate_channels,
                          num_lulc_classes, lulc_embed_dim,
                          num_months, month_embed_dim,
                          num_seasons, season_embed_dim):
    state = {"k": key}

    def nk():
        state["k"], sub = jax.random.split(state["k"])
        return sub

    total_channels = (in_channels + 1 + covariate_channels
                      + month_embed_dim + season_embed_dim + lulc_embed_dim)
    conv_channels = [(total_channels, 8), (8, 16), (16, 32), (32, 1)]

    params = {}
    params["month_emb"] = 0.1 * jax.random.normal(
        nk(), (num_months, month_embed_dim), jnp.float32)
    params["season_emb"] = 0.1 * jax.random.normal(
        nk(), (num_seasons, season_embed_dim), jnp.float32)
    lulc = 0.1 * jax.random.normal(
        nk(), (num_lulc_classes, lulc_embed_dim), jnp.float32)
    params["lulc_emb"] = lulc.at[0].set(0.0)   # CustomLULCEmbedding zeroes row 0

    eps = 1e-5
    layers = []
    for li, (cin, cout) in enumerate(conv_channels):
        w = 0.1 * jax.random.normal(nk(), (3, 3, cin, cout), jnp.float32)
        b = 0.05 * jax.random.normal(nk(), (cout,), jnp.float32)
        if li < 3:
            # BatchNorm2d (eval mode) with deterministic non-trivial stats.
            gamma = 1.0 + 0.1 * jax.random.normal(nk(), (cout,), jnp.float32)
            beta = 0.05 * jax.random.normal(nk(), (cout,), jnp.float32)
            mean = 0.02 * jnp.arange(cout, dtype=jnp.float32)
            var = 1.0 + 0.01 * jnp.arange(cout, dtype=jnp.float32)
            scale = gamma / jnp.sqrt(var + eps)
            # Fold conv bias + BN into one affine: BN(conv + b) =
            # conv*scale + ((b - mean)*scale + beta).
            shift = (b - mean) * scale + beta
            act = "leaky"
        else:
            scale = jnp.ones((cout,), jnp.float32)
            shift = b
            act = "softplus"
        layers.append({"w_hwio": w, "scale": scale, "shift": shift, "act": act})
    params["layers"] = layers
    return params


# -----------------------------------------------------------------------------
# Forward pass (embedding/concat glue in plain JAX, conv stack in one kernel).
# -----------------------------------------------------------------------------
def _assemble_input(params, corrupted_data, mask, covariates,
                    months, seasons, lulc_data):
    B, _, H, W = corrupted_data.shape
    HW = H * W

    month_emb = jnp.take(params["month_emb"], months, axis=0)     # (B, Dm)
    season_emb = jnp.take(params["season_emb"], seasons, axis=0)  # (B, Ds)
    lulc_emb = jnp.take(params["lulc_emb"], lulc_data, axis=0)    # (B, H, W, Dl)

    month_map = jnp.broadcast_to(
        month_emb[:, :, None], (B, month_emb.shape[-1], HW))
    season_map = jnp.broadcast_to(
        season_emb[:, :, None], (B, season_emb.shape[-1], HW))
    lulc_map = jnp.transpose(lulc_emb, (0, 3, 1, 2)).reshape(
        B, lulc_emb.shape[-1], HW)

    x = jnp.concatenate(
        [corrupted_data.reshape(B, -1, HW).astype(jnp.float32),
         mask.reshape(B, -1, HW).astype(jnp.float32),
         covariates.reshape(B, -1, HW).astype(jnp.float32),
         month_map, season_map, lulc_map],
        axis=1)                                                   # (B, C0, HW)
    return x


def generator_forward(params, corrupted_data, mask, covariates,
                      months, seasons, lulc_data, y_mask, tb=1):
    del y_mask  # cast to long in the reference module but never used
    B, _, H, W = corrupted_data.shape
    x = _assemble_input(params, corrupted_data, mask, covariates,
                        months, seasons, lulc_data)
    out = fused_generator(x, params["layers"], H, W, tb=tb)       # (B, 1, H*W)
    return out.reshape(B, 1, H, W)


def reference_forward(params, corrupted_data, mask, covariates,
                      months, seasons, lulc_data, y_mask):
    """Pure-JAX reference (lax.conv) for validating the Pallas kernel."""
    del y_mask
    B, _, H, W = corrupted_data.shape
    x = _assemble_input(params, corrupted_data, mask, covariates,
                        months, seasons, lulc_data)
    y = x.reshape(B, -1, H, W)
    for layer in params["layers"]:
        w_oihw = jnp.transpose(layer["w_hwio"], (3, 2, 0, 1))
        y = jax.lax.conv_general_dilated(
            y, w_oihw, window_strides=(1, 1), padding=((1, 1), (1, 1)),
            dimension_numbers=("NCHW", "OIHW", "NCHW"))
        y = (y * layer["scale"].reshape(1, -1, 1, 1)
             + layer["shift"].reshape(1, -1, 1, 1))
        if layer["act"] == "leaky":
            y = jnp.maximum(y, 0.2 * y)
        else:
            y = jnp.where(y > 20.0, y, jnp.log1p(jnp.exp(y)))
    return y


# -----------------------------------------------------------------------------
# Demo
# -----------------------------------------------------------------------------
if __name__ == "__main__":
    B, H, W = 2, 16, 16
    in_channels = 4
    covariate_channels = 3
    num_lulc_classes = 6
    lulc_embed_dim = 16
    num_months, month_embed_dim = 12, 8
    num_seasons, season_embed_dim = 4, 8
    # total channels = 4 + 1 + 3 + 8 + 8 + 16 = 40 (multiple of 8)

    root = jax.random.PRNGKey(0)
    kp, kd = jax.random.split(root)
    params = init_generator_params(
        kp, in_channels, covariate_channels, num_lulc_classes, lulc_embed_dim,
        num_months, month_embed_dim, num_seasons, season_embed_dim)

    k = jax.random.split(kd, 7)
    corrupted_data = jax.random.normal(k[0], (B, in_channels, H, W),
                                       jnp.float32)
    mask = (jax.random.uniform(k[1], (B, 1, H, W)) > 0.5).astype(jnp.float32)
    covariates = jax.random.normal(k[2], (B, covariate_channels, H, W),
                                   jnp.float32)
    months = jax.random.randint(k[3], (B,), 0, num_months)
    seasons = jax.random.randint(k[4], (B,), 0, num_seasons)
    lulc_data = jax.random.randint(k[5], (B, H, W), 0, num_lulc_classes)
    y_mask = (jax.random.uniform(k[6], (B, 1, H, W)) > 0.5).astype(jnp.float32)

    ref = reference_forward(params, corrupted_data, mask, covariates,
                            months, seasons, lulc_data, y_mask)
    ref = jax.block_until_ready(ref)

    # tb=1 keeps the grid length == B (>= 2), so on v7x both TensorCores work.
    fwd = jax.jit(lambda *args: generator_forward(params, *args, tb=1))
    out = fwd(corrupted_data, mask, covariates, months, seasons,
              lulc_data, y_mask)
    out = jax.block_until_ready(out)

    assert out.shape == (B, 1, H, W)
    assert bool(jnp.all(out >= 0.0))  # Softplus output is non-negative
    assert bool(jnp.allclose(out, ref, atol=1e-1, rtol=1e-1))

    # Also exercise the batched-tile path (tb=B -> one wide GEMM per layer;
    # the right choice on single-TensorCore v6e).
    fwd_tb = jax.jit(lambda *args: generator_forward(params, *args, tb=B))
    out_tb = jax.block_until_ready(
        fwd_tb(corrupted_data, mask, covariates, months, seasons,
               lulc_data, y_mask))
    assert bool(jnp.allclose(out_tb, ref, atol=1e-1, rtol=1e-1))

    print("KERNEL_OK")
</pallas_src>

<mosaic_0001>
module attributes {stable_mosaic.version = 11 : i64} {
  func.func @_fused_generator_kernel(%arg0: i32, %arg1: memref<1x40x256xf32, #tpu.memory_space<vmem>>, %arg2: memref<8x360xbf16, #tpu.memory_space<vmem>>, %arg3: memref<8x1xf32, #tpu.memory_space<vmem>>, %arg4: memref<16x72xbf16, #tpu.memory_space<vmem>>, %arg5: memref<16x1xf32, #tpu.memory_space<vmem>>, %arg6: memref<32x144xbf16, #tpu.memory_space<vmem>>, %arg7: memref<32x1xf32, #tpu.memory_space<vmem>>, %arg8: memref<1x288xbf16, #tpu.memory_space<vmem>>, %arg9: memref<1x1xf32, #tpu.memory_space<vmem>>, %arg10: memref<1x1x256xf32, #tpu.memory_space<vmem>>, %arg11: memref<120x512xf32, #tpu.memory_space<vmem>>, %arg12: memref<360x256xbf16, #tpu.memory_space<vmem>>) attributes {dimension_semantics = [#tpu.dimension_semantics<parallel>], iteration_bounds = array<i64: 2>, scalar_prefetch = 0 : i64, scratch_operands = 2 : i64, tpu.core_type = #tpu.core_type<tc>, window_params = [{transform_indices = @transform_0, window_bounds = array<i64: 1, 40, 256>}, {pipeline_mode = #tpu.pipeline_mode<synchronous>, transform_indices = @transform_1, window_bounds = array<i64: 8, 360>}, {pipeline_mode = #tpu.pipeline_mode<synchronous>, transform_indices = @transform_2, window_bounds = array<i64: 8, 1>}, {pipeline_mode = #tpu.pipeline_mode<synchronous>, transform_indices = @transform_3, window_bounds = array<i64: 16, 72>}, {pipeline_mode = #tpu.pipeline_mode<synchronous>, transform_indices = @transform_4, window_bounds = array<i64: 16, 1>}, {pipeline_mode = #tpu.pipeline_mode<synchronous>, transform_indices = @transform_5, window_bounds = array<i64: 32, 144>}, {pipeline_mode = #tpu.pipeline_mode<synchronous>, transform_indices = @transform_6, window_bounds = array<i64: 32, 1>}, {pipeline_mode = #tpu.pipeline_mode<synchronous>, transform_indices = @transform_7, window_bounds = array<i64: 1, 288>}, {pipeline_mode = #tpu.pipeline_mode<synchronous>, transform_indices = @transform_8, window_bounds = array<i64: 1, 1>}, {transform_indices = @transform_9, window_bounds = array<i64: 1, 1, 256>}]} {
    %cst = arith.constant 0.000000e+00 : f32
    %0 = vector.broadcast %cst : f32 to vector<120x128xf32>
    %c0 = arith.constant 0 : index
    %c0_0 = arith.constant 0 : index
    %1 = vector.load %arg11[%c0, %c0_0] : memref<120x512xf32, #tpu.memory_space<vmem>>, vector<120x128xf32>
    tpu.vector_store %arg11[%c0, %c0_0], %0 {strides = array<i32>} : memref<120x512xf32, #tpu.memory_space<vmem>>, vector<120x128xf32>,
    %c0_1 = arith.constant 0 : index
    %c384 = arith.constant 384 : index
    %2 = vector.load %arg11[%c0_1, %c384] : memref<120x512xf32, #tpu.memory_space<vmem>>, vector<120x128xf32>
    tpu.vector_store %arg11[%c0_1, %c384], %0 {strides = array<i32>} : memref<120x512xf32, #tpu.memory_space<vmem>>, vector<120x128xf32>,
    %3 = tpu.iota {dimensions = array<i32: 1>} : vector<1x256xi32>
    %c16_i32 = arith.constant 16 : i32
    %c0_i32 = arith.constant 0 : i32
    %4 = arith.cmpi eq, %c16_i32, %c0_i32 : i32
    %c1_i32 = arith.constant 1 : i32
    %5 = arith.select %4, %c1_i32, %c16_i32 : i32
    %6 = vector.broadcast %5 : i32 to vector<1x256xi32>
    %7 = arith.remsi %3, %6 : vector<1x256xi32>
    %c0_i32_2 = arith.constant 0 : i32
    %8 = vector.broadcast %c0_i32_2 : i32 to vector<1x256xi32>
    %9 = arith.cmpi ne, %7, %8 : vector<1x256xi32>
    %c0_i32_3 = arith.constant 0 : i32
    %10 = vector.broadcast %c0_i32_3 : i32 to vector<1x256xi32>
    %11 = arith.cmpi slt, %7, %10 : vector<1x256xi32>
    %c0_i32_4 = arith.constant 0 : i32
    %12 = arith.cmpi slt, %5, %c0_i32_4 : i32
    %13 = vector.broadcast %12 : i1 to vector<1x256xi1>
    %14 = vector.broadcast %13 : vector<1x256xi1> to vector<1x256xi1>
    %15 = arith.xori %11, %14 : vector<1x256xi1>
    %16 = arith.andi %15, %9 : vector<1x256xi1>
    %17 = vector.broadcast %5 : i32 to vector<1x256xi32>
    %18 = arith.addi %7, %17 : vector<1x256xi32>
    %19 = arith.select %16, %18, %7 : vector<1x256xi1>, vector<1x256xi32>
    %c0_i32_5 = arith.constant 0 : i32
    %20 = vector.broadcast %c0_i32_5 : i32 to vector<1x256xi32>
    %21 = arith.cmpi ne, %19, %20 : vector<1x256xi32>
    %22 = arith.extui %21 : vector<1x256xi1> to vector<1x256xi32>
    %23 = arith.sitofp %22 : vector<1x256xi32> to vector<1x256xf32>
    %c15_i32 = arith.constant 15 : i32
    %24 = vector.broadcast %c15_i32 : i32 to vector<1x256xi32>
    %25 = arith.cmpi ne, %19, %24 : vector<1x256xi32>
    %26 = arith.extui %25 : vector<1x256xi1> to vector<1x256xi32>
    %27 = arith.sitofp %26 : vector<1x256xi32> to vector<1x256xf32>
    %c0_6 = arith.constant 0 : index
    %c0_7 = arith.constant 0 : index
    %c0_8 = arith.constant 0 : index
    %28 = vector.load %arg1[%c0_6, %c0_7, %c0_8] : memref<1x40x256xf32, #tpu.memory_space<vmem>>, vector<1x40x256xf32>
    %29 = vector.shape_cast %28 : vector<1x40x256xf32> to vector<40x256xf32>
    %c40 = arith.constant 40 : index
    %c128 = arith.constant 128 : index
    %30 = vector.load %arg11[%c40, %c128] : memref<120x512xf32, #tpu.memory_space<vmem>>, vector<40x256xf32>
    tpu.vector_store %arg11[%c40, %c128], %29 {strides = array<i32>} : memref<120x512xf32, #tpu.memory_space<vmem>>, vector<40x256xf32>,
    %c40_9 = arith.constant 40 : index
    %c127 = arith.constant 127 : index
    %31 = vector.load %arg11[%c40_9, %c127] : memref<120x512xf32, #tpu.memory_space<vmem>>, vector<40x256xf32>
    %32 = vector.broadcast %23 : vector<1x256xf32> to vector<40x256xf32>
    %33 = arith.mulf %31, %32 : vector<40x256xf32>
    %c40_10 = arith.constant 40 : index
    %c129 = arith.constant 129 : index
    %34 = vector.load %arg11[%c40_10, %c129] : memref<120x512xf32, #tpu.memory_space<vmem>>, vector<40x256xf32>
    %35 = vector.broadcast %27 : vector<1x256xf32> to vector<40x256xf32>
    %36 = arith.mulf %34, %35 : vector<40x256xf32>
    %c0_11 = arith.constant 0 : index
    %c128_12 = arith.constant 128 : index
    %37 = vector.load %arg11[%c0_11, %c128_12] : memref<120x512xf32, #tpu.memory_space<vmem>>, vector<40x256xf32>
    tpu.vector_store %arg11[%c0_11, %c128_12], %33 {strides = array<i32>} : memref<120x512xf32, #tpu.memory_space<vmem>>, vector<40x256xf32>,
    %c80 = arith.constant 80 : index
    %c128_13 = arith.constant 128 : index
    %38 = vector.load %arg11[%c80, %c128_13] : memref<120x512xf32, #tpu.memory_space<vmem>>, vector<40x256xf32>
    tpu.vector_store %arg11[%c80, %c128_13], %36 {strides = array<i32>} : memref<120x512xf32, #tpu.memory_space<vmem>>, vector<40x256xf32>,
    %c0_14 = arith.constant 0 : index
    %c112 = arith.constant 112 : index
    %39 = vector.load %arg11[%c0_14, %c112] : memref<120x512xf32, #tpu.memory_space<vmem>>, vector<120x256xf32>
    %40 = arith.truncf %39 : vector<120x256xf32> to vector<120x256xbf16>
    %c0_15 = arith.constant 0 : index
    %c0_16 = arith.constant 0 : index
    %41 = vector.load %arg12[%c0_15, %c0_16] : memref<360x256xbf16, #tpu.memory_space<vmem>>, vector<120x256xbf16>
    tpu.vector_store %arg12[%c0_15, %c0_16], %40 {strides = array<i32>} : memref<360x256xbf16, #tpu.memory_space<vmem>>, vector<120x256xbf16>,
    %c0_17 = arith.constant 0 : index
    %c128_18 = arith.constant 128 : index
    %42 = vector.load %arg11[%c0_17, %c128_18] : memref<120x512xf32, #tpu.memory_space<vmem>>, vector<120x256xf32>
    %43 = arith.truncf %42 : vector<120x256xf32> to vector<120x256xbf16>
    %c120 = arith.constant 120 : index
    %c0_19 = arith.constant 0 : index
    %44 = vector.load %arg12[%c120, %c0_19] : memref<360x256xbf16, #tpu.memory_space<vmem>>, vector<120x256xbf16>
    tpu.vector_store %arg12[%c120, %c0_19], %43 {strides = array<i32>} : memref<360x256xbf16, #tpu.memory_space<vmem>>, vector<120x256xbf16>,
    %c0_20 = arith.constant 0 : index
    %c144 = arith.constant 144 : index
    %45 = vector.load %arg11[%c0_20, %c144] : memref<120x512xf32, #tpu.memory_space<vmem>>, vector<120x256xf32>
    %46 = arith.truncf %45 : vector<120x256xf32> to vector<120x256xbf16>
    %c240 = arith.constant 240 : index
    %c0_21 = arith.constant 0 : index
    %47 = vector.load %arg12[%c240, %c0_21] : memref<360x256xbf16, #tpu.memory_space<vmem>>, vector<120x256xbf16>
    tpu.vector_store %arg12[%c240, %c0_21], %46 {strides = array<i32>} : memref<360x256xbf16, #tpu.memory_space<vmem>>, vector<120x256xbf16>,
    %c0_22 = arith.constant 0 : index
    %c0_23 = arith.constant 0 : index
    %48 = vector.load %arg2[%c0_22, %c0_23] : memref<8x360xbf16, #tpu.memory_space<vmem>>, vector<8x360xbf16>
    %c0_24 = arith.constant 0 : index
    %c0_25 = arith.constant 0 : index
    %49 = vector.load %arg12[%c0_24, %c0_25] : memref<360x256xbf16, #tpu.memory_space<vmem>>, vector<360x256xbf16>
    %cst_26 = arith.constant dense<0.000000e+00> : vector<8x256xf32>
    %50 = tpu.matmul %48, %49, %cst_26 {dimension_numbers = #tpu.dot_dimension_numbers<[1], [0], [0], [1], [0, 0, 1, 1], [], []>} : vector<8x360xbf16>, vector<360x256xbf16>, vector<8x256xf32> -> vector<8x256xf32>
    %c0_27 = arith.constant 0 : index
    %c0_28 = arith.constant 0 : index
    %51 = vector.load %arg3[%c0_27, %c0_28] : memref<8x1xf32, #tpu.memory_space<vmem>>, vector<8x1xf32>
    %52 = vector.broadcast %51 : vector<8x1xf32> to vector<8x256xf32>
    %53 = arith.addf %50, %52 : vector<8x256xf32>
    %cst_29 = arith.constant 2.000000e-01 : f32
    %54 = vector.broadcast %cst_29 : f32 to vector<8x256xf32>
    %55 = arith.mulf %54, %53 : vector<8x256xf32>
    %56 = arith.maximumf %53, %55 : vector<8x256xf32>
    %c8 = arith.constant 8 : index
    %c128_30 = arith.constant 128 : index
    %57 = vector.load %arg11[%c8, %c128_30] : memref<120x512xf32, #tpu.memory_space<vmem>>, vector<8x256xf32>
    tpu.vector_store %arg11[%c8, %c128_30], %56 {strides = array<i32>} : memref<120x512xf32, #tpu.memory_space<vmem>>, vector<8x256xf32>,
    %c8_31 = arith.constant 8 : index
    %c127_32 = arith.constant 127 : index
    %58 = vector.load %arg11[%c8_31, %c127_32] : memref<120x512xf32, #tpu.memory_space<vmem>>, vector<8x256xf32>
    %59 = vector.broadcast %23 : vector<1x256xf32> to vector<8x256xf32>
    %60 = arith.mulf %58, %59 : vector<8x256xf32>
    %c8_33 = arith.constant 8 : index
    %c129_34 = arith.constant 129 : index
    %61 = vector.load %arg11[%c8_33, %c129_34] : memref<120x512xf32, #tpu.memory_space<vmem>>, vector<8x256xf32>
    %62 = vector.broadcast %27 : vector<1x256xf32> to vector<8x256xf32>
    %63 = arith.mulf %61, %62 : vector<8x256xf32>
    %c0_35 = arith.constant 0 : index
    %c128_36 = arith.constant 128 : index
    %64 = vector.load %arg11[%c0_35, %c128_36] : memref<120x512xf32, #tpu.memory_space<vmem>>, vector<8x256xf32>
    tpu.vector_store %arg11[%c0_35, %c128_36], %60 {strides = array<i32>} : memref<120x512xf32, #tpu.memory_space<vmem>>, vector<8x256xf32>,
    %c16 = arith.constant 16 : index
    %c128_37 = arith.constant 128 : index
    %65 = vector.load %arg11[%c16, %c128_37] : memref<120x512xf32, #tpu.memory_space<vmem>>, vector<8x256xf32>
    tpu.vector_store %arg11[%c16, %c128_37], %63 {strides = array<i32>} : memref<120x512xf32, #tpu.memory_space<vmem>>, vector<8x256xf32>,
    %c0_38 = arith.constant 0 : index
    %c112_39 = arith.constant 112 : index
    %66 = vector.load %arg11[%c0_38, %c112_39] : memref<120x512xf32, #tpu.memory_space<vmem>>, vector<24x256xf32>
    %67 = arith.truncf %66 : vector<24x256xf32> to vector<24x256xbf16>
    %c0_40 = arith.constant 0 : index
    %c0_41 = arith.constant 0 : index
    %68 = vector.load %arg12[%c0_40, %c0_41] : memref<360x256xbf16, #tpu.memory_space<vmem>>, vector<24x256xbf16>
    tpu.vector_store %arg12[%c0_40, %c0_41], %67 {strides = array<i32>} : memref<360x256xbf16, #tpu.memory_space<vmem>>, vector<24x256xbf16>,
    %c0_42 = arith.constant 0 : index
    %c128_43 = arith.constant 128 : index
    %69 = vector.load %arg11[%c0_42, %c128_43] : memref<120x512xf32, #tpu.memory_space<vmem>>, vector<24x256xf32>
    %70 = arith.truncf %69 : vector<24x256xf32> to vector<24x256xbf16>
    %c24 = arith.constant 24 : index
    %c0_44 = arith.constant 0 : index
    %71 = vector.load %arg12[%c24, %c0_44] : memref<360x256xbf16, #tpu.memory_space<vmem>>, vector<24x256xbf16>
    tpu.vector_store %arg12[%c24, %c0_44], %70 {strides = array<i32>} : memref<360x256xbf16, #tpu.memory_space<vmem>>, vector<24x256xbf16>,
    %c0_45 = arith.constant 0 : index
    %c144_46 = arith.constant 144 : index
    %72 = vector.load %arg11[%c0_45, %c144_46] : memref<120x512xf32, #tpu.memory_space<vmem>>, vector<24x256xf32>
    %73 = arith.truncf %72 : vector<24x256xf32> to vector<24x256xbf16>
    %c48 = arith.constant 48 : index
    %c0_47 = arith.constant 0 : index
    %74 = vector.load %arg12[%c48, %c0_47] : memref<360x256xbf16, #tpu.memory_space<vmem>>, vector<24x256xbf16>
    tpu.vector_store %arg12[%c48, %c0_47], %73 {strides = array<i32>} : memref<360x256xbf16, #tpu.memory_space<vmem>>, vector<24x256xbf16>,
    %c0_48 = arith.constant 0 : index
    %c0_49 = arith.constant 0 : index
    %75 = vector.load %arg4[%c0_48, %c0_49] : memref<16x72xbf16, #tpu.memory_space<vmem>>, vector<16x72xbf16>
    %c0_50 = arith.constant 0 : index
    %c0_51 = arith.constant 0 : index
    %76 = vector.load %arg12[%c0_50, %c0_51] : memref<360x256xbf16, #tpu.memory_space<vmem>>, vector<72x256xbf16>
    %cst_52 = arith.constant dense<0.000000e+00> : vector<16x256xf32>
    %77 = tpu.matmul %75, %76, %cst_52 {dimension_numbers = #tpu.dot_dimension_numbers<[1], [0], [0], [1], [0, 0, 1, 1], [], []>} : vector<16x72xbf16>, vector<72x256xbf16>, vector<16x256xf32> -> vector<16x256xf32>
    %c0_53 = arith.constant 0 : index
    %c0_54 = arith.constant 0 : index
    %78 = vector.load %arg5[%c0_53, %c0_54] : memref<16x1xf32, #tpu.memory_space<vmem>>, vector<16x1xf32>
    %79 = vector.broadcast %78 : vector<16x1xf32> to vector<16x256xf32>
    %80 = arith.addf %77, %79 : vector<16x256xf32>
    %cst_55 = arith.constant 2.000000e-01 : f32
    %81 = vector.broadcast %cst_55 : f32 to vector<16x256xf32>
    %82 = arith.mulf %81, %80 : vector<16x256xf32>
    %83 = arith.maximumf %80, %82 : vector<16x256xf32>
    %c16_56 = arith.constant 16 : index
    %c128_57 = arith.constant 128 : index
    %84 = vector.load %arg11[%c16_56, %c128_57] : memref<120x512xf32, #tpu.memory_space<vmem>>, vector<16x256xf32>
    tpu.vector_store %arg11[%c16_56, %c128_57], %83 {strides = array<i32>} : memref<120x512xf32, #tpu.memory_space<vmem>>, vector<16x256xf32>,
    %c16_58 = arith.constant 16 : index
    %c127_59 = arith.constant 127 : index
    %85 = vector.load %arg11[%c16_58, %c127_59] : memref<120x512xf32, #tpu.memory_space<vmem>>, vector<16x256xf32>
    %86 = vector.broadcast %23 : vector<1x256xf32> to vector<16x256xf32>
    %87 = arith.mulf %85, %86 : vector<16x256xf32>
    %c16_60 = arith.constant 16 : index
    %c129_61 = arith.constant 129 : index
    %88 = vector.load %arg11[%c16_60, %c129_61] : memref<120x512xf32, #tpu.memory_space<vmem>>, vector<16x256xf32>
    %89 = vector.broadcast %27 : vector<1x256xf32> to vector<16x256xf32>
    %90 = arith.mulf %88, %89 : vector<16x256xf32>
    %c0_62 = arith.constant 0 : index
    %c128_63 = arith.constant 128 : index
    %91 = vector.load %arg11[%c0_62, %c128_63] : memref<120x512xf32, #tpu.memory_space<vmem>>, vector<16x256xf32>
    tpu.vector_store %arg11[%c0_62, %c128_63], %87 {strides = array<i32>} : memref<120x512xf32, #tpu.memory_space<vmem>>, vector<16x256xf32>,
    %c32 = arith.constant 32 : index
    %c128_64 = arith.constant 128 : index
    %92 = vector.load %arg11[%c32, %c128_64] : memref<120x512xf32, #tpu.memory_space<vmem>>, vector<16x256xf32>
    tpu.vector_store %arg11[%c32, %c128_64], %90 {strides = array<i32>} : memref<120x512xf32, #tpu.memory_space<vmem>>, vector<16x256xf32>,
    %c0_65 = arith.constant 0 : index
    %c112_66 = arith.constant 112 : index
    %93 = vector.load %arg11[%c0_65, %c112_66] : memref<120x512xf32, #tpu.memory_space<vmem>>, vector<48x256xf32>
    %94 = arith.truncf %93 : vector<48x256xf32> to vector<48x256xbf16>
    %c0_67 = arith.constant 0 : index
    %c0_68 = arith.constant 0 : index
    %95 = vector.load %arg12[%c0_67, %c0_68] : memref<360x256xbf16, #tpu.memory_space<vmem>>, vector<48x256xbf16>
    tpu.vector_store %arg12[%c0_67, %c0_68], %94 {strides = array<i32>} : memref<360x256xbf16, #tpu.memory_space<vmem>>, vector<48x256xbf16>,
    %c0_69 = arith.constant 0 : index
    %c128_70 = arith.constant 128 : index
    %96 = vector.load %arg11[%c0_69, %c128_70] : memref<120x512xf32, #tpu.memory_space<vmem>>, vector<48x256xf32>
    %97 = arith.truncf %96 : vector<48x256xf32> to vector<48x256xbf16>
    %c48_71 = arith.constant 48 : index
    %c0_72 = arith.constant 0 : index
    %98 = vector.load %arg12[%c48_71, %c0_72] : memref<360x256xbf16, #tpu.memory_space<vmem>>, vector<48x256xbf16>
    tpu.vector_store %arg12[%c48_71, %c0_72], %97 {strides = array<i32>} : memref<360x256xbf16, #tpu.memory_space<vmem>>, vector<48x256xbf16>,
    %c0_73 = arith.constant 0 : index
    %c144_74 = arith.constant 144 : index
    %99 = vector.load %arg11[%c0_73, %c144_74] : memref<120x512xf32, #tpu.memory_space<vmem>>, vector<48x256xf32>
    %100 = arith.truncf %99 : vector<48x256xf32> to vector<48x256xbf16>
    %c96 = arith.constant 96 : index
    %c0_75 = arith.constant 0 : index
    %101 = vector.load %arg12[%c96, %c0_75] : memref<360x256xbf16, #tpu.memory_space<vmem>>, vector<48x256xbf16>
    tpu.vector_store %arg12[%c96, %c0_75], %100 {strides = array<i32>} : memref<360x256xbf16, #tpu.memory_space<vmem>>, vector<48x256xbf16>,
    %c0_76 = arith.constant 0 : index
    %c0_77 = arith.constant 0 : index
    %102 = vector.load %arg6[%c0_76, %c0_77] : memref<32x144xbf16, #tpu.memory_space<vmem>>, vector<32x144xbf16>
    %c0_78 = arith.constant 0 : index
    %c0_79 = arith.constant 0 : index
    %103 = vector.load %arg12[%c0_78, %c0_79] : memref<360x256xbf16, #tpu.memory_space<vmem>>, vector<144x256xbf16>
    %cst_80 = arith.constant dense<0.000000e+00> : vector<32x256xf32>
    %104 = tpu.matmul %102, %103, %cst_80 {dimension_numbers = #tpu.dot_dimension_numbers<[1], [0], [0], [1], [0, 0, 1, 1], [], []>} : vector<32x144xbf16>, vector<144x256xbf16>, vector<32x256xf32> -> vector<32x256xf32>
    %c0_81 = arith.constant 0 : index
    %c0_82 = arith.constant 0 : index
    %105 = vector.load %arg7[%c0_81, %c0_82] : memref<32x1xf32, #tpu.memory_space<vmem>>, vector<32x1xf32>
    %106 = vector.broadcast %105 : vector<32x1xf32> to vector<32x256xf32>
    %107 = arith.addf %104, %106 : vector<32x256xf32>
    %cst_83 = arith.constant 2.000000e-01 : f32
    %108 = vector.broadcast %cst_83 : f32 to vector<32x256xf32>
    %109 = arith.mulf %108, %107 : vector<32x256xf32>
    %110 = arith.maximumf %107, %109 : vector<32x256xf32>
    %c32_84 = arith.constant 32 : index
    %c128_85 = arith.constant 128 : index
    %111 = vector.load %arg11[%c32_84, %c128_85] : memref<120x512xf32, #tpu.memory_space<vmem>>, vector<32x256xf32>
    tpu.vector_store %arg11[%c32_84, %c128_85], %110 {strides = array<i32>} : memref<120x512xf32, #tpu.memory_space<vmem>>, vector<32x256xf32>,
    %c32_86 = arith.constant 32 : index
    %c127_87 = arith.constant 127 : index
    %112 = vector.load %arg11[%c32_86, %c127_87] : memref<120x512xf32, #tpu.memory_space<vmem>>, vector<32x256xf32>
    %113 = vector.broadcast %23 : vector<1x256xf32> to vector<32x256xf32>
    %114 = arith.mulf %112, %113 : vector<32x256xf32>
    %c32_88 = arith.constant 32 : index
    %c129_89 = arith.constant 129 : index
    %115 = vector.load %arg11[%c32_88, %c129_89] : memref<120x512xf32, #tpu.memory_space<vmem>>, vector<32x256xf32>
    %116 = vector.broadcast %27 : vector<1x256xf32> to vector<32x256xf32>
    %117 = arith.mulf %115, %116 : vector<32x256xf32>
    %c0_90 = arith.constant 0 : index
    %c128_91 = arith.constant 128 : index
    %118 = vector.load %arg11[%c0_90, %c128_91] : memref<120x512xf32, #tpu.memory_space<vmem>>, vector<32x256xf32>
    tpu.vector_store %arg11[%c0_90, %c128_91], %114 {strides = array<i32>} : memref<120x512xf32, #tpu.memory_space<vmem>>, vector<32x256xf32>,
    %c64 = arith.constant 64 : index
    %c128_92 = arith.constant 128 : index
    %119 = vector.load %arg11[%c64, %c128_92] : memref<120x512xf32, #tpu.memory_space<vmem>>, vector<32x256xf32>
    tpu.vector_store %arg11[%c64, %c128_92], %117 {strides = array<i32>} : memref<120x512xf32, #tpu.memory_space<vmem>>, vector<32x256xf32>,
    %c0_93 = arith.constant 0 : index
    %c112_94 = arith.constant 112 : index
    %120 = vector.load %arg11[%c0_93, %c112_94] : memref<120x512xf32, #tpu.memory_space<vmem>>, vector<96x256xf32>
    %121 = arith.truncf %120 : vector<96x256xf32> to vector<96x256xbf16>
    %c0_95 = arith.constant 0 : index
    %c0_96 = arith.constant 0 : index
    %122 = vector.load %arg12[%c0_95, %c0_96] : memref<360x256xbf16, #tpu.memory_space<vmem>>, vector<96x256xbf16>
    tpu.vector_store %arg12[%c0_95, %c0_96], %121 {strides = array<i32>} : memref<360x256xbf16, #tpu.memory_space<vmem>>, vector<96x256xbf16>,
    %c0_97 = arith.constant 0 : index
    %c128_98 = arith.constant 128 : index
    %123 = vector.load %arg11[%c0_97, %c128_98] : memref<120x512xf32, #tpu.memory_space<vmem>>, vector<96x256xf32>
    %124 = arith.truncf %123 : vector<96x256xf32> to vector<96x256xbf16>
    %c96_99 = arith.constant 96 : index
    %c0_100 = arith.constant 0 : index
    %125 = vector.load %arg12[%c96_99, %c0_100] : memref<360x256xbf16, #tpu.memory_space<vmem>>, vector<96x256xbf16>
    tpu.vector_store %arg12[%c96_99, %c0_100], %124 {strides = array<i32>} : memref<360x256xbf16, #tpu.memory_space<vmem>>, vector<96x256xbf16>,
    %c0_101 = arith.constant 0 : index
    %c144_102 = arith.constant 144 : index
    %126 = vector.load %arg11[%c0_101, %c144_102] : memref<120x512xf32, #tpu.memory_space<vmem>>, vector<96x256xf32>
    %127 = arith.truncf %126 : vector<96x256xf32> to vector<96x256xbf16>
    %c192 = arith.constant 192 : index
    %c0_103 = arith.constant 0 : index
    %128 = vector.load %arg12[%c192, %c0_103] : memref<360x256xbf16, #tpu.memory_space<vmem>>, vector<96x256xbf16>
    tpu.vector_store %arg12[%c192, %c0_103], %127 {strides = array<i32>} : memref<360x256xbf16, #tpu.memory_space<vmem>>, vector<96x256xbf16>,
    %c0_104 = arith.constant 0 : index
    %c0_105 = arith.constant 0 : index
    %129 = vector.load %arg8[%c0_104, %c0_105] : memref<1x288xbf16, #tpu.memory_space<vmem>>, vector<1x288xbf16>
    %c0_106 = arith.constant 0 : index
    %c0_107 = arith.constant 0 : index
    %130 = vector.load %arg12[%c0_106, %c0_107] : memref<360x256xbf16, #tpu.memory_space<vmem>>, vector<288x256xbf16>
    %cst_108 = arith.constant dense<0.000000e+00> : vector<1x256xf32>
    %131 = tpu.matmul %129, %130, %cst_108 {dimension_numbers = #tpu.dot_dimension_numbers<[1], [0], [0], [1], [0, 0, 1, 1], [], []>} : vector<1x288xbf16>, vector<288x256xbf16>, vector<1x256xf32> -> vector<1x256xf32>
    %c0_109 = arith.constant 0 : index
    %c0_110 = arith.constant 0 : index
    %132 = vector.load %arg9[%c0_109, %c0_110] : memref<1x1xf32, #tpu.memory_space<vmem>>, vector<1x1xf32>
    %133 = vector.broadcast %132 : vector<1x1xf32> to vector<1x256xf32>
    %134 = arith.addf %131, %133 : vector<1x256xf32>
    %cst_111 = arith.constant 2.000000e+01 : f32
    %135 = vector.broadcast %cst_111 : f32 to vector<1x256xf32>
    %136 = arith.cmpf ogt, %134, %135 : vector<1x256xf32>
    %137 = math.exp %134 : vector<1x256xf32>
    %138 = math.log1p %137 : vector<1x256xf32>
    %139 = arith.select %136, %134, %138 : vector<1x256xi1>, vector<1x256xf32>
    %c0_112 = arith.constant 0 : index
    %c0_113 = arith.constant 0 : index
    %c0_114 = arith.constant 0 : index
    %140 = vector.load %arg10[%c0_112, %c0_113, %c0_114] : memref<1x1x256xf32, #tpu.memory_space<vmem>>, vector<1x1x256xf32>
    %141 = vector.shape_cast %140 : vector<1x1x256xf32> to vector<1x256xf32>
    %142 = vector.shape_cast %139 : vector<1x256xf32> to vector<1x1x256xf32>
    tpu.vector_store %arg10[%c0_112, %c0_113, %c0_114], %142 {strides = array<i32>} : memref<1x1x256xf32, #tpu.memory_space<vmem>>, vector<1x1x256xf32>,
    return
  }
  func.func @transform_0(%arg0: i32) -> (i32, i32, i32) {
    %c0_i32 = arith.constant 0 : i32
    %c0_i32_0 = arith.constant 0 : i32
    %c0_i32_1 = arith.constant 0 : i32
    return %arg0, %c0_i32, %c0_i32_0 : i32, i32, i32
  }
  func.func @transform_1(%arg0: i32) -> (i32, i32) {
    %c0_i32 = arith.constant 0 : i32
    %c0_i32_0 = arith.constant 0 : i32
    %c0_i32_1 = arith.constant 0 : i32
    return %c0_i32, %c0_i32_0 : i32, i32
  }
  func.func @transform_2(%arg0: i32) -> (i32, i32) {
    %c0_i32 = arith.constant 0 : i32
    %c0_i32_0 = arith.constant 0 : i32
    %c0_i32_1 = arith.constant 0 : i32
    return %c0_i32, %c0_i32_0 : i32, i32
  }
  func.func @transform_3(%arg0: i32) -> (i32, i32) {
    %c0_i32 = arith.constant 0 : i32
    %c0_i32_0 = arith.constant 0 : i32
    %c0_i32_1 = arith.constant 0 : i32
    return %c0_i32, %c0_i32_0 : i32, i32
  }
  func.func @transform_4(%arg0: i32) -> (i32, i32) {
    %c0_i32 = arith.constant 0 : i32
    %c0_i32_0 = arith.constant 0 : i32
    %c0_i32_1 = arith.constant 0 : i32
    return %c0_i32, %c0_i32_0 : i32, i32
  }
  func.func @transform_5(%arg0: i32) -> (i32, i32) {
    %c0_i32 = arith.constant 0 : i32
    %c0_i32_0 = arith.constant 0 : i32
    %c0_i32_1 = arith.constant 0 : i32
    return %c0_i32, %c0_i32_0 : i32, i32
  }
  func.func @transform_6(%arg0: i32) -> (i32, i32) {
    %c0_i32 = arith.constant 0 : i32
    %c0_i32_0 = arith.constant 0 : i32
    %c0_i32_1 = arith.constant 0 : i32
    return %c0_i32, %c0_i32_0 : i32, i32
  }
  func.func @transform_7(%arg0: i32) -> (i32, i32) {
    %c0_i32 = arith.constant 0 : i32
    %c0_i32_0 = arith.constant 0 : i32
    %c0_i32_1 = arith.constant 0 : i32
    return %c0_i32, %c0_i32_0 : i32, i32
  }
  func.func @transform_8(%arg0: i32) -> (i32, i32) {
    %c0_i32 = arith.constant 0 : i32
    %c0_i32_0 = arith.constant 0 : i32
    %c0_i32_1 = arith.constant 0 : i32
    return %c0_i32, %c0_i32_0 : i32, i32
  }
  func.func @transform_9(%arg0: i32) -> (i32, i32, i32) {
    %c0_i32 = arith.constant 0 : i32
    %c0_i32_0 = arith.constant 0 : i32
    %c0_i32_1 = arith.constant 0 : i32
    return %arg0, %c0_i32, %c0_i32_0 : i32, i32, i32
  }
}

</mosaic_0001>

<llo_original>
// kernel: _lambda_.1
$region0: #{_lambda_.1}
  #allocation0 [shape = 'u32[]', space=smem, size = 0x4, offset = 0x4, fixed_abs, tag = 'smem constant byte address 0x4 - core index']
  #allocation1 [shape = 'u32[144,128]{1,0:T(1,128)}', space=vmem, size = 0x12000, scoped, tag = 'internal scratch']
  #allocation2 [shape = 'f32[120,512]{1,0:T(8,128)}', space=vmem, size = 0x3c000, scoped, tag = 'scratch operand']
  #allocation3 [shape = 'bf16[360,256]{1,0:T(8,128)(2,1)}', space=vmem, size = 0x2d000, scoped, tag = 'scratch operand']
  #allocation4 [shape = 'f32[1,1]{1,0:T(1,128)S(1)}', space=vmem, size = 0x200, scoped, tag = 'scoped memory for _lambda_.1']
  %s0 = inlined_call_operand.vmem [shape: f32[2,40,256], index: 0, kind: input, shape index: {}]
  %s1 = inlined_call_operand.vmem [shape: bf16[8,360], index: 1, kind: input, shape index: {}]
  %s2 = inlined_call_operand.vmem [shape: f32[8,1], index: 2, kind: input, shape index: {}]
  %s3 = inlined_call_operand.vmem [shape: bf16[16,72], index: 3, kind: input, shape index: {}]
  %s4 = inlined_call_operand.vmem [shape: f32[16,1], index: 4, kind: input, shape index: {}]
  %s5 = inlined_call_operand.vmem [shape: bf16[32,144], index: 5, kind: input, shape index: {}]
  %s6 = inlined_call_operand.vmem [shape: f32[32,1], index: 6, kind: input, shape index: {}]
  %s7 = inlined_call_operand.vmem [shape: bf16[1,288], index: 7, kind: input, shape index: {}]
  %s8 = inlined_call_operand.<no memory space> [shape: f32[1,1], index: 8, kind: input, shape index: {}]
  %s9 = inlined_call_operand.vmem [shape: f32[2,1,256], index: 9, kind: output, shape index: {}]
  %s10 = sld [smem:[#allocation0]]
  $region69: #{_lambda_.1} parent=0
    _
  %s12 = ssub.s32 1, %s10
  %s13 = scalar_select 0, %s12, %s10
  %v14 = vstv %s8
  %15 = vst [vmem:[#allocation4] sm:$0x1] %v14
  loop: start=0, step=1, limit=4
  $region2: #{_lambda_.1} parent=0 // loop_pre_header
    _
  $region3: #{_lambda_.1} parent=0 // loop_header
    %s17 = sphi 0, %s21
    %p18 = scmp.ge.s32.totalorder %s17, 4
    %s27 = sphi 0, %s29
    %s30 = sphi 0, %s27
    %s31 = sphi 0, %s30
    %s47 = sphi 0, %s31
    %s51 = sphi 0, %s51
    %s53 = sphi 0, %s51
    %s54 = sphi 0, %s53
    %s68 = sphi 0, %s54
    %s72 = sphi 0, %s72
    %s74 = sphi 0, %s72
    %s75 = sphi 0, %s74
    %s89 = sphi 0, %s75
    %s93 = sphi 0, %s93
    %s95 = sphi 0, %s93
    %s96 = sphi 0, %s95
    %s110 = sphi 0, %s96
    %s114 = sphi 0, %s114
    %s116 = sphi 0, %s114
    %s117 = sphi 0, %s116
    %s131 = sphi 0, %s117
    %s135 = sphi 0, %s135
    %s137 = sphi 0, %s135
    %s138 = sphi 0, %s137
    %s152 = sphi 0, %s138
    %s156 = sphi 0, %s156
    %s158 = sphi 0, %s156
    %s159 = sphi 0, %s158
    %s173 = sphi 0, %s159
    %s177 = sphi 0, %s177
    %s179 = sphi 0, %s177
    %s180 = sphi 0, %s179
    %s194 = sphi 0, %s180
    %s198 = sphi 0, %s198
    %s200 = sphi 0, %s198
    %s201 = sphi 0, %s200
    %s215 = sphi 0, %s201
    %s221 = sphi 0, %s223
    %s224 = sphi 0, %s221
    %s225 = sphi 0, %s224
    %s241 = sphi 0, %s225
  $region4: #{_lambda_.1} parent=0 // loop_header_branch
    %20 = sbr.rel (%p18) target = $region8
  $region5: #{_lambda_.1} parent=0 // loop_body
    %s22 = ssub.s32 %s17, 1
    %s23 = ssub.s32 %s17, 2
    %s24 = sadd.s32 %s17, 1
    %s25 = ssub.s32 %s17, %s24
    %p26 = scmp.eq.s32.totalorder %s25, 0
    %s28 = sadd.s32 %s27, 1
    %s29 = scalar_select %p26, %s27, %s28
    %p32 = pneg %p26
    %p33 = scmp.eq.s32.totalorder %s17, 1
    %p34 = por %p32, %p33
    %p35 = scmp.ne.s32.totalorder %s27, %s30
    %p36 = scmp.eq.s32.totalorder %s17, 0
    %p37 = por %p35, %p36
    %p38 = scmp.ne.s32.totalorder %s27, %s30
    %p39 = scmp.eq.s32.totalorder %s22, 1
    %p40 = por %p38, %p39
    %p41 = scmp.ne.s32.totalorder %s30, %s31
    %p42 = scmp.eq.s32.totalorder %s22, 0
    %p43 = por %p41, %p42
    %p44 = scmp.ne.s32.totalorder %s30, %s31
    %p45 = scmp.eq.s32.totalorder %s23, 1
    %p46 = por %p44, %p45
    %p48 = scmp.ne.s32.totalorder %s31, %s47
    %p49 = scmp.eq.s32.totalorder %s23, 0
    %p50 = por %p48, %p49
    %s52 = sadd.s32 %s51, 1
    %p55 = scmp.eq.s32.totalorder %s17, 1
    %p56 = scmp.ne.s32.totalorder %s51, %s53
    %p57 = scmp.eq.s32.totalorder %s17, 0
    %p58 = por %p56, %p57
    %p59 = scmp.ne.s32.totalorder %s51, %s53
    %p60 = scmp.eq.s32.totalorder %s22, 1
    %p61 = por %p59, %p60
    %p62 = scmp.ne.s32.totalorder %s53, %s54
    %p63 = scmp.eq.s32.totalorder %s22, 0
    %p64 = por %p62, %p63
    %p65 = scmp.ne.s32.totalorder %s53, %s54
    %p66 = scmp.eq.s32.totalorder %s23, 1
    %p67 = por %p65, %p66
    %p69 = scmp.ne.s32.totalorder %s54, %s68
    %p70 = scmp.eq.s32.totalorder %s23, 0
    %p71 = por %p69, %p70
    %s73 = sadd.s32 %s72, 1
    %p76 = scmp.eq.s32.totalorder %s17, 1
    %p77 = scmp.ne.s32.totalorder %s72, %s74
    %p78 = scmp.eq.s32.totalorder %s17, 0
    %p79 = por %p77, %p78
    %p80 = scmp.ne.s32.totalorder %s72, %s74
    %p81 = scmp.eq.s32.totalorder %s22, 1
    %p82 = por %p80, %p81
    %p83 = scmp.ne.s32.totalorder %s74, %s75
    %p84 = scmp.eq.s32.totalorder %s22, 0
    %p85 = por %p83, %p84
    %p86 = scmp.ne.s32.totalorder %s74, %s75
    %p87 = scmp.eq.s32.totalorder %s23, 1
    %p88 = por %p86, %p87
    %p90 = scmp.ne.s32.totalorder %s75, %s89
    %p91 = scmp.eq.s32.totalorder %s23, 0
    %p92 = por %p90, %p91
    %s94 = sadd.s32 %s93, 1
    %p97 = scmp.eq.s32.totalorder %s17, 1
    %p98 = scmp.ne.s32.totalorder %s93, %s95
    %p99 = scmp.eq.s32.totalorder %s17, 0
    %p100 = por %p98, %p99
    %p101 = scmp.ne.s32.totalorder %s93, %s95
    %p102 = scmp.eq.s32.totalorder %s22, 1
    %p103 = por %p101, %p102
    %p104 = scmp.ne.s32.totalorder %s95, %s96
    %p105 = scmp.eq.s32.totalorder %s22, 0
    %p106 = por %p104, %p105
    %p107 = scmp.ne.s32.totalorder %s95, %s96
    %p108 = scmp.eq.s32.totalorder %s23, 1
    %p109 = por %p107, %p108
    %p111 = scmp.ne.s32.totalorder %s96, %s110
    %p112 = scmp.eq.s32.totalorder %s23, 0
    %p113 = por %p111, %p112
    %s115 = sadd.s32 %s114, 1
    %p118 = scmp.eq.s32.totalorder %s17, 1
    %p119 = scmp.ne.s32.totalorder %s114, %s116
    %p120 = scmp.eq.s32.totalorder %s17, 0
    %p121 = por %p119, %p120
    %p122 = scmp.ne.s32.totalorder %s114, %s116
    %p123 = scmp.eq.s32.totalorder %s22, 1
    %p124 = por %p122, %p123
    %p125 = scmp.ne.s32.totalorder %s116, %s117
    %p126 = scmp.eq.s32.totalorder %s22, 0
    %p127 = por %p125, %p126
    %p128 = scmp.ne.s32.totalorder %s116, %s117
    %p129 = scmp.eq.s32.totalorder %s23, 1
    %p130 = por %p128, %p129
    %p132 = scmp.ne.s32.totalorder %s117, %s131
    %p133 = scmp.eq.s32.totalorder %s23, 0
    %p134 = por %p132, %p133
    %s136 = sadd.s32 %s135, 1
    %p139 = scmp.eq.s32.totalorder %s17, 1
    %p140 = scmp.ne.s32.totalorder %s135, %s137
    %p141 = scmp.eq.s32.totalorder %s17, 0
    %p142 = por %p140, %p141
    %p143 = scmp.ne.s32.totalorder %s135, %s137
    %p144 = scmp.eq.s32.totalorder %s22, 1
    %p145 = por %p143, %p144
    %p146 = scmp.ne.s32.totalorder %s137, %s138
    %p147 = scmp.eq.s32.totalorder %s22, 0
    %p148 = por %p146, %p147
    %p149 = scmp.ne.s32.totalorder %s137, %s138
    %p150 = scmp.eq.s32.totalorder %s23, 1
    %p151 = por %p149, %p150
    %p153 = scmp.ne.s32.totalorder %s138, %s152
    %p154 = scmp.eq.s32.totalorder %s23, 0
    %p155 = por %p153, %p154
    %s157 = sadd.s32 %s156, 1
    %p160 = scmp.eq.s32.totalorder %s17, 1
    %p161 = scmp.ne.s32.totalorder %s156, %s158
    %p162 = scmp.eq.s32.totalorder %s17, 0
    %p163 = por %p161, %p162
    %p164 = scmp.ne.s32.totalorder %s156, %s158
    %p165 = scmp.eq.s32.totalorder %s22, 1
    %p166 = por %p164, %p165
    %p167 = scmp.ne.s32.totalorder %s158, %s159
    %p168 = scmp.eq.s32.totalorder %s22, 0
    %p169 = por %p167, %p168
    %p170 = scmp.ne.s32.totalorder %s158, %s159
    %p171 = scmp.eq.s32.totalorder %s23, 1
    %p172 = por %p170, %p171
    %p174 = scmp.ne.s32.totalorder %s159, %s173
    %p175 = scmp.eq.s32.totalorder %s23, 0
    %p176 = por %p174, %p175
    %s178 = sadd.s32 %s177, 1
    %p181 = scmp.eq.s32.totalorder %s17, 1
    %p182 = scmp.ne.s32.totalorder %s177, %s179
    %p183 = scmp.eq.s32.totalorder %s17, 0
    %p184 = por %p182, %p183
    %p185 = scmp.ne.s32.totalorder %s177, %s179
    %p186 = scmp.eq.s32.totalorder %s22, 1
    %p187 = por %p185, %p186
    %p188 = scmp.ne.s32.totalorder %s179, %s180
    %p189 = scmp.eq.s32.totalorder %s22, 0
    %p190 = por %p188, %p189
    %p191 = scmp.ne.s32.totalorder %s179, %s180
    %p192 = scmp.eq.s32.totalorder %s23, 1
    %p193 = por %p191, %p192
    %p195 = scmp.ne.s32.totalorder %s180, %s194
    %p196 = scmp.eq.s32.totalorder %s23, 0
    %p197 = por %p195, %p196
    %s199 = sadd.s32 %s198, 1
    %p202 = scmp.eq.s32.totalorder %s17, 1
    %p203 = scmp.ne.s32.totalorder %s198, %s200
    %p204 = scmp.eq.s32.totalorder %s17, 0
    %p205 = por %p203, %p204
    %p206 = scmp.ne.s32.totalorder %s198, %s200
    %p207 = scmp.eq.s32.totalorder %s22, 1
    %p208 = por %p206, %p207
    %p209 = scmp.ne.s32.totalorder %s200, %s201
    %p210 = scmp.eq.s32.totalorder %s22, 0
    %p211 = por %p209, %p210
    %p212 = scmp.ne.s32.totalorder %s200, %s201
    %p213 = scmp.eq.s32.totalorder %s23, 1
    %p214 = por %p212, %p213
    %p216 = scmp.ne.s32.totalorder %s201, %s215
    %p217 = scmp.eq.s32.totalorder %s23, 0
    %p218 = por %p216, %p217
    %s219 = ssub.s32 %s17, %s24
    %p220 = scmp.eq.s32.totalorder %s219, 0
    %s222 = sadd.s32 %s221, 1
    %s223 = scalar_select %p220, %s221, %s222
    %p226 = pneg %p220
    %p227 = scmp.eq.s32.totalorder %s17, 1
    %p228 = por %p226, %p227
    %p229 = scmp.ne.s32.totalorder %s221, %s224
    %p230 = scmp.eq.s32.totalorder %s17, 0
    %p231 = por %p229, %p230
    %p232 = scmp.ne.s32.totalorder %s221, %s224
    %p233 = scmp.eq.s32.totalorder %s22, 1
    %p234 = por %p232, %p233
    %p235 = scmp.ne.s32.totalorder %s224, %s225
    %p236 = scmp.eq.s32.totalorder %s22, 0
    %p237 = por %p235, %p236
    %p238 = scmp.ne.s32.totalorder %s224, %s225
    %p239 = scmp.eq.s32.totalorder %s23, 1
    %p240 = por %p238, %p239
    %p242 = scmp.ne.s32.totalorder %s225, %s241
    %p243 = scmp.eq.s32.totalorder %s23, 0
    %p244 = por %p242, %p243
    %p245 = scmp.le.s32.totalorder 1, %s17
    %p246 = scmp.lt.s32.totalorder %s17, 3
    %p247 = pnand %p245, %p246
    %p248 = pneg %p247
    // Predicated region
    $region9: #{_lambda_.1} parent=5 // pred_check
      _
    $region10: #{_lambda_.1} parent=5 // pred_check_branch
      %250 = sbr.rel (%p247) target = $region12
    $region11: #{_lambda_.1} parent=5 // pred_region
      %s251 = ssub.s32 %s17, 1
      // Predicated region
      $region13: #{_lambda_.1} parent=11 // pred_check
        %p252 = pneg %p64
      $region14: #{_lambda_.1} parent=11 // pred_check_branch
        %254 = sbr.rel (%p252) target = $region16
      $region15: #{_lambda_.1} parent=11 // pred_region
        _
      $region16: #{_lambda_.1} parent=11 // pred_fallthru
        _
      // Predicated region
      $region17: #{_lambda_.1} parent=11 // pred_check
        %p255 = pneg %p85
      $region18: #{_lambda_.1} parent=11 // pred_check_branch
        %257 = sbr.rel (%p255) target = $region20
      $region19: #{_lambda_.1} parent=11 // pred_region
        _
      $region20: #{_lambda_.1} parent=11 // pred_fallthru
        _
      // Predicated region
      $region21: #{_lambda_.1} parent=11 // pred_check
        %p258 = pneg %p106
      $region22: #{_lambda_.1} parent=11 // pred_check_branch
        %260 = sbr.rel (%p258) target = $region24
      $region23: #{_lambda_.1} parent=11 // pred_region
        _
      $region24: #{_lambda_.1} parent=11 // pred_fallthru
        _
      // Predicated region
      $region25: #{_lambda_.1} parent=11 // pred_check
        %p261 = pneg %p127
      $region26: #{_lambda_.1} parent=11 // pred_check_branch
        %263 = sbr.rel (%p261) target = $region28
      $region27: #{_lambda_.1} parent=11 // pred_region
        _
      $region28: #{_lambda_.1} parent=11 // pred_fallthru
        _
      // Predicated region
      $region29: #{_lambda_.1} parent=11 // pred_check
        %p264 = pneg %p148
      $region30: #{_lambda_.1} parent=11 // pred_check_branch
        %266 = sbr.rel (%p264) target = $region32
      $region31: #{_lambda_.1} parent=11 // pred_region
        _
      $region32: #{_lambda_.1} parent=11 // pred_fallthru
        _
      // Predicated region
      $region33: #{_lambda_.1} parent=11 // pred_check
        %p267 = pneg %p169
      $region34: #{_lambda_.1} parent=11 // pred_check_branch
        %269 = sbr.rel (%p267) target = $region36
      $region35: #{_lambda_.1} parent=11 // pred_region
        _
      $region36: #{_lambda_.1} parent=11 // pred_fallthru
        _
      // Predicated region
      $region37: #{_lambda_.1} parent=11 // pred_check
        %p270 = pneg %p190
      $region38: #{_lambda_.1} parent=11 // pred_check_branch
        %272 = sbr.rel (%p270) target = $region40
      $region39: #{_lambda_.1} parent=11 // pred_region
        _
      $region40: #{_lambda_.1} parent=11 // pred_fallthru
        _
      // Predicated region
      $region41: #{_lambda_.1} parent=11 // pred_check
        %p273 = pneg %p211
      $region42: #{_lambda_.1} parent=11 // pred_check_branch
        %275 = sbr.rel (%p273) target = $region44
      $region43: #{_lambda_.1} parent=11 // pred_region
        _
      $region44: #{_lambda_.1} parent=11 // pred_fallthru
        _
    $region12: #{_lambda_.1} parent=5 // pred_fallthru
      _
    %p276 = scmp.lt.s32.totalorder %s17, 2
    // Predicated region
    $region45: #{_lambda_.1} parent=5 // pred_check
      %p277 = pneg %p276
    $region46: #{_lambda_.1} parent=5 // pred_check_branch
      %279 = sbr.rel (%p277) target = $region48
    $region47: #{_lambda_.1} parent=5 // pred_region
      // Predicated region
      $region49: #{_lambda_.1} parent=47 // pred_check
        %p280 = pneg %p37
      $region50: #{_lambda_.1} parent=47 // pred_check_branch
        %282 = sbr.rel (%p280) target = $region52
      $region51: #{_lambda_.1} parent=47 // pred_region
        %p283 = scmp.lt.s32.totalorder %s17, 1
        %s284 = scalar_select %p283, %s17, 1
        %s285 = smul.addr %s284, 10
        %s286 = smul.addr %s285, 8
        %s287 = scalar_lea.vmem %s0, %s286
      $region52: #{_lambda_.1} parent=47 // pred_fallthru
        _
    $region48: #{_lambda_.1} parent=5 // pred_fallthru
      _
    %p288 = scmp.le.s32.totalorder 1, %s17
    %p289 = scmp.lt.s32.totalorder %s17, 3
    %p290 = pnand %p288, %p289
    %p291 = pneg %p290
    // Predicated region
    $region53: #{_lambda_.1} parent=5 // pred_check
      _
    $region54: #{_lambda_.1} parent=5 // pred_check_branch
      %293 = sbr.rel (%p290) target = $region56
    $region55: #{_lambda_.1} parent=5 // pred_region
      %s294 = ssub.s32 %s17, 1
      %p295 = scmp.lt.s32.totalorder %s22, 1
      %s296 = scalar_select %p295, %s22, 1
      %s297 = smul.addr %s296, 10
      %s298 = smul.addr %s297, 8
      %s299 = scalar_lea.vmem %s0, %s298
      %p300 = pneg %p43
      %p301 = pneg %p40
      %p302 = pneg %p64
      %p303 = pneg %p61
      %p304 = pneg %p85
      %p305 = pneg %p82
      %p306 = pneg %p106
      %p307 = pneg %p103
      %p308 = pneg %p127
      %p309 = pneg %p124
      %p310 = pneg %p148
      %p311 = pneg %p145
      %p312 = pneg %p169
      %p313 = pneg %p166
      %p314 = pneg %p190
      %p315 = pneg %p187
      %p316 = pneg %p211
      %p317 = pneg %p208
      %p318 = pneg %p237
      %p319 = pneg %p234
      %p320 = scmp.lt.s32.totalorder %s22, 1
      %s321 = scalar_select %p320, %s22, 1
      %s322 = smul.addr %s321, 2
      %s323 = scalar_lea.vmem %s9, %s322
      %p324 = scmp.lt.s32.totalorder %s22, 1
      %s325 = scalar_select %p324, %s22, 1
      %s326 = smul.addr %s325, 10
      %s327 = smul.addr %s326, 8
      %s328 = scalar_lea.vmem %s0, %s327
      %p329 = scmp.lt.s32.totalorder %s22, 1
      %s330 = scalar_select %p329, %s22, 1
      %s331 = smul.addr %s330, 2
      %s332 = scalar_lea.vmem %s9, %s331
      %334 = vst [vmem:[#allocation2] sm:$0xff] 0.0
      %335 = vst [vmem:[#allocation2 + $0x20] sm:$0xff] 0.0
      %336 = vst [vmem:[#allocation2 + $0x40] sm:$0xff] 0.0
      %337 = vst [vmem:[#allocation2 + $0x60] sm:$0xff] 0.0
      %338 = vst [vmem:[#allocation2 + $0x80] sm:$0xff] 0.0
      %339 = vst [vmem:[#allocation2 + $0xa0] sm:$0xff] 0.0
      %340 = vst [vmem:[#allocation2 + $0xc0] sm:$0xff] 0.0
      %341 = vst [vmem:[#allocation2 + $0xe0] sm:$0xff] 0.0
      %342 = vst [vmem:[#allocation2 + $0x100] sm:$0xff] 0.0
      %343 = vst [vmem:[#allocation2 + $0x120] sm:$0xff] 0.0
      %344 = vst [vmem:[#allocation2 + $0x140] sm:$0xff] 0.0
      %345 = vst [vmem:[#allocation2 + $0x160] sm:$0xff] 0.0
      %346 = vst [vmem:[#allocation2 + $0x180] sm:$0xff] 0.0
      %347 = vst [vmem:[#allocation2 + $0x1a0] sm:$0xff] 0.0
      %348 = vst [vmem:[#allocation2 + $0x1c0] sm:$0xff] 0.0
      %349 = vst [vmem:[#allocation2 + $0x18] sm:$0xff] 0.0
      %350 = vst [vmem:[#allocation2 + $0x38] sm:$0xff] 0.0
      %351 = vst [vmem:[#allocation2 + $0x58] sm:$0xff] 0.0
      %352 = vst [vmem:[#allocation2 + $0x78] sm:$0xff] 0.0
      %353 = vst [vmem:[#allocation2 + $0x98] sm:$0xff] 0.0
      %354 = vst [vmem:[#allocation2 + $0xb8] sm:$0xff] 0.0
      %355 = vst [vmem:[#allocation2 + $0xd8] sm:$0xff] 0.0
      %356 = vst [vmem:[#allocation2 + $0xf8] sm:$0xff] 0.0
      %357 = vst [vmem:[#allocation2 + $0x118] sm:$0xff] 0.0
      %358 = vst [vmem:[#allocation2 + $0x138] sm:$0xff] 0.0
      %359 = vst [vmem:[#allocation2 + $0x158] sm:$0xff] 0.0
      %360 = vst [vmem:[#allocation2 + $0x178] sm:$0xff] 0.0
      %361 = vst [vmem:[#allocation2 + $0x198] sm:$0xff] 0.0
      %362 = vst [vmem:[#allocation2 + $0x1b8] sm:$0xff] 0.0
      %363 = vst [vmem:[#allocation2 + $0x1d8] sm:$0xff] 0.0
      %v364 = vlaneseq
      %v365 = vand.u32 %v364, 127
      %v366 = vadd.s32 %v365, 128
      %vm367 = vcmp.lt.s32.totalorder %v365, 0
      %v368 = vsub.s32 0, %v365
      %v369 = vsel %vm367, %v368, %v365
      %v370 = vshrl.u32 %v369, 4
      %v371 = vand.u32 %v369, 15
      %v372 = vsub.s32 0, %v371
      %v373 = vsel %vm367, %v372, %v371
      %vm374 = vcmp.lt.s32.totalorder %v366, 0
      %v375 = vsub.s32 0, %v366
      %v376 = vsel %vm374, %v375, %v366
      %v377 = vshrl.u32 %v376, 4
      %v378 = vand.u32 %v376, 15
      %v379 = vsub.s32 0, %v378
      %v380 = vsel %vm374, %v379, %v378
      %vm381 = vcmp.ne.s32.totalorder %v373, 0
      %vm382 = vcmp.ne.s32.totalorder %v380, 0
      %vm383 = vcmp.lt.s32.totalorder %v373, 0
      %vm384 = vcmp.lt.s32.totalorder %v380, 0
      %vm385 = vmand %vm383, %vm381
      %vm386 = vmand %vm384, %vm382
      %v387 = vadd.s32 %v373, 16
      %v388 = vadd.s32 %v380, 16
      %v389 = vsel %vm385, %v387, %v373
      %v390 = vsel %vm386, %v388, %v380
      %vm391 = vcmp.ne.s32.totalorder %v389, 0
      %vm392 = vcmp.ne.s32.totalorder %v390, 0
      %v393 = vsel %vm391, 1, 0
      %v394 = vsel %vm392, 1, 0
      %v395 = vcvt.s32.f32 %v393
      %v396 = vcvt.s32.f32 %v394
      %vm397 = vcmp.ne.s32.totalorder %v389, 15
      %vm398 = vcmp.ne.s32.totalorder %v390, 15
      %v399 = vsel %vm397, 1, 0
      %v400 = vsel %vm398, 1, 0
      %v401 = vcvt.s32.f32 %v399
      %v402 = vcvt.s32.f32 %v400
      %v403 = vld [vmem:[%s328] sm:$0xff]
      %v404 = vld [vmem:[%s328 + $0x8] sm:$0xff]
      %v405 = vld [vmem:[%s328 + $0x10] sm:$0xff]
      %v406 = vld [vmem:[%s328 + $0x18] sm:$0xff]
      %v407 = vld [vmem:[%s328 + $0x20] sm:$0xff]
      %v408 = vld [vmem:[%s328 + $0x28] sm:$0xff]
      %v409 = vld [vmem:[%s328 + $0x30] sm:$0xff]
      %v410 = vld [vmem:[%s328 + $0x38] sm:$0xff]
      %v411 = vld [vmem:[%s328 + $0x40] sm:$0xff]
      %v412 = vld [vmem:[%s328 + $0x48] sm:$0xff]
      %413 = vst [vmem:[#allocation2 + $0xa8] sm:$0xff] %v403
      %414 = vst [vmem:[#allocation2 + $0xb0] sm:$0xff] %v404
      %415 = vst [vmem:[#allocation2 + $0xc8] sm:$0xff] %v405
      %416 = vst [vmem:[#allocation2 + $0xd0] sm:$0xff] %v406
      %417 = vst [vmem:[#allocation2 + $0xe8] sm:$0xff] %v407
      %418 = vst [vmem:[#allocation2 + $0xf0] sm:$0xff] %v408
      %419 = vst [vmem:[#allocation2 + $0x108] sm:$0xff] %v409
      %420 = vst [vmem:[#allocation2 + $0x110] sm:$0xff] %v410
      %421 = vst [vmem:[#allocation2 + $0x128] sm:$0xff] %v411
      %422 = vst [vmem:[#allocation2 + $0x130] sm:$0xff] %v412
      %v423 = vld [vmem:[#allocation2 + $0xa0] sm:$0xff]
      %v424 = vld [vmem:[#allocation2 + $0xa8] sm:$0xff]
      %v425 = vld [vmem:[#allocation2 + $0xb0] sm:$0xff]
      %v426 = vld [vmem:[#allocation2 + $0xc0] sm:$0xff]
      %v427 = vld [vmem:[#allocation2 + $0xc8] sm:$0xff]
      %v428 = vld [vmem:[#allocation2 + $0xd0] sm:$0xff]
      %v429 = vld [vmem:[#allocation2 + $0xe0] sm:$0xff]
      %v430 = vld [vmem:[#allocation2 + $0xe8] sm:$0xff]
      %v431 = vld [vmem:[#allocation2 + $0xf0] sm:$0xff]
      %v432 = vld [vmem:[#allocation2 + $0x100] sm:$0xff]
      %v433 = vld [vmem:[#allocation2 + $0x108] sm:$0xff]
      %v434 = vld [vmem:[#allocation2 + $0x110] sm:$0xff]
      %v435 = vld [vmem:[#allocation2 + $0x120] sm:$0xff]
      %v436 = vld [vmem:[#allocation2 + $0x128] sm:$0xff]
      %v437 = vld [vmem:[#allocation2 + $0x130] sm:$0xff]
      %440 = vrot.lane.b32.xlu0 %v395, 127
      %v441 = vpop.permute.xlu0 %440
      %442 = vrot.lane.b32.xlu0 %v396, 127
      %v443 = vpop.permute.xlu0 %442
      %vm444 = vcmask 1039360
      %v445 = vsel %vm444, %v441, %v443
      %v449 = vmul.f32 %v423, %v441
      %v450 = vmul.f32 %v424, %v445
      %v451 = vmul.f32 %v425, %v443
      %v452 = vmul.f32 %v426, %v441
      %v453 = vmul.f32 %v427, %v445
      %v454 = vmul.f32 %v428, %v443
      %v455 = vmul.f32 %v429, %v441
      %v456 = vmul.f32 %v430, %v445
      %v457 = vmul.f32 %v431, %v443
      %v458 = vmul.f32 %v432, %v441
      %v459 = vmul.f32 %v433, %v445
      %v460 = vmul.f32 %v434, %v443
      %v461 = vmul.f32 %v435, %v441
      %v462 = vmul.f32 %v436, %v445
      %v463 = vmul.f32 %v437, %v443
      %v464 = vld [vmem:[#allocation2 + $0xb8] sm:$0xff]
      %v465 = vld [vmem:[#allocation2 + $0xd8] sm:$0xff]
      %v466 = vld [vmem:[#allocation2 + $0xf8] sm:$0xff]
      %v467 = vld [vmem:[#allocation2 + $0x118] sm:$0xff]
      %v468 = vld [vmem:[#allocation2 + $0x138] sm:$0xff]
      %471 = vrot.lane.b32.xlu0 %v401, 1
      %v472 = vpop.permute.xlu0 %471
      %473 = vrot.lane.b32.xlu0 %v402, 1
      %v474 = vpop.permute.xlu0 %473
      %vm475 = vcmask 7168
      %v476 = vsel %vm475, %v472, %v474
      %v480 = vmul.f32 %v424, %v472
      %v481 = vmul.f32 %v425, %v476
      %v482 = vmul.f32 %v464, %v474
      %v483 = vmul.f32 %v427, %v472
      %v484 = vmul.f32 %v428, %v476
      %v485 = vmul.f32 %v465, %v474
      %v486 = vmul.f32 %v430, %v472
      %v487 = vmul.f32 %v431, %v476
      %v488 = vmul.f32 %v466, %v474
      %v489 = vmul.f32 %v433, %v472
      %v490 = vmul.f32 %v434, %v476
      %v491 = vmul.f32 %v467, %v474
      %v492 = vmul.f32 %v436, %v472
      %v493 = vmul.f32 %v437, %v476
      %v494 = vmul.f32 %v468, %v474
      %510 = vrot.lane.b32.xlu0 %v449, 1
      %v511 = vpop.permute.xlu0 %510
      %512 = vrot.lane.b32.xlu0 %v450, 1
      %v513 = vpop.permute.xlu0 %512
      %514 = vrot.lane.b32.xlu0 %v451, 1
      %v515 = vpop.permute.xlu0 %514
      %516 = vrot.lane.b32.xlu0 %v452, 1
      %v517 = vpop.permute.xlu0 %516
      %518 = vrot.lane.b32.xlu0 %v453, 1
      %v519 = vpop.permute.xlu0 %518
      %520 = vrot.lane.b32.xlu0 %v454, 1
      %v521 = vpop.permute.xlu0 %520
      %522 = vrot.lane.b32.xlu0 %v455, 1
      %v523 = vpop.permute.xlu0 %522
      %524 = vrot.lane.b32.xlu0 %v456, 1
      %v525 = vpop.permute.xlu0 %524
      %526 = vrot.lane.b32.xlu0 %v457, 1
      %v527 = vpop.permute.xlu0 %526
      %528 = vrot.lane.b32.xlu0 %v458, 1
      %v529 = vpop.permute.xlu0 %528
      %530 = vrot.lane.b32.xlu0 %v459, 1
      %v531 = vpop.permute.xlu0 %530
      %532 = vrot.lane.b32.xlu0 %v460, 1
      %v533 = vpop.permute.xlu0 %532
      %534 = vrot.lane.b32.xlu0 %v461, 1
      %v535 = vpop.permute.xlu0 %534
      %536 = vrot.lane.b32.xlu0 %v462, 1
      %v537 = vpop.permute.xlu0 %536
      %538 = vrot.lane.b32.xlu0 %v463, 1
      %v539 = vpop.permute.xlu0 %538
      %v540 = vsel %vm475, %v511, %v513
      %v541 = vsel %vm475, %v513, %v515
      %v542 = vsel %vm475, %v517, %v519
      %v543 = vsel %vm475, %v519, %v521
      %v544 = vsel %vm475, %v523, %v525
      %v545 = vsel %vm475, %v525, %v527
      %v546 = vsel %vm475, %v529, %v531
      %v547 = vsel %vm475, %v531, %v533
      %v548 = vsel %vm475, %v535, %v537
      %v549 = vsel %vm475, %v537, %v539
      %560 = vst [vmem:[#allocation2 + $0x8] sm:$0xff] %v540
      %561 = vst [vmem:[#allocation2 + $0x10] sm:$0xff] %v541
      %562 = vst [vmem:[#allocation2 + $0x28] sm:$0xff] %v542
      %563 = vst [vmem:[#allocation2 + $0x30] sm:$0xff] %v543
      %564 = vst [vmem:[#allocation2 + $0x48] sm:$0xff] %v544
      %565 = vst [vmem:[#allocation2 + $0x50] sm:$0xff] %v545
      %566 = vst [vmem:[#allocation2 + $0x68] sm:$0xff] %v546
      %567 = vst [vmem:[#allocation2 + $0x70] sm:$0xff] %v547
      %568 = vst [vmem:[#allocation2 + $0x88] sm:$0xff] %v548
      %569 = vst [vmem:[#allocation2 + $0x90] sm:$0xff] %v549
      %585 = vrot.lane.b32.xlu0 %v480, 127
      %v586 = vpop.permute.xlu0 %585
      %587 = vrot.lane.b32.xlu0 %v481, 127
      %v588 = vpop.permute.xlu0 %587
      %589 = vrot.lane.b32.xlu0 %v482, 127
      %v590 = vpop.permute.xlu0 %589
      %591 = vrot.lane.b32.xlu0 %v483, 127
      %v592 = vpop.permute.xlu0 %591
      %593 = vrot.lane.b32.xlu0 %v484, 127
      %v594 = vpop.permute.xlu0 %593
      %595 = vrot.lane.b32.xlu0 %v485, 127
      %v596 = vpop.permute.xlu0 %595
      %597 = vrot.lane.b32.xlu0 %v486, 127
      %v598 = vpop.permute.xlu0 %597
      %599 = vrot.lane.b32.xlu0 %v487, 127
      %v600 = vpop.permute.xlu0 %599
      %601 = vrot.lane.b32.xlu0 %v488, 127
      %v602 = vpop.permute.xlu0 %601
      %603 = vrot.lane.b32.xlu0 %v489, 127
      %v604 = vpop.permute.xlu0 %603
      %605 = vrot.lane.b32.xlu0 %v490, 127
      %v606 = vpop.permute.xlu0 %605
      %607 = vrot.lane.b32.xlu0 %v491, 127
      %v608 = vpop.permute.xlu0 %607
      %609 = vrot.lane.b32.xlu0 %v492, 127
      %v610 = vpop.permute.xlu0 %609
      %611 = vrot.lane.b32.xlu0 %v493, 127
      %v612 = vpop.permute.xlu0 %611
      %613 = vrot.lane.b32.xlu0 %v494, 127
      %v614 = vpop.permute.xlu0 %613
      %v615 = vsel %vm444, %v586, %v588
      %v616 = vsel %vm444, %v588, %v590
      %v617 = vsel %vm444, %v592, %v594
      %v618 = vsel %vm444, %v594, %v596
      %v619 = vsel %vm444, %v598, %v600
      %v620 = vsel %vm444, %v600, %v602
      %v621 = vsel %vm444, %v604, %v606
      %v622 = vsel %vm444, %v606, %v608
      %v623 = vsel %vm444, %v610, %v612
      %v624 = vsel %vm444, %v612, %v614
      %635 = vst [vmem:[#allocation2 + $0x148] sm:$0xff] %v615
      %636 = vst [vmem:[#allocation2 + $0x150] sm:$0xff] %v616
      %637 = vst [vmem:[#allocation2 + $0x168] sm:$0xff] %v617
      %638 = vst [vmem:[#allocation2 + $0x170] sm:$0xff] %v618
      %639 = vst [vmem:[#allocation2 + $0x188] sm:$0xff] %v619
      %640 = vst [vmem:[#allocation2 + $0x190] sm:$0xff] %v620
      %641 = vst [vmem:[#allocation2 + $0x1a8] sm:$0xff] %v621
      %642 = vst [vmem:[#allocation2 + $0x1b0] sm:$0xff] %v622
      %643 = vst [vmem:[#allocation2 + $0x1c8] sm:$0xff] %v623
      %644 = vst [vmem:[#allocation2 + $0x1d0] sm:$0xff] %v624
      %v645 = vld [vmem:[#allocation2] sm:$0xff]
      %v646 = vld [vmem:[#allocation2 + $0x8] sm:$0xff]
      %v647 = vld [vmem:[#allocation2 + $0x10] sm:$0xff]
      %v648 = vld [vmem:[#allocation2 + $0x20] sm:$0xff]
      %v649 = vld [vmem:[#allocation2 + $0x28] sm:$0xff]
      %v650 = vld [vmem:[#allocation2 + $0x30] sm:$0xff]
      %v651 = vld [vmem:[#allocation2 + $0x40] sm:$0xff]
      %v652 = vld [vmem:[#allocation2 + $0x48] sm:$0xff]
      %v653 = vld [vmem:[#allocation2 + $0x50] sm:$0xff]
      %v654 = vld [vmem:[#allocation2 + $0x60] sm:$0xff]
      %v655 = vld [vmem:[#allocation2 + $0x68] sm:$0xff]
      %v656 = vld [vmem:[#allocation2 + $0x70] sm:$0xff]
      %v657 = vld [vmem:[#allocation2 + $0x80] sm:$0xff]
      %v658 = vld [vmem:[#allocation2 + $0x88] sm:$0xff]
      %v659 = vld [vmem:[#allocation2 + $0x90] sm:$0xff]
      %v660 = vld [vmem:[#allocation2 + $0xa0] sm:$0xff]
      %v661 = vld [vmem:[#allocation2 + $0xa8] sm:$0xff]
      %v662 = vld [vmem:[#allocation2 + $0xb0] sm:$0xff]
      %v663 = vld [vmem:[#allocation2 + $0xc0] sm:$0xff]
      %v664 = vld [vmem:[#allocation2 + $0xc8] sm:$0xff]
      %v665 = vld [vmem:[#allocation2 + $0xd0] sm:$0xff]
      %v666 = vld [vmem:[#allocation2 + $0xe0] sm:$0xff]
      %v667 = vld [vmem:[#allocation2 + $0xe8] sm:$0xff]
      %v668 = vld [vmem:[#allocation2 + $0xf0] sm:$0xff]
      %v669 = vld [vmem:[#allocation2 + $0x100] sm:$0xff]
      %v670 = vld [vmem:[#allocation2 + $0x108] sm:$0xff]
      %v671 = vld [vmem:[#allocation2 + $0x110] sm:$0xff]
      %v672 = vld [vmem:[#allocation2 + $0x120] sm:$0xff]
      %v673 = vld [vmem:[#allocation2 + $0x128] sm:$0xff]
      %v674 = vld [vmem:[#allocation2 + $0x130] sm:$0xff]
      %v675 = vld [vmem:[#allocation2 + $0x140] sm:$0xff]
      %v676 = vld [vmem:[#allocation2 + $0x148] sm:$0xff]
      %v677 = vld [vmem:[#allocation2 + $0x150] sm:$0xff]
      %v678 = vld [vmem:[#allocation2 + $0x160] sm:$0xff]
      %v679 = vld [vmem:[#allocation2 + $0x168] sm:$0xff]
      %v680 = vld [vmem:[#allocation2 + $0x170] sm:$0xff]
      %v681 = vld [vmem:[#allocation2 + $0x180] sm:$0xff]
      %v682 = vld [vmem:[#allocation2 + $0x188] sm:$0xff]
      %v683 = vld [vmem:[#allocation2 + $0x190] sm:$0xff]
      %v684 = vld [vmem:[#allocation2 + $0x1a0] sm:$0xff]
      %v685 = vld [vmem:[#allocation2 + $0x1a8] sm:$0xff]
      %v686 = vld [vmem:[#allocation2 + $0x1b0] sm:$0xff]
      %v687 = vld [vmem:[#allocation2 + $0x1c0] sm:$0xff]
      %v688 = vld [vmem:[#allocation2 + $0x1c8] sm:$0xff]
      %v689 = vld [vmem:[#allocation2 + $0x1d0] sm:$0xff]
      %v690 = vpack.c.bf16 %v648, %v645
      %v691 = vpack.c.bf16 %v649, %v646
      %v692 = vpack.c.bf16 %v650, %v647
      %v693 = vpack.c.bf16 %v654, %v651
      %v694 = vpack.c.bf16 %v655, %v652
      %v695 = vpack.c.bf16 %v656, %v653
      %v696 = vpack.c.bf16 %v660, %v657
      %v697 = vpack.c.bf16 %v661, %v658
      %v698 = vpack.c.bf16 %v662, %v659
      %v699 = vpack.c.bf16 %v666, %v663
      %v700 = vpack.c.bf16 %v667, %v664
      %v701 = vpack.c.bf16 %v668, %v665
      %v702 = vpack.c.bf16 %v672, %v669
      %v703 = vpack.c.bf16 %v673, %v670
      %v704 = vpack.c.bf16 %v674, %v671
      %v705 = vpack.c.bf16 %v678, %v675
      %v706 = vpack.c.bf16 %v679, %v676
      %v707 = vpack.c.bf16 %v680, %v677
      %v708 = vpack.c.bf16 %v684, %v681
      %v709 = vpack.c.bf16 %v685, %v682
      %v710 = vpack.c.bf16 %v686, %v683
      %v711 = vpack.c.bf16 %v687, %v687
      %v712 = vpack.c.bf16 %v688, %v688
      %v713 = vpack.c.bf16 %v689, %v689
      %v738 = vunpack.c.l.b16 %v690
      %v739 = vunpack.c.l.b16 %v691
      %v740 = vunpack.c.l.b16 %v692
      %v741 = vunpack.c.h.b16 %v690
      %v742 = vunpack.c.h.b16 %v691
      %v743 = vunpack.c.h.b16 %v692
      %v744 = vunpack.c.l.b16 %v693
      %v745 = vunpack.c.l.b16 %v694
      %v746 = vunpack.c.l.b16 %v695
      %v747 = vunpack.c.h.b16 %v693
      %v748 = vunpack.c.h.b16 %v694
      %v749 = vunpack.c.h.b16 %v695
      %v750 = vunpack.c.l.b16 %v696
      %v751 = vunpack.c.l.b16 %v697
      %v752 = vunpack.c.l.b16 %v698
      %v753 = vunpack.c.h.b16 %v696
      %v754 = vunpack.c.h.b16 %v697
      %v755 = vunpack.c.h.b16 %v698
      %v756 = vunpack.c.l.b16 %v699
      %v757 = vunpack.c.l.b16 %v700
      %v758 = vunpack.c.l.b16 %v701
      %v759 = vunpack.c.h.b16 %v699
      %v760 = vunpack.c.h.b16 %v700
      %v761 = vunpack.c.h.b16 %v701
      %v762 = vunpack.c.l.b16 %v702
      %v763 = vunpack.c.l.b16 %v703
      %v764 = vunpack.c.l.b16 %v704
      %v765 = vunpack.c.h.b16 %v702
      %v766 = vunpack.c.h.b16 %v703
      %v767 = vunpack.c.h.b16 %v704
      %v768 = vunpack.c.l.b16 %v705
      %v769 = vunpack.c.l.b16 %v706
      %v770 = vunpack.c.l.b16 %v707
      %v771 = vunpack.c.h.b16 %v705
      %v772 = vunpack.c.h.b16 %v706
      %v773 = vunpack.c.h.b16 %v707
      %v774 = vunpack.c.l.b16 %v708
      %v775 = vunpack.c.l.b16 %v709
      %v776 = vunpack.c.l.b16 %v710
      %v777 = vunpack.c.h.b16 %v708
      %v778 = vunpack.c.h.b16 %v709
      %v779 = vunpack.c.h.b16 %v710
      %v780 = vunpack.c.l.b16 %v711
      %v781 = vunpack.c.l.b16 %v712
      %v782 = vunpack.c.l.b16 %v713
      %v783 = vpack.c.b16 %v739, %v738
      %v784 = vpack.c.b16 %v740, %v740
      %v785 = vpack.c.b16 %v742, %v741
      %v786 = vpack.c.b16 %v743, %v743
      %v787 = vpack.c.b16 %v745, %v744
      %v788 = vpack.c.b16 %v746, %v746
      %v789 = vpack.c.b16 %v748, %v747
      %v790 = vpack.c.b16 %v749, %v749
      %v791 = vpack.c.b16 %v751, %v750
      %v792 = vpack.c.b16 %v752, %v752
      %v793 = vpack.c.b16 %v754, %v753
      %v794 = vpack.c.b16 %v755, %v755
      %v795 = vpack.c.b16 %v757, %v756
      %v796 = vpack.c.b16 %v758, %v758
      %v797 = vpack.c.b16 %v760, %v759
      %v798 = vpack.c.b16 %v761, %v761
      %v799 = vpack.c.b16 %v763, %v762
      %v800 = vpack.c.b16 %v764, %v764
      %v801 = vpack.c.b16 %v766, %v765
      %v802 = vpack.c.b16 %v767, %v767
      %v803 = vpack.c.b16 %v769, %v768
      %v804 = vpack.c.b16 %v770, %v770
      %v805 = vpack.c.b16 %v772, %v771
      %v806 = vpack.c.b16 %v773, %v773
      %v807 = vpack.c.b16 %v775, %v774
      %v808 = vpack.c.b16 %v776, %v776
      %v809 = vpack.c.b16 %v778, %v777
      %v810 = vpack.c.b16 %v779, %v779
      %v811 = vpack.c.b16 %v781, %v780
      %v812 = vpack.c.b16 %v782, %v782
      %813 = vrot.lane.b32.xlu0 %v783, 16
      %v814 = vpop.permute.xlu0 %813
      %815 = vrot.lane.b32.xlu0 %v784, 16
      %v816 = vpop.permute.xlu0 %815
      %817 = vrot.lane.b32.xlu0 %v785, 16
      %v818 = vpop.permute.xlu0 %817
      %819 = vrot.lane.b32.xlu0 %v786, 16
      %v820 = vpop.permute.xlu0 %819
      %821 = vrot.lane.b32.xlu0 %v787, 16
      %v822 = vpop.permute.xlu0 %821
      %823 = vrot.lane.b32.xlu0 %v788, 16
      %v824 = vpop.permute.xlu0 %823
      %825 = vrot.lane.b32.xlu0 %v789, 16
      %v826 = vpop.permute.xlu0 %825
      %827 = vrot.lane.b32.xlu0 %v790, 16
      %v828 = vpop.permute.xlu0 %827
      %829 = vrot.lane.b32.xlu0 %v791, 16
      %v830 = vpop.permute.xlu0 %829
      %831 = vrot.lane.b32.xlu0 %v792, 16
      %v832 = vpop.permute.xlu0 %831
      %833 = vrot.lane.b32.xlu0 %v793, 16
      %v834 = vpop.permute.xlu0 %833
      %835 = vrot.lane.b32.xlu0 %v794, 16
      %v836 = vpop.permute.xlu0 %835
      %837 = vrot.lane.b32.xlu0 %v795, 16
      %v838 = vpop.permute.xlu0 %837
      %839 = vrot.lane.b32.xlu0 %v796, 16
      %v840 = vpop.permute.xlu0 %839
      %841 = vrot.lane.b32.xlu0 %v797, 16
      %v842 = vpop.permute.xlu0 %841
      %843 = vrot.lane.b32.xlu0 %v798, 16
      %v844 = vpop.permute.xlu0 %843
      %845 = vrot.lane.b32.xlu0 %v799, 16
      %v846 = vpop.permute.xlu0 %845
      %847 = vrot.lane.b32.xlu0 %v800, 16
      %v848 = vpop.permute.xlu0 %847
      %849 = vrot.lane.b32.xlu0 %v801, 16
      %v850 = vpop.permute.xlu0 %849
      %851 = vrot.lane.b32.xlu0 %v802, 16
      %v852 = vpop.permute.xlu0 %851
      %853 = vrot.lane.b32.xlu0 %v803, 16
      %v854 = vpop.permute.xlu0 %853
      %855 = vrot.lane.b32.xlu0 %v804, 16
      %v856 = vpop.permute.xlu0 %855
      %857 = vrot.lane.b32.xlu0 %v805, 16
      %v858 = vpop.permute.xlu0 %857
      %859 = vrot.lane.b32.xlu0 %v806, 16
      %v860 = vpop.permute.xlu0 %859
      %861 = vrot.lane.b32.xlu0 %v807, 16
      %v862 = vpop.permute.xlu0 %861
      %863 = vrot.lane.b32.xlu0 %v808, 16
      %v864 = vpop.permute.xlu0 %863
      %865 = vrot.lane.b32.xlu0 %v809, 16
      %v866 = vpop.permute.xlu0 %865
      %867 = vrot.lane.b32.xlu0 %v810, 16
      %v868 = vpop.permute.xlu0 %867
      %869 = vrot.lane.b32.xlu0 %v811, 16
      %v870 = vpop.permute.xlu0 %869
      %871 = vrot.lane.b32.xlu0 %v812, 16
      %v872 = vpop.permute.xlu0 %871
      %v873 = vrot.slane %v814, 4
      %v874 = vrot.slane %v816, 4
      %v875 = vrot.slane %v818, 4
      %v876 = vrot.slane %v820, 4
      %v877 = vrot.slane %v822, 4
      %v878 = vrot.slane %v824, 4
      %v879 = vrot.slane %v826, 4
      %v880 = vrot.slane %v828, 4
      %v881 = vrot.slane %v830, 4
      %v882 = vrot.slane %v832, 4
      %v883 = vrot.slane %v834, 4
      %v884 = vrot.slane %v836, 4
      %v885 = vrot.slane %v838, 4
      %v886 = vrot.slane %v840, 4
      %v887 = vrot.slane %v842, 4
      %v888 = vrot.slane %v844, 4
      %v889 = vrot.slane %v846, 4
      %v890 = vrot.slane %v848, 4
      %v891 = vrot.slane %v850, 4
      %v892 = vrot.slane %v852, 4
      %v893 = vrot.slane %v854, 4
      %v894 = vrot.slane %v856, 4
      %v895 = vrot.slane %v858, 4
      %v896 = vrot.slane %v860, 4
      %v897 = vrot.slane %v862, 4
      %v898 = vrot.slane %v864, 4
      %v899 = vrot.slane %v866, 4
      %v900 = vrot.slane %v868, 4
      %v901 = vrot.slane %v870, 4
      %v902 = vrot.slane %v872, 4
      %vm903 = vcmask 1043456
      %v904 = vsel %vm903, %v873, %v874
      %vm905 = vcmask 130048
      %v906 = vsel %vm905, %v814, %v904
      %v907 = vsel %vm903, %v875, %v876
      %v908 = vsel %vm905, %v818, %v907
      %v909 = vsel %vm903, %v877, %v878
      %v910 = vsel %vm905, %v822, %v909
      %v911 = vsel %vm903, %v879, %v880
      %v912 = vsel %vm905, %v826, %v911
      %v913 = vsel %vm903, %v881, %v882
      %v914 = vsel %vm905, %v830, %v913
      %v915 = vsel %vm903, %v883, %v884
      %v916 = vsel %vm905, %v834, %v915
      %v917 = vsel %vm903, %v885, %v886
      %v918 = vsel %vm905, %v838, %v917
      %v919 = vsel %vm903, %v887, %v888
      %v920 = vsel %vm905, %v842, %v919
      %v921 = vsel %vm903, %v889, %v890
      %v922 = vsel %vm905, %v846, %v921
      %v923 = vsel %vm903, %v891, %v892
      %v924 = vsel %vm905, %v850, %v923
      %v925 = vsel %vm903, %v893, %v894
      %v926 = vsel %vm905, %v854, %v925
      %v927 = vsel %vm903, %v895, %v896
      %v928 = vsel %vm905, %v858, %v927
      %v929 = vsel %vm903, %v897, %v898
      %v930 = vsel %vm905, %v862, %v929
      %v931 = vsel %vm903, %v899, %v900
      %v932 = vsel %vm905, %v866, %v931
      %v933 = vsel %vm903, %v901, %v902
      %v934 = vsel %vm905, %v870, %v933
      %950 = vst [vmem:[#allocation3] sm:$0xff] %v906
      %951 = vst [vmem:[#allocation3 + $0x8] sm:$0xff] %v908
      %952 = vst [vmem:[#allocation3 + $0x10] sm:$0xff] %v910
      %953 = vst [vmem:[#allocation3 + $0x18] sm:$0xff] %v912
      %954 = vst [vmem:[#allocation3 + $0x20] sm:$0xff] %v914
      %955 = vst [vmem:[#allocation3 + $0x28] sm:$0xff] %v916
      %956 = vst [vmem:[#allocation3 + $0x30] sm:$0xff] %v918
      %957 = vst [vmem:[#allocation3 + $0x38] sm:$0xff] %v920
      %958 = vst [vmem:[#allocation3 + $0x40] sm:$0xff] %v922
      %959 = vst [vmem:[#allocation3 + $0x48] sm:$0xff] %v924
      %960 = vst [vmem:[#allocation3 + $0x50] sm:$0xff] %v926
      %961 = vst [vmem:[#allocation3 + $0x58] sm:$0xff] %v928
      %962 = vst [vmem:[#allocation3 + $0x60] sm:$0xff] %v930
      %963 = vst [vmem:[#allocation3 + $0x68] sm:$0xff] %v932
      %964 = vst [vmem:[#allocation3 + $0x70] sm:$0xff] %v934
      %v965 = vld [vmem:[#allocation2 + $0x8] sm:$0xff]
      %v966 = vld [vmem:[#allocation2 + $0x10] sm:$0xff]
      %v967 = vld [vmem:[#allocation2 + $0x28] sm:$0xff]
      %v968 = vld [vmem:[#allocation2 + $0x30] sm:$0xff]
      %v969 = vld [vmem:[#allocation2 + $0x48] sm:$0xff]
      %v970 = vld [vmem:[#allocation2 + $0x50] sm:$0xff]
      %v971 = vld [vmem:[#allocation2 + $0x68] sm:$0xff]
      %v972 = vld [vmem:[#allocation2 + $0x70] sm:$0xff]
      %v973 = vld [vmem:[#allocation2 + $0x88] sm:$0xff]
      %v974 = vld [vmem:[#allocation2 + $0x90] sm:$0xff]
      %v975 = vld [vmem:[#allocation2 + $0xa8] sm:$0xff]
      %v976 = vld [vmem:[#allocation2 + $0xb0] sm:$0xff]
      %v977 = vld [vmem:[#allocation2 + $0xc8] sm:$0xff]
      %v978 = vld [vmem:[#allocation2 + $0xd0] sm:$0xff]
      %v979 = vld [vmem:[#allocation2 + $0xe8] sm:$0xff]
      %v980 = vld [vmem:[#allocation2 + $0xf0] sm:$0xff]
      %v981 = vld [vmem:[#allocation2 + $0x108] sm:$0xff]
      %v982 = vld [vmem:[#allocation2 + $0x110] sm:$0xff]
      %v983 = vld [vmem:[#allocation2 + $0x128] sm:$0xff]
      %v984 = vld [vmem:[#allocation2 + $0x130] sm:$0xff]
      %v985 = vld [vmem:[#allocation2 + $0x148] sm:$0xff]
      %v986 = vld [vmem:[#allocation2 + $0x150] sm:$0xff]
      %v987 = vld [vmem:[#allocation2 + $0x168] sm:$0xff]
      %v988 = vld [vmem:[#allocation2 + $0x170] sm:$0xff]
      %v989 = vld [vmem:[#allocation2 + $0x188] sm:$0xff]
      %v990 = vld [vmem:[#allocation2 + $0x190] sm:$0xff]
      %v991 = vld [vmem:[#allocation2 + $0x1a8] sm:$0xff]
      %v992 = vld [vmem:[#allocation2 + $0x1b0] sm:$0xff]
      %v993 = vld [vmem:[#allocation2 + $0x1c8] sm:$0xff]
      %v994 = vld [vmem:[#allocation2 + $0x1d0] sm:$0xff]
      %v995 = vpack.c.bf16 %v967, %v965
      %v996 = vpack.c.bf16 %v968, %v966
      %v997 = vpack.c.bf16 %v971, %v969
      %v998 = vpack.c.bf16 %v972, %v970
      %v999 = vpack.c.bf16 %v975, %v973
      %v1000 = vpack.c.bf16 %v976, %v974
      %v1001 = vpack.c.bf16 %v979, %v977
      %v1002 = vpack.c.bf16 %v980, %v978
      %v1003 = vpack.c.bf16 %v983, %v981
      %v1004 = vpack.c.bf16 %v984, %v982
      %v1005 = vpack.c.bf16 %v987, %v985
      %v1006 = vpack.c.bf16 %v988, %v986
      %v1007 = vpack.c.bf16 %v991, %v989
      %v1008 = vpack.c.bf16 %v992, %v990
      %v1009 = vpack.c.bf16 %v993, %v993
      %v1010 = vpack.c.bf16 %v994, %v994
      %v1027 = vunpack.c.l.b16 %v995
      %v1028 = vunpack.c.l.b16 %v996
      %v1029 = vunpack.c.h.b16 %v995
      %v1030 = vunpack.c.h.b16 %v996
      %v1031 = vunpack.c.l.b16 %v997
      %v1032 = vunpack.c.l.b16 %v998
      %v1033 = vunpack.c.h.b16 %v997
      %v1034 = vunpack.c.h.b16 %v998
      %v1035 = vunpack.c.l.b16 %v999
      %v1036 = vunpack.c.l.b16 %v1000
      %v1037 = vunpack.c.h.b16 %v999
      %v1038 = vunpack.c.h.b16 %v1000
      %v1039 = vunpack.c.l.b16 %v1001
      %v1040 = vunpack.c.l.b16 %v1002
      %v1041 = vunpack.c.h.b16 %v1001
      %v1042 = vunpack.c.h.b16 %v1002
      %v1043 = vunpack.c.l.b16 %v1003
      %v1044 = vunpack.c.l.b16 %v1004
      %v1045 = vunpack.c.h.b16 %v1003
      %v1046 = vunpack.c.h.b16 %v1004
      %v1047 = vunpack.c.l.b16 %v1005
      %v1048 = vunpack.c.l.b16 %v1006
      %v1049 = vunpack.c.h.b16 %v1005
      %v1050 = vunpack.c.h.b16 %v1006
      %v1051 = vunpack.c.l.b16 %v1007
      %v1052 = vunpack.c.l.b16 %v1008
      %v1053 = vunpack.c.h.b16 %v1007
      %v1054 = vunpack.c.h.b16 %v1008
      %v1055 = vunpack.c.l.b16 %v1009
      %v1056 = vunpack.c.l.b16 %v1010
      %v1057 = vpack.c.b16 %v1028, %v1027
      %v1058 = vpack.c.b16 %v1030, %v1029
      %v1059 = vpack.c.b16 %v1032, %v1031
      %v1060 = vpack.c.b16 %v1034, %v1033
      %v1061 = vpack.c.b16 %v1036, %v1035
      %v1062 = vpack.c.b16 %v1038, %v1037
      %v1063 = vpack.c.b16 %v1040, %v1039
      %v1064 = vpack.c.b16 %v1042, %v1041
      %v1065 = vpack.c.b16 %v1044, %v1043
      %v1066 = vpack.c.b16 %v1046, %v1045
      %v1067 = vpack.c.b16 %v1048, %v1047
      %v1068 = vpack.c.b16 %v1050, %v1049
      %v1069 = vpack.c.b16 %v1052, %v1051
      %v1070 = vpack.c.b16 %v1054, %v1053
      %v1071 = vpack.c.b16 %v1056, %v1055
      %1087 = vst [vmem:[#allocation3 + $0x78] sm:$0xff] %v1057
      %1088 = vst [vmem:[#allocation3 + $0x80] sm:$0xff] %v1058
      %1089 = vst [vmem:[#allocation3 + $0x88] sm:$0xff] %v1059
      %1090 = vst [vmem:[#allocation3 + $0x90] sm:$0xff] %v1060
      %1091 = vst [vmem:[#allocation3 + $0x98] sm:$0xff] %v1061
      %1092 = vst [vmem:[#allocation3 + $0xa0] sm:$0xff] %v1062
      %1093 = vst [vmem:[#allocation3 + $0xa8] sm:$0xff] %v1063
      %1094 = vst [vmem:[#allocation3 + $0xb0] sm:$0xff] %v1064
      %1095 = vst [vmem:[#allocation3 + $0xb8] sm:$0xff] %v1065
      %1096 = vst [vmem:[#allocation3 + $0xc0] sm:$0xff] %v1066
      %1097 = vst [vmem:[#allocation3 + $0xc8] sm:$0xff] %v1067
      %1098 = vst [vmem:[#allocation3 + $0xd0] sm:$0xff] %v1068
      %1099 = vst [vmem:[#allocation3 + $0xd8] sm:$0xff] %v1069
      %1100 = vst [vmem:[#allocation3 + $0xe0] sm:$0xff] %v1070
      %1101 = vst [vmem:[#allocation3 + $0xe8] sm:$0xff] %v1071
      %v1102 = vld [vmem:[#allocation2 + $0x8] sm:$0xff]
      %v1103 = vld [vmem:[#allocation2 + $0x10] sm:$0xff]
      %v1104 = vld [vmem:[#allocation2 + $0x18] sm:$0xff]
      %v1105 = vld [vmem:[#allocation2 + $0x28] sm:$0xff]
      %v1106 = vld [vmem:[#allocation2 + $0x30] sm:$0xff]
      %v1107 = vld [vmem:[#allocation2 + $0x38] sm:$0xff]
      %v1108 = vld [vmem:[#allocation2 + $0x48] sm:$0xff]
      %v1109 = vld [vmem:[#allocation2 + $0x50] sm:$0xff]
      %v1110 = vld [vmem:[#allocation2 + $0x58] sm:$0xff]
      %v1111 = vld [vmem:[#allocation2 + $0x68] sm:$0xff]
      %v1112 = vld [vmem:[#allocation2 + $0x70] sm:$0xff]
      %v1113 = vld [vmem:[#allocation2 + $0x78] sm:$0xff]
      %v1114 = vld [vmem:[#allocation2 + $0x88] sm:$0xff]
      %v1115 = vld [vmem:[#allocation2 + $0x90] sm:$0xff]
      %v1116 = vld [vmem:[#allocation2 + $0x98] sm:$0xff]
      %v1117 = vld [vmem:[#allocation2 + $0xa8] sm:$0xff]
      %v1118 = vld [vmem:[#allocation2 + $0xb0] sm:$0xff]
      %v1119 = vld [vmem:[#allocation2 + $0xb8] sm:$0xff]
      %v1120 = vld [vmem:[#allocation2 + $0xc8] sm:$0xff]
      %v1121 = vld [vmem:[#allocation2 + $0xd0] sm:$0xff]
      %v1122 = vld [vmem:[#allocation2 + $0xd8] sm:$0xff]
      %v1123 = vld [vmem:[#allocation2 + $0xe8] sm:$0xff]
      %v1124 = vld [vmem:[#allocation2 + $0xf0] sm:$0xff]
      %v1125 = vld [vmem:[#allocation2 + $0xf8] sm:$0xff]
      %v1126 = vld [vmem:[#allocation2 + $0x108] sm:$0xff]
      %v1127 = vld [vmem:[#allocation2 + $0x110] sm:$0xff]
      %v1128 = vld [vmem:[#allocation2 + $0x118] sm:$0xff]
      %v1129 = vld [vmem:[#allocation2 + $0x128] sm:$0xff]
      %v1130 = vld [vmem:[#allocation2 + $0x130] sm:$0xff]
      %v1131 = vld [vmem:[#allocation2 + $0x138] sm:$0xff]
      %v1132 = vld [vmem:[#allocation2 + $0x148] sm:$0xff]
      %v1133 = vld [vmem:[#allocation2 + $0x150] sm:$0xff]
      %v1134 = vld [vmem:[#allocation2 + $0x158] sm:$0xff]
      %v1135 = vld [vmem:[#allocation2 + $0x168] sm:$0xff]
      %v1136 = vld [vmem:[#allocation2 + $0x170] sm:$0xff]
      %v1137 = vld [vmem:[#allocation2 + $0x178] sm:$0xff]
      %v1138 = vld [vmem:[#allocation2 + $0x188] sm:$0xff]
      %v1139 = vld [vmem:[#allocation2 + $0x190] sm:$0xff]
      %v1140 = vld [vmem:[#allocation2 + $0x198] sm:$0xff]
      %v1141 = vld [vmem:[#allocation2 + $0x1a8] sm:$0xff]
      %v1142 = vld [vmem:[#allocation2 + $0x1b0] sm:$0xff]
      %v1143 = vld [vmem:[#allocation2 + $0x1b8] sm:$0xff]
      %v1144 = vld [vmem:[#allocation2 + $0x1c8] sm:$0xff]
      %v1145 = vld [vmem:[#allocation2 + $0x1d0] sm:$0xff]
      %v1146 = vld [vmem:[#allocation2 + $0x1d8] sm:$0xff]
      %v1147 = vpack.c.bf16 %v1105, %v1102
      %v1148 = vpack.c.bf16 %v1106, %v1103
      %v1149 = vpack.c.bf16 %v1107, %v1104
      %v1150 = vpack.c.bf16 %v1111, %v1108
      %v1151 = vpack.c.bf16 %v1112, %v1109
      %v1152 = vpack.c.bf16 %v1113, %v1110
      %v1153 = vpack.c.bf16 %v1117, %v1114
      %v1154 = vpack.c.bf16 %v1118, %v1115
      %v1155 = vpack.c.bf16 %v1119, %v1116
      %v1156 = vpack.c.bf16 %v1123, %v1120
      %v1157 = vpack.c.bf16 %v1124, %v1121
      %v1158 = vpack.c.bf16 %v1125, %v1122
      %v1159 = vpack.c.bf16 %v1129, %v1126
      %v1160 = vpack.c.bf16 %v1130, %v1127
      %v1161 = vpack.c.bf16 %v1131, %v1128
      %v1162 = vpack.c.bf16 %v1135, %v1132
      %v1163 = vpack.c.bf16 %v1136, %v1133
      %v1164 = vpack.c.bf16 %v1137, %v1134
      %v1165 = vpack.c.bf16 %v1141, %v1138
      %v1166 = vpack.c.bf16 %v1142, %v1139
      %v1167 = vpack.c.bf16 %v1143, %v1140
      %v1168 = vpack.c.bf16 %v1144, %v1144
      %v1169 = vpack.c.bf16 %v1145, %v1145
      %v1170 = vpack.c.bf16 %v1146, %v1146
      %v1195 = vunpack.c.l.b16 %v1147
      %v1196 = vunpack.c.l.b16 %v1148
      %v1197 = vunpack.c.l.b16 %v1149
      %v1198 = vunpack.c.h.b16 %v1147
      %v1199 = vunpack.c.h.b16 %v1148
      %v1200 = vunpack.c.h.b16 %v1149
      %v1201 = vunpack.c.l.b16 %v1150
      %v1202 = vunpack.c.l.b16 %v1151
      %v1203 = vunpack.c.l.b16 %v1152
      %v1204 = vunpack.c.h.b16 %v1150
      %v1205 = vunpack.c.h.b16 %v1151
      %v1206 = vunpack.c.h.b16 %v1152
      %v1207 = vunpack.c.l.b16 %v1153
      %v1208 = vunpack.c.l.b16 %v1154
      %v1209 = vunpack.c.l.b16 %v1155
      %v1210 = vunpack.c.h.b16 %v1153
      %v1211 = vunpack.c.h.b16 %v1154
      %v1212 = vunpack.c.h.b16 %v1155
      %v1213 = vunpack.c.l.b16 %v1156
      %v1214 = vunpack.c.l.b16 %v1157
      %v1215 = vunpack.c.l.b16 %v1158
      %v1216 = vunpack.c.h.b16 %v1156
      %v1217 = vunpack.c.h.b16 %v1157
      %v1218 = vunpack.c.h.b16 %v1158
      %v1219 = vunpack.c.l.b16 %v1159
      %v1220 = vunpack.c.l.b16 %v1160
      %v1221 = vunpack.c.l.b16 %v1161
      %v1222 = vunpack.c.h.b16 %v1159
      %v1223 = vunpack.c.h.b16 %v1160
      %v1224 = vunpack.c.h.b16 %v1161
      %v1225 = vunpack.c.l.b16 %v1162
      %v1226 = vunpack.c.l.b16 %v1163
      %v1227 = vunpack.c.l.b16 %v1164
      %v1228 = vunpack.c.h.b16 %v1162
      %v1229 = vunpack.c.h.b16 %v1163
      %v1230 = vunpack.c.h.b16 %v1164
      %v1231 = vunpack.c.l.b16 %v1165
      %v1232 = vunpack.c.l.b16 %v1166
      %v1233 = vunpack.c.l.b16 %v1167
      %v1234 = vunpack.c.h.b16 %v1165
      %v1235 = vunpack.c.h.b16 %v1166
      %v1236 = vunpack.c.h.b16 %v1167
      %v1237 = vunpack.c.l.b16 %v1168
      %v1238 = vunpack.c.l.b16 %v1169
      %v1239 = vunpack.c.l.b16 %v1170
      %v1240 = vpack.c.b16 %v1196, %v1195
      %v1241 = vpack.c.b16 %v1197, %v1197
      %v1242 = vpack.c.b16 %v1199, %v1198
      %v1243 = vpack.c.b16 %v1200, %v1200
      %v1244 = vpack.c.b16 %v1202, %v1201
      %v1245 = vpack.c.b16 %v1203, %v1203
      %v1246 = vpack.c.b16 %v1205, %v1204
      %v1247 = vpack.c.b16 %v1206, %v1206
      %v1248 = vpack.c.b16 %v1208, %v1207
      %v1249 = vpack.c.b16 %v1209, %v1209
      %v1250 = vpack.c.b16 %v1211, %v1210
      %v1251 = vpack.c.b16 %v1212, %v1212
      %v1252 = vpack.c.b16 %v1214, %v1213
      %v1253 = vpack.c.b16 %v1215, %v1215
      %v1254 = vpack.c.b16 %v1217, %v1216
      %v1255 = vpack.c.b16 %v1218, %v1218
      %v1256 = vpack.c.b16 %v1220, %v1219
      %v1257 = vpack.c.b16 %v1221, %v1221
      %v1258 = vpack.c.b16 %v1223, %v1222
      %v1259 = vpack.c.b16 %v1224, %v1224
      %v1260 = vpack.c.b16 %v1226, %v1225
      %v1261 = vpack.c.b16 %v1227, %v1227
      %v1262 = vpack.c.b16 %v1229, %v1228
      %v1263 = vpack.c.b16 %v1230, %v1230
      %v1264 = vpack.c.b16 %v1232, %v1231
      %v1265 = vpack.c.b16 %v1233, %v1233
      %v1266 = vpack.c.b16 %v1235, %v1234
      %v1267 = vpack.c.b16 %v1236, %v1236
      %v1268 = vpack.c.b16 %v1238, %v1237
      %v1269 = vpack.c.b16 %v1239, %v1239
      %1270 = vrot.lane.b32.xlu0 %v1240, 112
      %v1271 = vpop.permute.xlu0 %1270
      %1272 = vrot.lane.b32.xlu0 %v1241, 112
      %v1273 = vpop.permute.xlu0 %1272
      %1274 = vrot.lane.b32.xlu0 %v1242, 112
      %v1275 = vpop.permute.xlu0 %1274
      %1276 = vrot.lane.b32.xlu0 %v1243, 112
      %v1277 = vpop.permute.xlu0 %1276
      %1278 = vrot.lane.b32.xlu0 %v1244, 112
      %v1279 = vpop.permute.xlu0 %1278
      %1280 = vrot.lane.b32.xlu0 %v1245, 112
      %v1281 = vpop.permute.xlu0 %1280
      %1282 = vrot.lane.b32.xlu0 %v1246, 112
      %v1283 = vpop.permute.xlu0 %1282
      %1284 = vrot.lane.b32.xlu0 %v1247, 112
      %v1285 = vpop.permute.xlu0 %1284
      %1286 = vrot.lane.b32.xlu0 %v1248, 112
      %v1287 = vpop.permute.xlu0 %1286
      %1288 = vrot.lane.b32.xlu0 %v1249, 112
      %v1289 = vpop.permute.xlu0 %1288
      %1290 = vrot.lane.b32.xlu0 %v1250, 112
      %v1291 = vpop.permute.xlu0 %1290
      %1292 = vrot.lane.b32.xlu0 %v1251, 112
      %v1293 = vpop.permute.xlu0 %1292
      %1294 = vrot.lane.b32.xlu0 %v1252, 112
      %v1295 = vpop.permute.xlu0 %1294
      %1296 = vrot.lane.b32.xlu0 %v1253, 112
      %v1297 = vpop.permute.xlu0 %1296
      %1298 = vrot.lane.b32.xlu0 %v1254, 112
      %v1299 = vpop.permute.xlu0 %1298
      %1300 = vrot.lane.b32.xlu0 %v1255, 112
      %v1301 = vpop.permute.xlu0 %1300
      %1302 = vrot.lane.b32.xlu0 %v1256, 112
      %v1303 = vpop.permute.xlu0 %1302
      %1304 = vrot.lane.b32.xlu0 %v1257, 112
      %v1305 = vpop.permute.xlu0 %1304
      %1306 = vrot.lane.b32.xlu0 %v1258, 112
      %v1307 = vpop.permute.xlu0 %1306
      %1308 = vrot.lane.b32.xlu0 %v1259, 112
      %v1309 = vpop.permute.xlu0 %1308
      %1310 = vrot.lane.b32.xlu0 %v1260, 112
      %v1311 = vpop.permute.xlu0 %1310
      %1312 = vrot.lane.b32.xlu0 %v1261, 112
      %v1313 = vpop.permute.xlu0 %1312
      %1314 = vrot.lane.b32.xlu0 %v1262, 112
      %v1315 = vpop.permute.xlu0 %1314
      %1316 = vrot.lane.b32.xlu0 %v1263, 112
      %v1317 = vpop.permute.xlu0 %1316
      %1318 = vrot.lane.b32.xlu0 %v1264, 112
      %v1319 = vpop.permute.xlu0 %1318
      %1320 = vrot.lane.b32.xlu0 %v1265, 112
      %v1321 = vpop.permute.xlu0 %1320
      %1322 = vrot.lane.b32.xlu0 %v1266, 112
      %v1323 = vpop.permute.xlu0 %1322
      %1324 = vrot.lane.b32.xlu0 %v1267, 112
      %v1325 = vpop.permute.xlu0 %1324
      %1326 = vrot.lane.b32.xlu0 %v1268, 112
      %v1327 = vpop.permute.xlu0 %1326
      %1328 = vrot.lane.b32.xlu0 %v1269, 112
      %v1329 = vpop.permute.xlu0 %1328
      %v1330 = vrot.slane %v1271, 4
      %v1331 = vrot.slane %v1273, 4
      %v1332 = vrot.slane %v1275, 4
      %v1333 = vrot.slane %v1277, 4
      %v1334 = vrot.slane %v1279, 4
      %v1335 = vrot.slane %v1281, 4
      %v1336 = vrot.slane %v1283, 4
      %v1337 = vrot.slane %v1285, 4
      %v1338 = vrot.slane %v1287, 4
      %v1339 = vrot.slane %v1289, 4
      %v1340 = vrot.slane %v1291, 4
      %v1341 = vrot.slane %v1293, 4
      %v1342 = vrot.slane %v1295, 4
      %v1343 = vrot.slane %v1297, 4
      %v1344 = vrot.slane %v1299, 4
      %v1345 = vrot.slane %v1301, 4
      %v1346 = vrot.slane %v1303, 4
      %v1347 = vrot.slane %v1305, 4
      %v1348 = vrot.slane %v1307, 4
      %v1349 = vrot.slane %v1309, 4
      %v1350 = vrot.slane %v1311, 4
      %v1351 = vrot.slane %v1313, 4
      %v1352 = vrot.slane %v1315, 4
      %v1353 = vrot.slane %v1317, 4
      %v1354 = vrot.slane %v1319, 4
      %v1355 = vrot.slane %v1321, 4
      %v1356 = vrot.slane %v1323, 4
      %v1357 = vrot.slane %v1325, 4
      %v1358 = vrot.slane %v1327, 4
      %v1359 = vrot.slane %v1329, 4
      %v1360 = vsel %vm903, %v1330, %v1331
      %vm1361 = vcmask 916480
      %v1362 = vsel %vm1361, %v1271, %v1360
      %v1363 = vsel %vm903, %v1332, %v1333
      %v1364 = vsel %vm1361, %v1275, %v1363
      %v1365 = vsel %vm903, %v1334, %v1335
      %v1366 = vsel %vm1361, %v1279, %v1365
      %v1367 = vsel %vm903, %v1336, %v1337
      %v1368 = vsel %vm1361, %v1283, %v1367
      %v1369 = vsel %vm903, %v1338, %v1339
      %v1370 = vsel %vm1361, %v1287, %v1369
      %v1371 = vsel %vm903, %v1340, %v1341
      %v1372 = vsel %vm1361, %v1291, %v1371
      %v1373 = vsel %vm903, %v1342, %v1343
      %v1374 = vsel %vm1361, %v1295, %v1373
      %v1375 = vsel %vm903, %v1344, %v1345
      %v1376 = vsel %vm1361, %v1299, %v1375
      %v1377 = vsel %vm903, %v1346, %v1347
      %v1378 = vsel %vm1361, %v1303, %v1377
      %v1379 = vsel %vm903, %v1348, %v1349
      %v1380 = vsel %vm1361, %v1307, %v1379
      %v1381 = vsel %vm903, %v1350, %v1351
      %v1382 = vsel %vm1361, %v1311, %v1381
      %v1383 = vsel %vm903, %v1352, %v1353
      %v1384 = vsel %vm1361, %v1315, %v1383
      %v1385 = vsel %vm903, %v1354, %v1355
      %v1386 = vsel %vm1361, %v1319, %v1385
      %v1387 = vsel %vm903, %v1356, %v1357
      %v1388 = vsel %vm1361, %v1323, %v1387
      %v1389 = vsel %vm903, %v1358, %v1359
      %v1390 = vsel %vm1361, %v1327, %v1389
      %1406 = vst [vmem:[#allocation3 + $0xf0] sm:$0xff] %v1362
      %1407 = vst [vmem:[#allocation3 + $0xf8] sm:$0xff] %v1364
      %1408 = vst [vmem:[#allocation3 + $0x100] sm:$0xff] %v1366
      %1409 = vst [vmem:[#allocation3 + $0x108] sm:$0xff] %v1368
      %1410 = vst [vmem:[#allocation3 + $0x110] sm:$0xff] %v1370
      %1411 = vst [vmem:[#allocation3 + $0x118] sm:$0xff] %v1372
      %1412 = vst [vmem:[#allocation3 + $0x120] sm:$0xff] %v1374
      %1413 = vst [vmem:[#allocation3 + $0x128] sm:$0xff] %v1376
      %1414 = vst [vmem:[#allocation3 + $0x130] sm:$0xff] %v1378
      %1415 = vst [vmem:[#allocation3 + $0x138] sm:$0xff] %v1380
      %1416 = vst [vmem:[#allocation3 + $0x140] sm:$0xff] %v1382
      %1417 = vst [vmem:[#allocation3 + $0x148] sm:$0xff] %v1384
      %1418 = vst [vmem:[#allocation3 + $0x150] sm:$0xff] %v1386
      %1419 = vst [vmem:[#allocation3 + $0x158] sm:$0xff] %v1388
      %1420 = vst [vmem:[#allocation3 + $0x160] sm:$0xff] %v1390
      %v1421 = vld [vmem:[%s1] sm:$0xff]
      %v1422 = vld [vmem:[%s1 + $0x8] sm:$0xf]
      %v1423 = vld [vmem:[#allocation3] sm:$0xff]
      %v1424 = vld [vmem:[#allocation3 + $0x8] sm:$0xff]
      %v1425 = vld [vmem:[#allocation3 + $0x10] sm:$0xff]
      %v1426 = vld [vmem:[#allocation3 + $0x18] sm:$0xff]
      %v1427 = vld [vmem:[#allocation3 + $0x20] sm:$0xff]
      %v1428 = vld [vmem:[#allocation3 + $0x28] sm:$0xff]
      %v1429 = vld [vmem:[#allocation3 + $0x30] sm:$0xff]
      %v1430 = vld [vmem:[#allocation3 + $0x38] sm:$0xff]
      %v1431 = vld [vmem:[#allocation3 + $0x40] sm:$0xff]
      %v1432 = vld [vmem:[#allocation3 + $0x48] sm:$0xff]
      %v1433 = vld [vmem:[#allocation3 + $0x50] sm:$0xff]
      %v1434 = vld [vmem:[#allocation3 + $0x58] sm:$0xff]
      %v1435 = vld [vmem:[#allocation3 + $0x60] sm:$0xff]
      %v1436 = vld [vmem:[#allocation3 + $0x68] sm:$0xff]
      %v1437 = vld [vmem:[#allocation3 + $0x70] sm:$0xff]
      %v1438 = vld [vmem:[#allocation3 + $0x78] sm:$0xff]
      %v1439 = vld [vmem:[#allocation3 + $0x80] sm:$0xff]
      %v1440 = vld [vmem:[#allocation3 + $0x88] sm:$0xff]
      %v1441 = vld [vmem:[#allocation3 + $0x90] sm:$0xff]
      %v1442 = vld [vmem:[#allocation3 + $0x98] sm:$0xff]
      %v1443 = vld [vmem:[#allocation3 + $0xa0] sm:$0xff]
      %v1444 = vld [vmem:[#allocation3 + $0xa8] sm:$0xff]
      %v1445 = vld [vmem:[#allocation3 + $0xb0] sm:$0xff]
      %v1446 = vld [vmem:[#allocation3 + $0xb8] sm:$0xff]
      %v1447 = vld [vmem:[#allocation3 + $0xc0] sm:$0xff]
      %v1448 = vld [vmem:[#allocation3 + $0xc8] sm:$0xff]
      %v1449 = vld [vmem:[#allocation3 + $0xd0] sm:$0xff]
      %v1450 = vld [vmem:[#allocation3 + $0xd8] sm:$0xff]
      %v1451 = vld [vmem:[#allocation3 + $0xe0] sm:$0xff]
      %v1452 = vld [vmem:[#allocation3 + $0xe8] sm:$0xff]
      %v1453 = vld [vmem:[#allocation3 + $0xf0] sm:$0xff]
      %v1454 = vld [vmem:[#allocation3 + $0xf8] sm:$0xff]
      %v1455 = vld [vmem:[#allocation3 + $0x100] sm:$0xff]
      %v1456 = vld [vmem:[#allocation3 + $0x108] sm:$0xff]
      %v1457 = vld [vmem:[#allocation3 + $0x110] sm:$0xff]
      %v1458 = vld [vmem:[#allocation3 + $0x118] sm:$0xff]
      %v1459 = vld [vmem:[#allocation3 + $0x120] sm:$0xff]
      %v1460 = vld [vmem:[#allocation3 + $0x128] sm:$0xff]
      %v1461 = vld [vmem:[#allocation3 + $0x130] sm:$0xff]
      %v1462 = vld [vmem:[#allocation3 + $0x138] sm:$0xff]
      %v1463 = vld [vmem:[#allocation3 + $0x140] sm:$0xff]
      %v1464 = vld [vmem:[#allocation3 + $0x148] sm:$0xff]
      %v1465 = vld [vmem:[#allocation3 + $0x150] sm:$0xff]
      %v1466 = vld [vmem:[#allocation3 + $0x158] sm:$0xff]
      %v1467 = vld [vmem:[#allocation3 + $0x160] sm:$0xff]
      %v1468 = vld [vmem:[%s2] sm:$0xff]
      %1470 = vset.pattern.permute.xlu0 0
      %1471 = vperm.xlu0 %1470, %v1468
      %v1472 = vpop.permute.xlu0 %1471
      %v1476 = vunpack.c.l.b16 %v1421
      %v1477 = vunpack.c.h.b16 %v1421
      %v1478 = vunpack.c.l.b16 %v1422
      %v1479 = vpack.c.b16 %v1476, %v1476
      %v1480 = vpack.c.b16 %v1477, %v1477
      %v1481 = vpack.c.b16 %v1478, %v1478
      %v1529 = vunpack.c.l.b16 %v1423
      %v1530 = vunpack.c.h.b16 %v1423
      %v1531 = vunpack.c.l.b16 %v1424
      %v1532 = vunpack.c.h.b16 %v1424
      %v1533 = vunpack.c.l.b16 %v1425
      %v1534 = vunpack.c.h.b16 %v1425
      %v1535 = vunpack.c.l.b16 %v1426
      %v1536 = vunpack.c.h.b16 %v1426
      %v1537 = vunpack.c.l.b16 %v1427
      %v1538 = vunpack.c.h.b16 %v1427
      %v1539 = vunpack.c.l.b16 %v1428
      %v1540 = vunpack.c.h.b16 %v1428
      %v1541 = vunpack.c.l.b16 %v1429
      %v1542 = vunpack.c.h.b16 %v1429
      %v1543 = vunpack.c.l.b16 %v1430
      %v1544 = vunpack.c.h.b16 %v1430
      %v1545 = vunpack.c.l.b16 %v1431
      %v1546 = vunpack.c.h.b16 %v1431
      %v1547 = vunpack.c.l.b16 %v1432
      %v1548 = vunpack.c.h.b16 %v1432
      %v1549 = vunpack.c.l.b16 %v1433
      %v1550 = vunpack.c.h.b16 %v1433
      %v1551 = vunpack.c.l.b16 %v1434
      %v1552 = vunpack.c.h.b16 %v1434
      %v1553 = vunpack.c.l.b16 %v1435
      %v1554 = vunpack.c.h.b16 %v1435
      %v1555 = vunpack.c.l.b16 %v1436
      %v1556 = vunpack.c.h.b16 %v1436
      %v1557 = vunpack.c.l.b16 %v1437
      %v1558 = vunpack.c.h.b16 %v1437
      %v1559 = vunpack.c.l.b16 %v1438
      %v1560 = vunpack.c.h.b16 %v1438
      %v1561 = vunpack.c.l.b16 %v1439
      %v1562 = vunpack.c.h.b16 %v1439
      %v1563 = vunpack.c.l.b16 %v1440
      %v1564 = vunpack.c.h.b16 %v1440
      %v1565 = vunpack.c.l.b16 %v1441
      %v1566 = vunpack.c.h.b16 %v1441
      %v1567 = vunpack.c.l.b16 %v1442
      %v1568 = vunpack.c.h.b16 %v1442
      %v1569 = vunpack.c.l.b16 %v1443
      %v1570 = vunpack.c.h.b16 %v1443
      %v1571 = vunpack.c.l.b16 %v1444
      %v1572 = vunpack.c.h.b16 %v1444
      %v1573 = vunpack.c.l.b16 %v1445
      %v1574 = vunpack.c.h.b16 %v1445
      %v1575 = vunpack.c.l.b16 %v1446
      %v1576 = vunpack.c.h.b16 %v1446
      %v1577 = vunpack.c.l.b16 %v1447
      %v1578 = vunpack.c.h.b16 %v1447
      %v1579 = vunpack.c.l.b16 %v1448
      %v1580 = vunpack.c.h.b16 %v1448
      %v1581 = vunpack.c.l.b16 %v1449
      %v1582 = vunpack.c.h.b16 %v1449
      %v1583 = vunpack.c.l.b16 %v1450
      %v1584 = vunpack.c.h.b16 %v1450
      %v1585 = vunpack.c.l.b16 %v1451
      %v1586 = vunpack.c.h.b16 %v1451
      %v1587 = vunpack.c.l.b16 %v1452
      %v1588 = vunpack.c.h.b16 %v1452
      %v1589 = vunpack.c.l.b16 %v1453
      %v1590 = vunpack.c.h.b16 %v1453
      %v1591 = vunpack.c.l.b16 %v1454
      %v1592 = vunpack.c.h.b16 %v1454
      %v1593 = vunpack.c.l.b16 %v1455
      %v1594 = vunpack.c.h.b16 %v1455
      %v1595 = vunpack.c.l.b16 %v1456
      %v1596 = vunpack.c.h.b16 %v1456
      %v1597 = vunpack.c.l.b16 %v1457
      %v1598 = vunpack.c.h.b16 %v1457
      %v1599 = vunpack.c.l.b16 %v1458
      %v1600 = vunpack.c.h.b16 %v1458
      %v1601 = vunpack.c.l.b16 %v1459
      %v1602 = vunpack.c.h.b16 %v1459
      %v1603 = vunpack.c.l.b16 %v1460
      %v1604 = vunpack.c.h.b16 %v1460
      %v1605 = vunpack.c.l.b16 %v1461
      %v1606 = vunpack.c.h.b16 %v1461
      %v1607 = vunpack.c.l.b16 %v1462
      %v1608 = vunpack.c.h.b16 %v1462
      %v1609 = vunpack.c.l.b16 %v1463
      %v1610 = vunpack.c.h.b16 %v1463
      %v1611 = vunpack.c.l.b16 %v1464
      %v1612 = vunpack.c.h.b16 %v1464
      %v1613 = vunpack.c.l.b16 %v1465
      %v1614 = vunpack.c.h.b16 %v1465
      %v1615 = vunpack.c.l.b16 %v1466
      %v1616 = vunpack.c.h.b16 %v1466
      %v1617 = vunpack.c.l.b16 %v1467
      %v1618 = vunpack.c.h.b16 %v1467
      %v1619 = vpack.c.b16 %v1531, %v1529
      %v1620 = vpack.c.b16 %v1532, %v1530
      %v1621 = vpack.c.b16 %v1535, %v1533
      %v1622 = vpack.c.b16 %v1536, %v1534
      %v1623 = vpack.c.b16 %v1539, %v1537
      %v1624 = vpack.c.b16 %v1540, %v1538
      %v1625 = vpack.c.b16 %v1543, %v1541
      %v1626 = vpack.c.b16 %v1544, %v1542
      %v1627 = vpack.c.b16 %v1547, %v1545
      %v1628 = vpack.c.b16 %v1548, %v1546
      %v1629 = vpack.c.b16 %v1551, %v1549
      %v1630 = vpack.c.b16 %v1552, %v1550
      %v1631 = vpack.c.b16 %v1555, %v1553
      %v1632 = vpack.c.b16 %v1556, %v1554
      %v1633 = vpack.c.b16 %v1559, %v1557
      %v1634 = vpack.c.b16 %v1560, %v1558
      %v1635 = vpack.c.b16 %v1563, %v1561
      %v1636 = vpack.c.b16 %v1564, %v1562
      %v1637 = vpack.c.b16 %v1567, %v1565
      %v1638 = vpack.c.b16 %v1568, %v1566
      %v1639 = vpack.c.b16 %v1571, %v1569
      %v1640 = vpack.c.b16 %v1572, %v1570
      %v1641 = vpack.c.b16 %v1575, %v1573
      %v1642 = vpack.c.b16 %v1576, %v1574
      %v1643 = vpack.c.b16 %v1579, %v1577
      %v1644 = vpack.c.b16 %v1580, %v1578
      %v1645 = vpack.c.b16 %v1583, %v1581
      %v1646 = vpack.c.b16 %v1584, %v1582
      %v1647 = vpack.c.b16 %v1587, %v1585
      %v1648 = vpack.c.b16 %v1588, %v1586
      %v1649 = vpack.c.b16 %v1591, %v1589
      %v1650 = vpack.c.b16 %v1592, %v1590
      %v1651 = vpack.c.b16 %v1595, %v1593
      %v1652 = vpack.c.b16 %v1596, %v1594
      %v1653 = vpack.c.b16 %v1599, %v1597
      %v1654 = vpack.c.b16 %v1600, %v1598
      %v1655 = vpack.c.b16 %v1603, %v1601
      %v1656 = vpack.c.b16 %v1604, %v1602
      %v1657 = vpack.c.b16 %v1607, %v1605
      %v1658 = vpack.c.b16 %v1608, %v1606
      %v1659 = vpack.c.b16 %v1611, %v1609
      %v1660 = vpack.c.b16 %v1612, %v1610
      %v1661 = vpack.c.b16 %v1615, %v1613
      %v1662 = vpack.c.b16 %v1616, %v1614
      %v1663 = vpack.c.b16 %v1617, %v1617
      %v1664 = vpack.c.b16 %v1618, %v1618
      %vm1709 = vcmask 850944
      %v1711 = vsel %vm1709, %v1481, 0
      %vm1713 = vcmask 1043456
      %v1715 = vsel %vm1713, %v1663, 0
      %v1718 = vsel %vm1713, %v1664, 0
      %1720 = vmatprep.subr.bf16.mxu0 %v1620
      %1721 = vmatpush1.bf16.msra.mxu0 %v1619
      %1722 = vmatprep.subr.bf16.mxu0 %v1622
      %1723 = vmatpush1.bf16.msra.mxu0 %v1621
      %1724 = vmatprep.subr.bf16.mxu0 %v1624
      %1725 = vmatpush1.bf16.msra.mxu0 %v1623
      %1726 = vmatprep.subr.bf16.mxu0 %v1626
      %1727 = vmatpush1.bf16.msra.mxu0 %v1625
      %1728 = vmatprep.subr.bf16.mxu0 %v1628
      %1729 = vmatpush1.bf16.msra.mxu0 %v1627
      %1730 = vmatprep.subr.bf16.mxu0 %v1630
      %1731 = vmatpush1.bf16.msra.mxu0 %v1629
      %1732 = vmatprep.subr.bf16.mxu0 %v1632
      %1733 = vmatpush1.bf16.msra.mxu0 %v1631
      %1734 = vmatprep.subr.bf16.mxu0 %v1634
      %1735 = vmatpush1.bf16.msra.mxu0 %v1633
      %1736 = vmatprep.subr.bf16.mxu0 %v1636
      %1737 = vmatpush1.bf16.msra.mxu0 %v1635
      %1738 = vmatprep.subr.bf16.mxu0 %v1638
      %1739 = vmatpush1.bf16.msra.mxu0 %v1637
      %1740 = vmatprep.subr.bf16.mxu0 %v1640
      %1741 = vmatpush1.bf16.msra.mxu0 %v1639
      %1742 = vmatprep.subr.bf16.mxu0 %v1642
      %1743 = vmatpush1.bf16.msra.mxu0 %v1641
      %1744 = vmatprep.subr.bf16.mxu0 %v1644
      %1745 = vmatpush1.bf16.msra.mxu0 %v1643
      %1746 = vmatprep.subr.bf16.mxu0 %v1646
      %1747 = vmatpush1.bf16.msra.mxu0 %v1645
      %1748 = vmatprep.subr.bf16.mxu0 %v1648
      %1749 = vmatpush1.bf16.msra.mxu0 %v1647
      %1750 = vmatprep.subr.bf16.mxu0 %v1650
      %1751 = vmatpush1.bf16.msra.mxu0 %v1649
      %1752 = vmatprep.mubr.bf16.mxu0 %v1480
      %1753 = vmatmul.mubr.bf16.gmra.mrb[0].mxu0 %v1479
      %v1754 = vpop.f32.mrb[0].mxu0
      %v1755 = vadd.f32 %v1472, %v1754
      %v1756 = vpop.f32.mrb[0].mxu0
      %v1757 = vadd.f32 %v1472, %v1756
      %v1758 = vpop.f32.mrb[0].mxu0
      %v1759 = vpop.f32.mrb[0].mxu0
      %1760 = vdwg.mxu0
      %1761 = vmatprep.subr.bf16.mxu0 %v1652
      %1762 = vmatpush1.bf16.msra.mxu0 %v1651
      %1763 = vmatprep.subr.bf16.mxu0 %v1654
      %1764 = vmatpush1.bf16.msra.mxu0 %v1653
      %1765 = vmatprep.subr.bf16.mxu0 %v1656
      %1766 = vmatpush1.bf16.msra.mxu0 %v1655
      %1767 = vmatprep.subr.bf16.mxu0 %v1658
      %1768 = vmatpush1.bf16.msra.mxu0 %v1657
      %1769 = vmatprep.subr.bf16.mxu0 %v1660
      %1770 = vmatpush1.bf16.msra.mxu0 %v1659
      %1771 = vmatprep.subr.bf16.mxu0 %v1662
      %1772 = vmatpush1.bf16.msra.mxu0 %v1661
      %1773 = vmatprep.subr.bf16.mxu0 %v1718
      %1774 = vmatpush1.bf16.msra.mxu0 %v1715
      %1775 = vmatprep.subr.bf16.mxu0 0
      %1776 = vmatpush1.bf16.msra.mxu0 0
      %1777 = vmatprep.subr.bf16.mxu0 0
      %1778 = vmatpush1.bf16.msra.mxu0 0
      %1779 = vmatprep.subr.bf16.mxu0 0
      %1780 = vmatpush1.bf16.msra.mxu0 0
      %1781 = vmatprep.subr.bf16.mxu0 0
      %1782 = vmatpush1.bf16.msra.mxu0 0
      %1783 = vmatprep.subr.bf16.mxu0 0
      %1784 = vmatpush1.bf16.msra.mxu0 0
      %1785 = vmatprep.subr.bf16.mxu0 0
      %1786 = vmatpush1.bf16.msra.mxu0 0
      %1787 = vmatprep.subr.bf16.mxu0 0
      %1788 = vmatpush1.bf16.msra.mxu0 0
      %1789 = vmatprep.subr.bf16.mxu0 0
      %1790 = vmatpush1.bf16.msra.mxu0 0
      %1791 = vmatprep.subr.bf16.mxu0 0
      %1792 = vmatpush1.bf16.msra.mxu0 0
      %1793 = vmatprep.mubr.bf16.mxu0 0
      %1794 = vmatmul.mubr.bf16.gmra.mrb[0].mxu0 %v1711
      %v1795 = vpop.f32.mrb[0].mxu0
      %v1796 = vadd.f32 %v1755, %v1795
      %v1797 = vpop.f32.mrb[0].mxu0
      %v1798 = vadd.f32 %v1757, %v1797
      %v1799 = vpop.f32.mrb[0].mxu0
      %v1800 = vpop.f32.mrb[0].mxu0
      %1801 = vdwg.mxu0
      %v1802 = vmul.f32 %v1796, 0.2
      %v1803 = vmul.f32 %v1798, 0.2
      %v1804 = vmax.f32 %v1796, %v1802
      %v1805 = vmax.f32 %v1798, %v1803
      %1806 = vst [vmem:[#allocation2 + $0x28] sm:$0xff] %v1804
      %1807 = vst [vmem:[#allocation2 + $0x30] sm:$0xff] %v1805
      %v1808 = vld [vmem:[#allocation2 + $0x20] sm:$0xff]
      %v1809 = vld [vmem:[#allocation2 + $0x28] sm:$0xff]
      %v1810 = vld [vmem:[#allocation2 + $0x30] sm:$0xff]
      %v1811 = vmul.f32 %v1808, %v441
      %v1812 = vmul.f32 %v1809, %v445
      %v1813 = vmul.f32 %v1810, %v443
      %v1814 = vld [vmem:[#allocation2 + $0x38] sm:$0xff]
      %v1815 = vmul.f32 %v1809, %v472
      %v1816 = vmul.f32 %v1810, %v476
      %v1817 = vmul.f32 %v1814, %v474
      %1821 = vrot.lane.b32.xlu0 %v1811, 1
      %v1822 = vpop.permute.xlu0 %1821
      %1823 = vrot.lane.b32.xlu0 %v1812, 1
      %v1824 = vpop.permute.xlu0 %1823
      %1825 = vrot.lane.b32.xlu0 %v1813, 1
      %v1826 = vpop.permute.xlu0 %1825
      %v1827 = vsel %vm475, %v1822, %v1824
      %v1828 = vsel %vm475, %v1824, %v1826
      %1831 = vst [vmem:[#allocation2 + $0x8] sm:$0xff] %v1827
      %1832 = vst [vmem:[#allocation2 + $0x10] sm:$0xff] %v1828
      %1836 = vrot.lane.b32.xlu0 %v1815, 127
      %v1837 = vpop.permute.xlu0 %1836
      %1838 = vrot.lane.b32.xlu0 %v1816, 127
      %v1839 = vpop.permute.xlu0 %1838
      %1840 = vrot.lane.b32.xlu0 %v1817, 127
      %v1841 = vpop.permute.xlu0 %1840
      %v1842 = vsel %vm444, %v1837, %v1839
      %v1843 = vsel %vm444, %v1839, %v1841
      %1846 = vst [vmem:[#allocation2 + $0x48] sm:$0xff] %v1842
      %1847 = vst [vmem:[#allocation2 + $0x50] sm:$0xff] %v1843
      %v1848 = vld [vmem:[#allocation2] sm:$0xff]
      %v1849 = vld [vmem:[#allocation2 + $0x8] sm:$0xff]
      %v1850 = vld [vmem:[#allocation2 + $0x10] sm:$0xff]
      %v1851 = vld [vmem:[#allocation2 + $0x20] sm:$0xff]
      %v1852 = vld [vmem:[#allocation2 + $0x28] sm:$0xff]
      %v1853 = vld [vmem:[#allocation2 + $0x30] sm:$0xff]
      %v1854 = vld [vmem:[#allocation2 + $0x40] sm:$0xff]
      %v1855 = vld [vmem:[#allocation2 + $0x48] sm:$0xff]
      %v1856 = vld [vmem:[#allocation2 + $0x50] sm:$0xff]
      %v1857 = vpack.c.bf16 %v1851, %v1848
      %v1858 = vpack.c.bf16 %v1852, %v1849
      %v1859 = vpack.c.bf16 %v1853, %v1850
      %v1860 = vpack.c.bf16 %v1854, %v1854
      %v1861 = vpack.c.bf16 %v1855, %v1855
      %v1862 = vpack.c.bf16 %v1856, %v1856
      %v1869 = vunpack.c.l.b16 %v1857
      %v1870 = vunpack.c.l.b16 %v1858
      %v1871 = vunpack.c.l.b16 %v1859
      %v1872 = vunpack.c.h.b16 %v1857
      %v1873 = vunpack.c.h.b16 %v1858
      %v1874 = vunpack.c.h.b16 %v1859
      %v1875 = vunpack.c.l.b16 %v1860
      %v1876 = vunpack.c.l.b16 %v1861
      %v1877 = vunpack.c.l.b16 %v1862
      %v1878 = vpack.c.b16 %v1870, %v1869
      %v1879 = vpack.c.b16 %v1871, %v1871
      %v1880 = vpack.c.b16 %v1873, %v1872
      %v1881 = vpack.c.b16 %v1874, %v1874
      %v1882 = vpack.c.b16 %v1876, %v1875
      %v1883 = vpack.c.b16 %v1877, %v1877
      %1884 = vrot.lane.b32.xlu0 %v1878, 16
      %v1885 = vpop.permute.xlu0 %1884
      %1886 = vrot.lane.b32.xlu0 %v1879, 16
      %v1887 = vpop.permute.xlu0 %1886
      %1888 = vrot.lane.b32.xlu0 %v1880, 16
      %v1889 = vpop.permute.xlu0 %1888
      %1890 = vrot.lane.b32.xlu0 %v1881, 16
      %v1891 = vpop.permute.xlu0 %1890
      %1892 = vrot.lane.b32.xlu0 %v1882, 16
      %v1893 = vpop.permute.xlu0 %1892
      %1894 = vrot.lane.b32.xlu0 %v1883, 16
      %v1895 = vpop.permute.xlu0 %1894
      %v1896 = vrot.slane %v1885, 4
      %v1897 = vrot.slane %v1887, 4
      %v1898 = vrot.slane %v1889, 4
      %v1899 = vrot.slane %v1891, 4
      %v1900 = vrot.slane %v1893, 4
      %v1901 = vrot.slane %v1895, 4
      %v1902 = vsel %vm903, %v1896, %v1897
      %v1903 = vsel %vm905, %v1885, %v1902
      %v1904 = vsel %vm903, %v1898, %v1899
      %v1905 = vsel %vm905, %v1889, %v1904
      %v1906 = vsel %vm903, %v1900, %v1901
      %v1907 = vsel %vm905, %v1893, %v1906
      %1911 = vst [vmem:[#allocation3] sm:$0xff] %v1903
      %1912 = vst [vmem:[#allocation3 + $0x8] sm:$0xff] %v1905
      %1913 = vst [vmem:[#allocation3 + $0x10] sm:$0xff] %v1907
      %v1914 = vld [vmem:[#allocation2 + $0x8] sm:$0xff]
      %v1915 = vld [vmem:[#allocation2 + $0x10] sm:$0xff]
      %v1916 = vld [vmem:[#allocation2 + $0x28] sm:$0xff]
      %v1917 = vld [vmem:[#allocation2 + $0x30] sm:$0xff]
      %v1918 = vld [vmem:[#allocation2 + $0x48] sm:$0xff]
      %v1919 = vld [vmem:[#allocation2 + $0x50] sm:$0xff]
      %v1920 = vpack.c.bf16 %v1916, %v1914
      %v1921 = vpack.c.bf16 %v1917, %v1915
      %v1922 = vpack.c.bf16 %v1918, %v1918
      %v1923 = vpack.c.bf16 %v1919, %v1919
      %v1928 = vunpack.c.l.b16 %v1920
      %v1929 = vunpack.c.l.b16 %v1921
      %v1930 = vunpack.c.h.b16 %v1920
      %v1931 = vunpack.c.h.b16 %v1921
      %v1932 = vunpack.c.l.b16 %v1922
      %v1933 = vunpack.c.l.b16 %v1923
      %v1934 = vpack.c.b16 %v1929, %v1928
      %v1935 = vpack.c.b16 %v1931, %v1930
      %v1936 = vpack.c.b16 %v1933, %v1932
      %1940 = vst [vmem:[#allocation3 + $0x18] sm:$0xff] %v1934
      %1941 = vst [vmem:[#allocation3 + $0x20] sm:$0xff] %v1935
      %1942 = vst [vmem:[#allocation3 + $0x28] sm:$0xff] %v1936
      %v1943 = vld [vmem:[#allocation2 + $0x8] sm:$0xff]
      %v1944 = vld [vmem:[#allocation2 + $0x10] sm:$0xff]
      %v1945 = vld [vmem:[#allocation2 + $0x18] sm:$0xff]
      %v1946 = vld [vmem:[#allocation2 + $0x28] sm:$0xff]
      %v1947 = vld [vmem:[#allocation2 + $0x30] sm:$0xff]
      %v1948 = vld [vmem:[#allocation2 + $0x38] sm:$0xff]
      %v1949 = vld [vmem:[#allocation2 + $0x48] sm:$0xff]
      %v1950 = vld [vmem:[#allocation2 + $0x50] sm:$0xff]
      %v1951 = vld [vmem:[#allocation2 + $0x58] sm:$0xff]
      %v1952 = vpack.c.bf16 %v1946, %v1943
      %v1953 = vpack.c.bf16 %v1947, %v1944
      %v1954 = vpack.c.bf16 %v1948, %v1945
      %v1955 = vpack.c.bf16 %v1949, %v1949
      %v1956 = vpack.c.bf16 %v1950, %v1950
      %v1957 = vpack.c.bf16 %v1951, %v1951
      %v1964 = vunpack.c.l.b16 %v1952
      %v1965 = vunpack.c.l.b16 %v1953
      %v1966 = vunpack.c.l.b16 %v1954
      %v1967 = vunpack.c.h.b16 %v1952
      %v1968 = vunpack.c.h.b16 %v1953
      %v1969 = vunpack.c.h.b16 %v1954
      %v1970 = vunpack.c.l.b16 %v1955
      %v1971 = vunpack.c.l.b16 %v1956
      %v1972 = vunpack.c.l.b16 %v1957
      %v1973 = vpack.c.b16 %v1965, %v1964
      %v1974 = vpack.c.b16 %v1966, %v1966
      %v1975 = vpack.c.b16 %v1968, %v1967
      %v1976 = vpack.c.b16 %v1969, %v1969
      %v1977 = vpack.c.b16 %v1971, %v1970
      %v1978 = vpack.c.b16 %v1972, %v1972
      %1979 = vrot.lane.b32.xlu0 %v1973, 112
      %v1980 = vpop.permute.xlu0 %1979
      %1981 = vrot.lane.b32.xlu0 %v1974, 112
      %v1982 = vpop.permute.xlu0 %1981
      %1983 = vrot.lane.b32.xlu0 %v1975, 112
      %v1984 = vpop.permute.xlu0 %1983
      %1985 = vrot.lane.b32.xlu0 %v1976, 112
      %v1986 = vpop.permute.xlu0 %1985
      %1987 = vrot.lane.b32.xlu0 %v1977, 112
      %v1988 = vpop.permute.xlu0 %1987
      %1989 = vrot.lane.b32.xlu0 %v1978, 112
      %v1990 = vpop.permute.xlu0 %1989
      %v1991 = vrot.slane %v1980, 4
      %v1992 = vrot.slane %v1982, 4
      %v1993 = vrot.slane %v1984, 4
      %v1994 = vrot.slane %v1986, 4
      %v1995 = vrot.slane %v1988, 4
      %v1996 = vrot.slane %v1990, 4
      %v1997 = vsel %vm903, %v1991, %v1992
      %v1998 = vsel %vm1361, %v1980, %v1997
      %v1999 = vsel %vm903, %v1993, %v1994
      %v2000 = vsel %vm1361, %v1984, %v1999
      %v2001 = vsel %vm903, %v1995, %v1996
      %v2002 = vsel %vm1361, %v1988, %v2001
      %2006 = vst [vmem:[#allocation3 + $0x30] sm:$0xff] %v1998
      %2007 = vst [vmem:[#allocation3 + $0x38] sm:$0xff] %v2000
      %2008 = vst [vmem:[#allocation3 + $0x40] sm:$0xff] %v2002
      %v2009 = vld [vmem:[%s3] sm:$0xf]
      %v2010 = vld [vmem:[%s3 + $0x4] sm:$0xf]
      %v2011 = vld [vmem:[#allocation3] sm:$0xff]
      %v2012 = vld [vmem:[#allocation3 + $0x8] sm:$0xff]
      %v2013 = vld [vmem:[#allocation3 + $0x10] sm:$0xff]
      %v2014 = vld [vmem:[#allocation3 + $0x18] sm:$0xff]
      %v2015 = vld [vmem:[#allocation3 + $0x20] sm:$0xff]
      %v2016 = vld [vmem:[#allocation3 + $0x28] sm:$0xff]
      %v2017 = vld [vmem:[#allocation3 + $0x30] sm:$0xff]
      %v2018 = vld [vmem:[#allocation3 + $0x38] sm:$0xff]
      %v2019 = vld [vmem:[#allocation3 + $0x40] sm:$0xff]
      %v2020 = vld [vmem:[%s4] sm:$0xff]
      %v2021 = vld [vmem:[%s4 + $0x8] sm:$0xff]
      %2023 = vset.pattern.permute.xlu0 0
      %2024 = vperm.xlu0 %2023, %v2020
      %v2025 = vpop.permute.xlu0 %2024
      %2028 = vset.pattern.permute.xlu0 0
      %2029 = vperm.xlu0 %2028, %v2021
      %v2030 = vpop.permute.xlu0 %2029
      %v2034 = vunpack.c.l.b16 %v2009
      %v2035 = vunpack.c.l.b16 %v2010
      %v2036 = vpack.c.b16 %v2035, %v2034
      %v2046 = vunpack.c.l.b16 %v2011
      %v2047 = vunpack.c.h.b16 %v2011
      %v2048 = vunpack.c.l.b16 %v2012
      %v2049 = vunpack.c.h.b16 %v2012
      %v2050 = vunpack.c.l.b16 %v2013
      %v2051 = vunpack.c.h.b16 %v2013
      %v2052 = vunpack.c.l.b16 %v2014
      %v2053 = vunpack.c.h.b16 %v2014
      %v2054 = vunpack.c.l.b16 %v2015
      %v2055 = vunpack.c.h.b16 %v2015
      %v2056 = vunpack.c.l.b16 %v2016
      %v2057 = vunpack.c.h.b16 %v2016
      %v2058 = vunpack.c.l.b16 %v2017
      %v2059 = vunpack.c.h.b16 %v2017
      %v2060 = vunpack.c.l.b16 %v2018
      %v2061 = vunpack.c.h.b16 %v2018
      %v2062 = vunpack.c.l.b16 %v2019
      %v2063 = vunpack.c.h.b16 %v2019
      %v2064 = vpack.c.b16 %v2048, %v2046
      %v2065 = vpack.c.b16 %v2049, %v2047
      %v2066 = vpack.c.b16 %v2052, %v2050
      %v2067 = vpack.c.b16 %v2053, %v2051
      %v2068 = vpack.c.b16 %v2056, %v2054
      %v2069 = vpack.c.b16 %v2057, %v2055
      %v2070 = vpack.c.b16 %v2060, %v2058
      %v2071 = vpack.c.b16 %v2061, %v2059
      %v2072 = vpack.c.b16 %v2062, %v2062
      %v2073 = vpack.c.b16 %v2063, %v2063
      %vm2082 = vcmask 588800
      %v2084 = vsel %vm2082, %v2036, 0
      %v2087 = vsel %vm1713, %v2072, 0
      %v2090 = vsel %vm1713, %v2073, 0
      %2092 = vmatprep.subr.bf16.mxu0 %v2065
      %2093 = vmatpush1.bf16.msra.mxu0 %v2064
      %2094 = vmatprep.subr.bf16.mxu0 %v2067
      %2095 = vmatpush1.bf16.msra.mxu0 %v2066
      %2096 = vmatprep.subr.bf16.mxu0 %v2069
      %2097 = vmatpush1.bf16.msra.mxu0 %v2068
      %2098 = vmatprep.subr.bf16.mxu0 %v2071
      %2099 = vmatpush1.bf16.msra.mxu0 %v2070
      %2100 = vmatprep.subr.bf16.mxu0 %v2090
      %2101 = vmatpush1.bf16.msra.mxu0 %v2087
      %2102 = vmatprep.subr.bf16.mxu0 0
      %2103 = vmatpush1.bf16.msra.mxu0 0
      %2104 = vmatprep.subr.bf16.mxu0 0
      %2105 = vmatpush1.bf16.msra.mxu0 0
      %2106 = vmatprep.subr.bf16.mxu0 0
      %2107 = vmatpush1.bf16.msra.mxu0 0
      %2108 = vmatprep.subr.bf16.mxu0 0
      %2109 = vmatpush1.bf16.msra.mxu0 0
      %2110 = vmatprep.subr.bf16.mxu0 0
      %2111 = vmatpush1.bf16.msra.mxu0 0
      %2112 = vmatprep.subr.bf16.mxu0 0
      %2113 = vmatpush1.bf16.msra.mxu0 0
      %2114 = vmatprep.subr.bf16.mxu0 0
      %2115 = vmatpush1.bf16.msra.mxu0 0
      %2116 = vmatprep.subr.bf16.mxu0 0
      %2117 = vmatpush1.bf16.msra.mxu0 0
      %2118 = vmatprep.subr.bf16.mxu0 0
      %2119 = vmatpush1.bf16.msra.mxu0 0
      %2120 = vmatprep.subr.bf16.mxu0 0
      %2121 = vmatpush1.bf16.msra.mxu0 0
      %2122 = vmatprep.subr.bf16.mxu0 0
      %2123 = vmatpush1.bf16.msra.mxu0 0
      %2124 = vmatprep.mubr.bf16.mxu0 0
      %2125 = vmatmul.mubr.bf16.gmra.mrb[0].mxu0 %v2084
      %v2126 = vpop.f32.mrb[0].mxu0
      %v2127 = vadd.f32 %v2025, %v2126
      %v2128 = vpop.f32.mrb[0].mxu0
      %v2129 = vadd.f32 %v2025, %v2128
      %v2130 = vpop.f32.mrb[0].mxu0
      %v2131 = vadd.f32 %v2030, %v2130
      %v2132 = vpop.f32.mrb[0].mxu0
      %v2133 = vadd.f32 %v2030, %v2132
      %2134 = vdwg.mxu0
      %v2135 = vmul.f32 %v2127, 0.2
      %v2136 = vmul.f32 %v2129, 0.2
      %v2137 = vmul.f32 %v2131, 0.2
      %v2138 = vmul.f32 %v2133, 0.2
      %v2139 = vmax.f32 %v2127, %v2135
      %v2140 = vmax.f32 %v2129, %v2136
      %v2141 = vmax.f32 %v2131, %v2137
      %v2142 = vmax.f32 %v2133, %v2138
      %2143 = vst [vmem:[#allocation2 + $0x48] sm:$0xff] %v2139
      %2144 = vst [vmem:[#allocation2 + $0x50] sm:$0xff] %v2140
      %2145 = vst [vmem:[#allocation2 + $0x68] sm:$0xff] %v2141
      %2146 = vst [vmem:[#allocation2 + $0x70] sm:$0xff] %v2142
      %v2147 = vld [vmem:[#allocation2 + $0x40] sm:$0xff]
      %v2148 = vld [vmem:[#allocation2 + $0x48] sm:$0xff]
      %v2149 = vld [vmem:[#allocation2 + $0x50] sm:$0xff]
      %v2150 = vld [vmem:[#allocation2 + $0x60] sm:$0xff]
      %v2151 = vld [vmem:[#allocation2 + $0x68] sm:$0xff]
      %v2152 = vld [vmem:[#allocation2 + $0x70] sm:$0xff]
      %v2153 = vmul.f32 %v2147, %v441
      %v2154 = vmul.f32 %v2148, %v445
      %v2155 = vmul.f32 %v2149, %v443
      %v2156 = vmul.f32 %v2150, %v441
      %v2157 = vmul.f32 %v2151, %v445
      %v2158 = vmul.f32 %v2152, %v443
      %v2159 = vld [vmem:[#allocation2 + $0x58] sm:$0xff]
      %v2160 = vld [vmem:[#allocation2 + $0x78] sm:$0xff]
      %v2161 = vmul.f32 %v2148, %v472
      %v2162 = vmul.f32 %v2149, %v476
      %v2163 = vmul.f32 %v2159, %v474
      %v2164 = vmul.f32 %v2151, %v472
      %v2165 = vmul.f32 %v2152, %v476
      %v2166 = vmul.f32 %v2160, %v474
      %2173 = vrot.lane.b32.xlu0 %v2153, 1
      %v2174 = vpop.permute.xlu0 %2173
      %2175 = vrot.lane.b32.xlu0 %v2154, 1
      %v2176 = vpop.permute.xlu0 %2175
      %2177 = vrot.lane.b32.xlu0 %v2155, 1
      %v2178 = vpop.permute.xlu0 %2177
      %2179 = vrot.lane.b32.xlu0 %v2156, 1
      %v2180 = vpop.permute.xlu0 %2179
      %2181 = vrot.lane.b32.xlu0 %v2157, 1
      %v2182 = vpop.permute.xlu0 %2181
      %2183 = vrot.lane.b32.xlu0 %v2158, 1
      %v2184 = vpop.permute.xlu0 %2183
      %v2185 = vsel %vm475, %v2174, %v2176
      %v2186 = vsel %vm475, %v2176, %v2178
      %v2187 = vsel %vm475, %v2180, %v2182
      %v2188 = vsel %vm475, %v2182, %v2184
      %2193 = vst [vmem:[#allocation2 + $0x8] sm:$0xff] %v2185
      %2194 = vst [vmem:[#allocation2 + $0x10] sm:$0xff] %v2186
      %2195 = vst [vmem:[#allocation2 + $0x28] sm:$0xff] %v2187
      %2196 = vst [vmem:[#allocation2 + $0x30] sm:$0xff] %v2188
      %2203 = vrot.lane.b32.xlu0 %v2161, 127
      %v2204 = vpop.permute.xlu0 %2203
      %2205 = vrot.lane.b32.xlu0 %v2162, 127
      %v2206 = vpop.permute.xlu0 %2205
      %2207 = vrot.lane.b32.xlu0 %v2163, 127
      %v2208 = vpop.permute.xlu0 %2207
      %2209 = vrot.lane.b32.xlu0 %v2164, 127
      %v2210 = vpop.permute.xlu0 %2209
      %2211 = vrot.lane.b32.xlu0 %v2165, 127
      %v2212 = vpop.permute.xlu0 %2211
      %2213 = vrot.lane.b32.xlu0 %v2166, 127
      %v2214 = vpop.permute.xlu0 %2213
      %v2215 = vsel %vm444, %v2204, %v2206
      %v2216 = vsel %vm444, %v2206, %v2208
      %v2217 = vsel %vm444, %v2210, %v2212
      %v2218 = vsel %vm444, %v2212, %v2214
      %2223 = vst [vmem:[#allocation2 + $0x88] sm:$0xff] %v2215
      %2224 = vst [vmem:[#allocation2 + $0x90] sm:$0xff] %v2216
      %2225 = vst [vmem:[#allocation2 + $0xa8] sm:$0xff] %v2217
      %2226 = vst [vmem:[#allocation2 + $0xb0] sm:$0xff] %v2218
      %v2227 = vld [vmem:[#allocation2] sm:$0xff]
      %v2228 = vld [vmem:[#allocation2 + $0x8] sm:$0xff]
      %v2229 = vld [vmem:[#allocation2 + $0x10] sm:$0xff]
      %v2230 = vld [vmem:[#allocation2 + $0x20] sm:$0xff]
      %v2231 = vld [vmem:[#allocation2 + $0x28] sm:$0xff]
      %v2232 = vld [vmem:[#allocation2 + $0x30] sm:$0xff]
      %v2233 = vld [vmem:[#allocation2 + $0x40] sm:$0xff]
      %v2234 = vld [vmem:[#allocation2 + $0x48] sm:$0xff]
      %v2235 = vld [vmem:[#allocation2 + $0x50] sm:$0xff]
      %v2236 = vld [vmem:[#allocation2 + $0x60] sm:$0xff]
      %v2237 = vld [vmem:[#allocation2 + $0x68] sm:$0xff]
      %v2238 = vld [vmem:[#allocation2 + $0x70] sm:$0xff]
      %v2239 = vld [vmem:[#allocation2 + $0x80] sm:$0xff]
      %v2240 = vld [vmem:[#allocation2 + $0x88] sm:$0xff]
      %v2241 = vld [vmem:[#allocation2 + $0x90] sm:$0xff]
      %v2242 = vld [vmem:[#allocation2 + $0xa0] sm:$0xff]
      %v2243 = vld [vmem:[#allocation2 + $0xa8] sm:$0xff]
      %v2244 = vld [vmem:[#allocation2 + $0xb0] sm:$0xff]
      %v2245 = vpack.c.bf16 %v2230, %v2227
      %v2246 = vpack.c.bf16 %v2231, %v2228
      %v2247 = vpack.c.bf16 %v2232, %v2229
      %v2248 = vpack.c.bf16 %v2236, %v2233
      %v2249 = vpack.c.bf16 %v2237, %v2234
      %v2250 = vpack.c.bf16 %v2238, %v2235
      %v2251 = vpack.c.bf16 %v2242, %v2239
      %v2252 = vpack.c.bf16 %v2243, %v2240
      %v2253 = vpack.c.bf16 %v2244, %v2241
      %v2263 = vunpack.c.l.b16 %v2245
      %v2264 = vunpack.c.l.b16 %v2246
      %v2265 = vunpack.c.l.b16 %v2247
      %v2266 = vunpack.c.h.b16 %v2245
      %v2267 = vunpack.c.h.b16 %v2246
      %v2268 = vunpack.c.h.b16 %v2247
      %v2269 = vunpack.c.l.b16 %v2248
      %v2270 = vunpack.c.l.b16 %v2249
      %v2271 = vunpack.c.l.b16 %v2250
      %v2272 = vunpack.c.h.b16 %v2248
      %v2273 = vunpack.c.h.b16 %v2249
      %v2274 = vunpack.c.h.b16 %v2250
      %v2275 = vunpack.c.l.b16 %v2251
      %v2276 = vunpack.c.l.b16 %v2252
      %v2277 = vunpack.c.l.b16 %v2253
      %v2278 = vunpack.c.h.b16 %v2251
      %v2279 = vunpack.c.h.b16 %v2252
      %v2280 = vunpack.c.h.b16 %v2253
      %v2281 = vpack.c.b16 %v2264, %v2263
      %v2282 = vpack.c.b16 %v2265, %v2265
      %v2283 = vpack.c.b16 %v2267, %v2266
      %v2284 = vpack.c.b16 %v2268, %v2268
      %v2285 = vpack.c.b16 %v2270, %v2269
      %v2286 = vpack.c.b16 %v2271, %v2271
      %v2287 = vpack.c.b16 %v2273, %v2272
      %v2288 = vpack.c.b16 %v2274, %v2274
      %v2289 = vpack.c.b16 %v2276, %v2275
      %v2290 = vpack.c.b16 %v2277, %v2277
      %v2291 = vpack.c.b16 %v2279, %v2278
      %v2292 = vpack.c.b16 %v2280, %v2280
      %2293 = vrot.lane.b32.xlu0 %v2281, 16
      %v2294 = vpop.permute.xlu0 %2293
      %2295 = vrot.lane.b32.xlu0 %v2282, 16
      %v2296 = vpop.permute.xlu0 %2295
      %2297 = vrot.lane.b32.xlu0 %v2283, 16
      %v2298 = vpop.permute.xlu0 %2297
      %2299 = vrot.lane.b32.xlu0 %v2284, 16
      %v2300 = vpop.permute.xlu0 %2299
      %2301 = vrot.lane.b32.xlu0 %v2285, 16
      %v2302 = vpop.permute.xlu0 %2301
      %2303 = vrot.lane.b32.xlu0 %v2286, 16
      %v2304 = vpop.permute.xlu0 %2303
      %2305 = vrot.lane.b32.xlu0 %v2287, 16
      %v2306 = vpop.permute.xlu0 %2305
      %2307 = vrot.lane.b32.xlu0 %v2288, 16
      %v2308 = vpop.permute.xlu0 %2307
      %2309 = vrot.lane.b32.xlu0 %v2289, 16
      %v2310 = vpop.permute.xlu0 %2309
      %2311 = vrot.lane.b32.xlu0 %v2290, 16
      %v2312 = vpop.permute.xlu0 %2311
      %2313 = vrot.lane.b32.xlu0 %v2291, 16
      %v2314 = vpop.permute.xlu0 %2313
      %2315 = vrot.lane.b32.xlu0 %v2292, 16
      %v2316 = vpop.permute.xlu0 %2315
      %v2317 = vrot.slane %v2294, 4
      %v2318 = vrot.slane %v2296, 4
      %v2319 = vrot.slane %v2298, 4
      %v2320 = vrot.slane %v2300, 4
      %v2321 = vrot.slane %v2302, 4
      %v2322 = vrot.slane %v2304, 4
      %v2323 = vrot.slane %v2306, 4
      %v2324 = vrot.slane %v2308, 4
      %v2325 = vrot.slane %v2310, 4
      %v2326 = vrot.slane %v2312, 4
      %v2327 = vrot.slane %v2314, 4
      %v2328 = vrot.slane %v2316, 4
      %v2329 = vsel %vm903, %v2317, %v2318
      %v2330 = vsel %vm905, %v2294, %v2329
      %v2331 = vsel %vm903, %v2319, %v2320
      %v2332 = vsel %vm905, %v2298, %v2331
      %v2333 = vsel %vm903, %v2321, %v2322
      %v2334 = vsel %vm905, %v2302, %v2333
      %v2335 = vsel %vm903, %v2323, %v2324
      %v2336 = vsel %vm905, %v2306, %v2335
      %v2337 = vsel %vm903, %v2325, %v2326
      %v2338 = vsel %vm905, %v2310, %v2337
      %v2339 = vsel %vm903, %v2327, %v2328
      %v2340 = vsel %vm905, %v2314, %v2339
      %2347 = vst [vmem:[#allocation3] sm:$0xff] %v2330
      %2348 = vst [vmem:[#allocation3 + $0x8] sm:$0xff] %v2332
      %2349 = vst [vmem:[#allocation3 + $0x10] sm:$0xff] %v2334
      %2350 = vst [vmem:[#allocation3 + $0x18] sm:$0xff] %v2336
      %2351 = vst [vmem:[#allocation3 + $0x20] sm:$0xff] %v2338
      %2352 = vst [vmem:[#allocation3 + $0x28] sm:$0xff] %v2340
      %v2353 = vld [vmem:[#allocation2 + $0x8] sm:$0xff]
      %v2354 = vld [vmem:[#allocation2 + $0x10] sm:$0xff]
      %v2355 = vld [vmem:[#allocation2 + $0x28] sm:$0xff]
      %v2356 = vld [vmem:[#allocation2 + $0x30] sm:$0xff]
      %v2357 = vld [vmem:[#allocation2 + $0x48] sm:$0xff]
      %v2358 = vld [vmem:[#allocation2 + $0x50] sm:$0xff]
      %v2359 = vld [vmem:[#allocation2 + $0x68] sm:$0xff]
      %v2360 = vld [vmem:[#allocation2 + $0x70] sm:$0xff]
      %v2361 = vld [vmem:[#allocation2 + $0x88] sm:$0xff]
      %v2362 = vld [vmem:[#allocation2 + $0x90] sm:$0xff]
      %v2363 = vld [vmem:[#allocation2 + $0xa8] sm:$0xff]
      %v2364 = vld [vmem:[#allocation2 + $0xb0] sm:$0xff]
      %v2365 = vpack.c.bf16 %v2355, %v2353
      %v2366 = vpack.c.bf16 %v2356, %v2354
      %v2367 = vpack.c.bf16 %v2359, %v2357
      %v2368 = vpack.c.bf16 %v2360, %v2358
      %v2369 = vpack.c.bf16 %v2363, %v2361
      %v2370 = vpack.c.bf16 %v2364, %v2362
      %v2377 = vunpack.c.l.b16 %v2365
      %v2378 = vunpack.c.l.b16 %v2366
      %v2379 = vunpack.c.h.b16 %v2365
      %v2380 = vunpack.c.h.b16 %v2366
      %v2381 = vunpack.c.l.b16 %v2367
      %v2382 = vunpack.c.l.b16 %v2368
      %v2383 = vunpack.c.h.b16 %v2367
      %v2384 = vunpack.c.h.b16 %v2368
      %v2385 = vunpack.c.l.b16 %v2369
      %v2386 = vunpack.c.l.b16 %v2370
      %v2387 = vunpack.c.h.b16 %v2369
      %v2388 = vunpack.c.h.b16 %v2370
      %v2389 = vpack.c.b16 %v2378, %v2377
      %v2390 = vpack.c.b16 %v2380, %v2379
      %v2391 = vpack.c.b16 %v2382, %v2381
      %v2392 = vpack.c.b16 %v2384, %v2383
      %v2393 = vpack.c.b16 %v2386, %v2385
      %v2394 = vpack.c.b16 %v2388, %v2387
      %2401 = vst [vmem:[#allocation3 + $0x30] sm:$0xff] %v2389
      %2402 = vst [vmem:[#allocation3 + $0x38] sm:$0xff] %v2390
      %2403 = vst [vmem:[#allocation3 + $0x40] sm:$0xff] %v2391
      %2404 = vst [vmem:[#allocation3 + $0x48] sm:$0xff] %v2392
      %2405 = vst [vmem:[#allocation3 + $0x50] sm:$0xff] %v2393
      %2406 = vst [vmem:[#allocation3 + $0x58] sm:$0xff] %v2394
      %v2407 = vld [vmem:[#allocation2 + $0x8] sm:$0xff]
      %v2408 = vld [vmem:[#allocation2 + $0x10] sm:$0xff]
      %v2409 = vld [vmem:[#allocation2 + $0x18] sm:$0xff]
      %v2410 = vld [vmem:[#allocation2 + $0x28] sm:$0xff]
      %v2411 = vld [vmem:[#allocation2 + $0x30] sm:$0xff]
      %v2412 = vld [vmem:[#allocation2 + $0x38] sm:$0xff]
      %v2413 = vld [vmem:[#allocation2 + $0x48] sm:$0xff]
      %v2414 = vld [vmem:[#allocation2 + $0x50] sm:$0xff]
      %v2415 = vld [vmem:[#allocation2 + $0x58] sm:$0xff]
      %v2416 = vld [vmem:[#allocation2 + $0x68] sm:$0xff]
      %v2417 = vld [vmem:[#allocation2 + $0x70] sm:$0xff]
      %v2418 = vld [vmem:[#allocation2 + $0x78] sm:$0xff]
      %v2419 = vld [vmem:[#allocation2 + $0x88] sm:$0xff]
      %v2420 = vld [vmem:[#allocation2 + $0x90] sm:$0xff]
      %v2421 = vld [vmem:[#allocation2 + $0x98] sm:$0xff]
      %v2422 = vld [vmem:[#allocation2 + $0xa8] sm:$0xff]
      %v2423 = vld [vmem:[#allocation2 + $0xb0] sm:$0xff]
      %v2424 = vld [vmem:[#allocation2 + $0xb8] sm:$0xff]
      %v2425 = vpack.c.bf16 %v2410, %v2407
      %v2426 = vpack.c.bf16 %v2411, %v2408
      %v2427 = vpack.c.bf16 %v2412, %v2409
      %v2428 = vpack.c.bf16 %v2416, %v2413
      %v2429 = vpack.c.bf16 %v2417, %v2414
      %v2430 = vpack.c.bf16 %v2418, %v2415
      %v2431 = vpack.c.bf16 %v2422, %v2419
      %v2432 = vpack.c.bf16 %v2423, %v2420
      %v2433 = vpack.c.bf16 %v2424, %v2421
      %v2443 = vunpack.c.l.b16 %v2425
      %v2444 = vunpack.c.l.b16 %v2426
      %v2445 = vunpack.c.l.b16 %v2427
      %v2446 = vunpack.c.h.b16 %v2425
      %v2447 = vunpack.c.h.b16 %v2426
      %v2448 = vunpack.c.h.b16 %v2427
      %v2449 = vunpack.c.l.b16 %v2428
      %v2450 = vunpack.c.l.b16 %v2429
      %v2451 = vunpack.c.l.b16 %v2430
      %v2452 = vunpack.c.h.b16 %v2428
      %v2453 = vunpack.c.h.b16 %v2429
      %v2454 = vunpack.c.h.b16 %v2430
      %v2455 = vunpack.c.l.b16 %v2431
      %v2456 = vunpack.c.l.b16 %v2432
      %v2457 = vunpack.c.l.b16 %v2433
      %v2458 = vunpack.c.h.b16 %v2431
      %v2459 = vunpack.c.h.b16 %v2432
      %v2460 = vunpack.c.h.b16 %v2433
      %v2461 = vpack.c.b16 %v2444, %v2443
      %v2462 = vpack.c.b16 %v2445, %v2445
      %v2463 = vpack.c.b16 %v2447, %v2446
      %v2464 = vpack.c.b16 %v2448, %v2448
      %v2465 = vpack.c.b16 %v2450, %v2449
      %v2466 = vpack.c.b16 %v2451, %v2451
      %v2467 = vpack.c.b16 %v2453, %v2452
      %v2468 = vpack.c.b16 %v2454, %v2454
      %v2469 = vpack.c.b16 %v2456, %v2455
      %v2470 = vpack.c.b16 %v2457, %v2457
      %v2471 = vpack.c.b16 %v2459, %v2458
      %v2472 = vpack.c.b16 %v2460, %v2460
      %2473 = vrot.lane.b32.xlu0 %v2461, 112
      %v2474 = vpop.permute.xlu0 %2473
      %2475 = vrot.lane.b32.xlu0 %v2462, 112
      %v2476 = vpop.permute.xlu0 %2475
      %2477 = vrot.lane.b32.xlu0 %v2463, 112
      %v2478 = vpop.permute.xlu0 %2477
      %2479 = vrot.lane.b32.xlu0 %v2464, 112
      %v2480 = vpop.permute.xlu0 %2479
      %2481 = vrot.lane.b32.xlu0 %v2465, 112
      %v2482 = vpop.permute.xlu0 %2481
      %2483 = vrot.lane.b32.xlu0 %v2466, 112
      %v2484 = vpop.permute.xlu0 %2483
      %2485 = vrot.lane.b32.xlu0 %v2467, 112
      %v2486 = vpop.permute.xlu0 %2485
      %2487 = vrot.lane.b32.xlu0 %v2468, 112
      %v2488 = vpop.permute.xlu0 %2487
      %2489 = vrot.lane.b32.xlu0 %v2469, 112
      %v2490 = vpop.permute.xlu0 %2489
      %2491 = vrot.lane.b32.xlu0 %v2470, 112
      %v2492 = vpop.permute.xlu0 %2491
      %2493 = vrot.lane.b32.xlu0 %v2471, 112
      %v2494 = vpop.permute.xlu0 %2493
      %2495 = vrot.lane.b32.xlu0 %v2472, 112
      %v2496 = vpop.permute.xlu0 %2495
      %v2497 = vrot.slane %v2474, 4
      %v2498 = vrot.slane %v2476, 4
      %v2499 = vrot.slane %v2478, 4
      %v2500 = vrot.slane %v2480, 4
      %v2501 = vrot.slane %v2482, 4
      %v2502 = vrot.slane %v2484, 4
      %v2503 = vrot.slane %v2486, 4
      %v2504 = vrot.slane %v2488, 4
      %v2505 = vrot.slane %v2490, 4
      %v2506 = vrot.slane %v2492, 4
      %v2507 = vrot.slane %v2494, 4
      %v2508 = vrot.slane %v2496, 4
      %v2509 = vsel %vm903, %v2497, %v2498
      %v2510 = vsel %vm1361, %v2474, %v2509
      %v2511 = vsel %vm903, %v2499, %v2500
      %v2512 = vsel %vm1361, %v2478, %v2511
      %v2513 = vsel %vm903, %v2501, %v2502
      %v2514 = vsel %vm1361, %v2482, %v2513
      %v2515 = vsel %vm903, %v2503, %v2504
      %v2516 = vsel %vm1361, %v2486, %v2515
      %v2517 = vsel %vm903, %v2505, %v2506
      %v2518 = vsel %vm1361, %v2490, %v2517
      %v2519 = vsel %vm903, %v2507, %v2508
      %v2520 = vsel %vm1361, %v2494, %v2519
      %2527 = vst [vmem:[#allocation3 + $0x60] sm:$0xff] %v2510
      %2528 = vst [vmem:[#allocation3 + $0x68] sm:$0xff] %v2512
      %2529 = vst [vmem:[#allocation3 + $0x70] sm:$0xff] %v2514
      %2530 = vst [vmem:[#allocation3 + $0x78] sm:$0xff] %v2516
      %2531 = vst [vmem:[#allocation3 + $0x80] sm:$0xff] %v2518
      %2532 = vst [vmem:[#allocation3 + $0x88] sm:$0xff] %v2520
      %v2533 = vld [vmem:[%s5] sm:$0xff]
      %v2534 = vld [vmem:[%s5 + $0x8] sm:$0xff]
      %v2535 = vld [vmem:[%s5 + $0x10] sm:$0xff]
      %v2536 = vld [vmem:[%s5 + $0x18] sm:$0xff]
      %v2537 = vld [vmem:[#allocation3] sm:$0xff]
      %v2538 = vld [vmem:[#allocation3 + $0x8] sm:$0xff]
      %v2539 = vld [vmem:[#allocation3 + $0x10] sm:$0xff]
      %v2540 = vld [vmem:[#allocation3 + $0x18] sm:$0xff]
      %v2541 = vld [vmem:[#allocation3 + $0x20] sm:$0xff]
      %v2542 = vld [vmem:[#allocation3 + $0x28] sm:$0xff]
      %v2543 = vld [vmem:[#allocation3 + $0x30] sm:$0xff]
      %v2544 = vld [vmem:[#allocation3 + $0x38] sm:$0xff]
      %v2545 = vld [vmem:[#allocation3 + $0x40] sm:$0xff]
      %v2546 = vld [vmem:[#allocation3 + $0x48] sm:$0xff]
      %v2547 = vld [vmem:[#allocation3 + $0x50] sm:$0xff]
      %v2548 = vld [vmem:[#allocation3 + $0x58] sm:$0xff]
      %v2549 = vld [vmem:[#allocation3 + $0x60] sm:$0xff]
      %v2550 = vld [vmem:[#allocation3 + $0x68] sm:$0xff]
      %v2551 = vld [vmem:[#allocation3 + $0x70] sm:$0xff]
      %v2552 = vld [vmem:[#allocation3 + $0x78] sm:$0xff]
      %v2553 = vld [vmem:[#allocation3 + $0x80] sm:$0xff]
      %v2554 = vld [vmem:[#allocation3 + $0x88] sm:$0xff]
      %v2555 = vld [vmem:[%s6] sm:$0xff]
      %v2556 = vld [vmem:[%s6 + $0x8] sm:$0xff]
      %v2557 = vld [vmem:[%s6 + $0x10] sm:$0xff]
      %v2558 = vld [vmem:[%s6 + $0x18] sm:$0xff]
      %2560 = vset.pattern.permute.xlu0 0
      %2561 = vperm.xlu0 %2560, %v2555
      %v2562 = vpop.permute.xlu0 %2561
      %2565 = vset.pattern.permute.xlu0 0
      %2566 = vperm.xlu0 %2565, %v2556
      %v2567 = vpop.permute.xlu0 %2566
      %2570 = vset.pattern.permute.xlu0 0
      %2571 = vperm.xlu0 %2570, %v2557
      %v2572 = vpop.permute.xlu0 %2571
      %2575 = vset.pattern.permute.xlu0 0
      %2576 = vperm.xlu0 %2575, %v2558
      %v2577 = vpop.permute.xlu0 %2576
      %v2583 = vunpack.c.l.b16 %v2533
      %v2584 = vunpack.c.h.b16 %v2533
      %v2585 = vunpack.c.l.b16 %v2534
      %v2586 = vunpack.c.h.b16 %v2534
      %v2587 = vunpack.c.l.b16 %v2535
      %v2588 = vunpack.c.h.b16 %v2535
      %v2589 = vunpack.c.l.b16 %v2536
      %v2590 = vunpack.c.h.b16 %v2536
      %v2591 = vpack.c.b16 %v2585, %v2583
      %v2592 = vpack.c.b16 %v2586, %v2584
      %v2593 = vpack.c.b16 %v2589, %v2587
      %v2594 = vpack.c.b16 %v2590, %v2588
      %v2615 = vunpack.c.l.b16 %v2537
      %v2616 = vunpack.c.h.b16 %v2537
      %v2617 = vunpack.c.l.b16 %v2538
      %v2618 = vunpack.c.h.b16 %v2538
      %v2619 = vunpack.c.l.b16 %v2539
      %v2620 = vunpack.c.h.b16 %v2539
      %v2621 = vunpack.c.l.b16 %v2540
      %v2622 = vunpack.c.h.b16 %v2540
      %v2623 = vunpack.c.l.b16 %v2541
      %v2624 = vunpack.c.h.b16 %v2541
      %v2625 = vunpack.c.l.b16 %v2542
      %v2626 = vunpack.c.h.b16 %v2542
      %v2627 = vunpack.c.l.b16 %v2543
      %v2628 = vunpack.c.h.b16 %v2543
      %v2629 = vunpack.c.l.b16 %v2544
      %v2630 = vunpack.c.h.b16 %v2544
      %v2631 = vunpack.c.l.b16 %v2545
      %v2632 = vunpack.c.h.b16 %v2545
      %v2633 = vunpack.c.l.b16 %v2546
      %v2634 = vunpack.c.h.b16 %v2546
      %v2635 = vunpack.c.l.b16 %v2547
      %v2636 = vunpack.c.h.b16 %v2547
      %v2637 = vunpack.c.l.b16 %v2548
      %v2638 = vunpack.c.h.b16 %v2548
      %v2639 = vunpack.c.l.b16 %v2549
      %v2640 = vunpack.c.h.b16 %v2549
      %v2641 = vunpack.c.l.b16 %v2550
      %v2642 = vunpack.c.h.b16 %v2550
      %v2643 = vunpack.c.l.b16 %v2551
      %v2644 = vunpack.c.h.b16 %v2551
      %v2645 = vunpack.c.l.b16 %v2552
      %v2646 = vunpack.c.h.b16 %v2552
      %v2647 = vunpack.c.l.b16 %v2553
      %v2648 = vunpack.c.h.b16 %v2553
      %v2649 = vunpack.c.l.b16 %v2554
      %v2650 = vunpack.c.h.b16 %v2554
      %v2651 = vpack.c.b16 %v2617, %v2615
      %v2652 = vpack.c.b16 %v2618, %v2616
      %v2653 = vpack.c.b16 %v2621, %v2619
      %v2654 = vpack.c.b16 %v2622, %v2620
      %v2655 = vpack.c.b16 %v2625, %v2623
      %v2656 = vpack.c.b16 %v2626, %v2624
      %v2657 = vpack.c.b16 %v2629, %v2627
      %v2658 = vpack.c.b16 %v2630, %v2628
      %v2659 = vpack.c.b16 %v2633, %v2631
      %v2660 = vpack.c.b16 %v2634, %v2632
      %v2661 = vpack.c.b16 %v2637, %v2635
      %v2662 = vpack.c.b16 %v2638, %v2636
      %v2663 = vpack.c.b16 %v2641, %v2639
      %v2664 = vpack.c.b16 %v2642, %v2640
      %v2665 = vpack.c.b16 %v2645, %v2643
      %v2666 = vpack.c.b16 %v2646, %v2644
      %v2667 = vpack.c.b16 %v2649, %v2647
      %v2668 = vpack.c.b16 %v2650, %v2648
      %vm2687 = vcmask 130048
      %v2689 = vsel %vm2687, %v2592, 0
      %v2692 = vsel %vm2687, %v2594, 0
      %2694 = vmatprep.subr.bf16.mxu0 %v2652
      %2695 = vmatpush1.bf16.msra.mxu0 %v2651
      %2696 = vmatprep.subr.bf16.mxu0 %v2654
      %2697 = vmatpush1.bf16.msra.mxu0 %v2653
      %2698 = vmatprep.subr.bf16.mxu0 %v2656
      %2699 = vmatpush1.bf16.msra.mxu0 %v2655
      %2700 = vmatprep.subr.bf16.mxu0 %v2658
      %2701 = vmatpush1.bf16.msra.mxu0 %v2657
      %2702 = vmatprep.subr.bf16.mxu0 %v2660
      %2703 = vmatpush1.bf16.msra.mxu0 %v2659
      %2704 = vmatprep.subr.bf16.mxu0 %v2662
      %2705 = vmatpush1.bf16.msra.mxu0 %v2661
      %2706 = vmatprep.subr.bf16.mxu0 %v2664
      %2707 = vmatpush1.bf16.msra.mxu0 %v2663
      %2708 = vmatprep.subr.bf16.mxu0 %v2666
      %2709 = vmatpush1.bf16.msra.mxu0 %v2665
      %2710 = vmatprep.subr.bf16.mxu0 %v2668
      %2711 = vmatpush1.bf16.msra.mxu0 %v2667
      %2712 = vmatprep.subr.bf16.mxu0 0
      %2713 = vmatpush1.bf16.msra.mxu0 0
      %2714 = vmatprep.subr.bf16.mxu0 0
      %2715 = vmatpush1.bf16.msra.mxu0 0
      %2716 = vmatprep.subr.bf16.mxu0 0
      %2717 = vmatpush1.bf16.msra.mxu0 0
      %2718 = vmatprep.subr.bf16.mxu0 0
      %2719 = vmatpush1.bf16.msra.mxu0 0
      %2720 = vmatprep.subr.bf16.mxu0 0
      %2721 = vmatpush1.bf16.msra.mxu0 0
      %2722 = vmatprep.subr.bf16.mxu0 0
      %2723 = vmatpush1.bf16.msra.mxu0 0
      %2724 = vmatprep.subr.bf16.mxu0 0
      %2725 = vmatpush1.bf16.msra.mxu0 0
      %2726 = vmatprep.mubr.bf16.mxu0 %v2689
      %2727 = vmatmul.mubr.bf16.gmra.mrb[0].mxu0 %v2591
      %v2728 = vpop.f32.mrb[0].mxu0
      %v2729 = vadd.f32 %v2562, %v2728
      %v2730 = vpop.f32.mrb[0].mxu0
      %v2731 = vadd.f32 %v2562, %v2730
      %v2732 = vpop.f32.mrb[0].mxu0
      %v2733 = vadd.f32 %v2567, %v2732
      %v2734 = vpop.f32.mrb[0].mxu0
      %v2735 = vadd.f32 %v2567, %v2734
      %2736 = vmatprep.mubr.bf16.mxu0 %v2692
      %2737 = vmatmul.mubr.bf16.gmra.mrb[0].mxu0 %v2593
      %v2738 = vpop.f32.mrb[0].mxu0
      %v2739 = vadd.f32 %v2572, %v2738
      %v2740 = vpop.f32.mrb[0].mxu0
      %v2741 = vadd.f32 %v2572, %v2740
      %v2742 = vpop.f32.mrb[0].mxu0
      %v2743 = vadd.f32 %v2577, %v2742
      %v2744 = vpop.f32.mrb[0].mxu0
      %v2745 = vadd.f32 %v2577, %v2744
      %2746 = vdwg.mxu0
      %v2747 = vmul.f32 %v2729, 0.2
      %v2748 = vmul.f32 %v2731, 0.2
      %v2749 = vmul.f32 %v2733, 0.2
      %v2750 = vmul.f32 %v2735, 0.2
      %v2751 = vmul.f32 %v2739, 0.2
      %v2752 = vmul.f32 %v2741, 0.2
      %v2753 = vmul.f32 %v2743, 0.2
      %v2754 = vmul.f32 %v2745, 0.2
      %v2755 = vmax.f32 %v2729, %v2747
      %v2756 = vmax.f32 %v2731, %v2748
      %v2757 = vmax.f32 %v2733, %v2749
      %v2758 = vmax.f32 %v2735, %v2750
      %v2759 = vmax.f32 %v2739, %v2751
      %v2760 = vmax.f32 %v2741, %v2752
      %v2761 = vmax.f32 %v2743, %v2753
      %v2762 = vmax.f32 %v2745, %v2754
      %2763 = vst [vmem:[#allocation2 + $0x88] sm:$0xff] %v2755
      %2764 = vst [vmem:[#allocation2 + $0x90] sm:$0xff] %v2756
      %2765 = vst [vmem:[#allocation2 + $0xa8] sm:$0xff] %v2757
      %2766 = vst [vmem:[#allocation2 + $0xb0] sm:$0xff] %v2758
      %2767 = vst [vmem:[#allocation2 + $0xc8] sm:$0xff] %v2759
      %2768 = vst [vmem:[#allocation2 + $0xd0] sm:$0xff] %v2760
      %2769 = vst [vmem:[#allocation2 + $0xe8] sm:$0xff] %v2761
      %2770 = vst [vmem:[#allocation2 + $0xf0] sm:$0xff] %v2762
      %v2771 = vld [vmem:[#allocation2 + $0x80] sm:$0xff]
      %v2772 = vld [vmem:[#allocation2 + $0x88] sm:$0xff]
      %v2773 = vld [vmem:[#allocation2 + $0x90] sm:$0xff]
      %v2774 = vld [vmem:[#allocation2 + $0xa0] sm:$0xff]
      %v2775 = vld [vmem:[#allocation2 + $0xa8] sm:$0xff]
      %v2776 = vld [vmem:[#allocation2 + $0xb0] sm:$0xff]
      %v2777 = vld [vmem:[#allocation2 + $0xc0] sm:$0xff]
      %v2778 = vld [vmem:[#allocation2 + $0xc8] sm:$0xff]
      %v2779 = vld [vmem:[#allocation2 + $0xd0] sm:$0xff]
      %v2780 = vld [vmem:[#allocation2 + $0xe0] sm:$0xff]
      %v2781 = vld [vmem:[#allocation2 + $0xe8] sm:$0xff]
      %v2782 = vld [vmem:[#allocation2 + $0xf0] sm:$0xff]
      %v2783 = vmul.f32 %v2771, %v441
      %v2784 = vmul.f32 %v2772, %v445
      %v2785 = vmul.f32 %v2773, %v443
      %v2786 = vmul.f32 %v2774, %v441
      %v2787 = vmul.f32 %v2775, %v445
      %v2788 = vmul.f32 %v2776, %v443
      %v2789 = vmul.f32 %v2777, %v441
      %v2790 = vmul.f32 %v2778, %v445
      %v2791 = vmul.f32 %v2779, %v443
      %v2792 = vmul.f32 %v2780, %v441
      %v2793 = vmul.f32 %v2781, %v445
      %v2794 = vmul.f32 %v2782, %v443
      %v2795 = vld [vmem:[#allocation2 + $0x98] sm:$0xff]
      %v2796 = vld [vmem:[#allocation2 + $0xb8] sm:$0xff]
      %v2797 = vld [vmem:[#allocation2 + $0xd8] sm:$0xff]
      %v2798 = vld [vmem:[#allocation2 + $0xf8] sm:$0xff]
      %v2799 = vmul.f32 %v2772, %v472
      %v2800 = vmul.f32 %v2773, %v476
      %v2801 = vmul.f32 %v2795, %v474
      %v2802 = vmul.f32 %v2775, %v472
      %v2803 = vmul.f32 %v2776, %v476
      %v2804 = vmul.f32 %v2796, %v474
      %v2805 = vmul.f32 %v2778, %v472
      %v2806 = vmul.f32 %v2779, %v476
      %v2807 = vmul.f32 %v2797, %v474
      %v2808 = vmul.f32 %v2781, %v472
      %v2809 = vmul.f32 %v2782, %v476
      %v2810 = vmul.f32 %v2798, %v474
      %2823 = vrot.lane.b32.xlu0 %v2783, 1
      %v2824 = vpop.permute.xlu0 %2823
      %2825 = vrot.lane.b32.xlu0 %v2784, 1
      %v2826 = vpop.permute.xlu0 %2825
      %2827 = vrot.lane.b32.xlu0 %v2785, 1
      %v2828 = vpop.permute.xlu0 %2827
      %2829 = vrot.lane.b32.xlu0 %v2786, 1
      %v2830 = vpop.permute.xlu0 %2829
      %2831 = vrot.lane.b32.xlu0 %v2787, 1
      %v2832 = vpop.permute.xlu0 %2831
      %2833 = vrot.lane.b32.xlu0 %v2788, 1
      %v2834 = vpop.permute.xlu0 %2833
      %2835 = vrot.lane.b32.xlu0 %v2789, 1
      %v2836 = vpop.permute.xlu0 %2835
      %2837 = vrot.lane.b32.xlu0 %v2790, 1
      %v2838 = vpop.permute.xlu0 %2837
      %2839 = vrot.lane.b32.xlu0 %v2791, 1
      %v2840 = vpop.permute.xlu0 %2839
      %2841 = vrot.lane.b32.xlu0 %v2792, 1
      %v2842 = vpop.permute.xlu0 %2841
      %2843 = vrot.lane.b32.xlu0 %v2793, 1
      %v2844 = vpop.permute.xlu0 %2843
      %2845 = vrot.lane.b32.xlu0 %v2794, 1
      %v2846 = vpop.permute.xlu0 %2845
      %v2847 = vsel %vm475, %v2824, %v2826
      %v2848 = vsel %vm475, %v2826, %v2828
      %v2849 = vsel %vm475, %v2830, %v2832
      %v2850 = vsel %vm475, %v2832, %v2834
      %v2851 = vsel %vm475, %v2836, %v2838
      %v2852 = vsel %vm475, %v2838, %v2840
      %v2853 = vsel %vm475, %v2842, %v2844
      %v2854 = vsel %vm475, %v2844, %v2846
      %2863 = vst [vmem:[#allocation2 + $0x8] sm:$0xff] %v2847
      %2864 = vst [vmem:[#allocation2 + $0x10] sm:$0xff] %v2848
      %2865 = vst [vmem:[#allocation2 + $0x28] sm:$0xff] %v2849
      %2866 = vst [vmem:[#allocation2 + $0x30] sm:$0xff] %v2850
      %2867 = vst [vmem:[#allocation2 + $0x48] sm:$0xff] %v2851
      %2868 = vst [vmem:[#allocation2 + $0x50] sm:$0xff] %v2852
      %2869 = vst [vmem:[#allocation2 + $0x68] sm:$0xff] %v2853
      %2870 = vst [vmem:[#allocation2 + $0x70] sm:$0xff] %v2854
      %2883 = vrot.lane.b32.xlu0 %v2799, 127
      %v2884 = vpop.permute.xlu0 %2883
      %2885 = vrot.lane.b32.xlu0 %v2800, 127
      %v2886 = vpop.permute.xlu0 %2885
      %2887 = vrot.lane.b32.xlu0 %v2801, 127
      %v2888 = vpop.permute.xlu0 %2887
      %2889 = vrot.lane.b32.xlu0 %v2802, 127
      %v2890 = vpop.permute.xlu0 %2889
      %2891 = vrot.lane.b32.xlu0 %v2803, 127
      %v2892 = vpop.permute.xlu0 %2891
      %2893 = vrot.lane.b32.xlu0 %v2804, 127
      %v2894 = vpop.permute.xlu0 %2893
      %2895 = vrot.lane.b32.xlu0 %v2805, 127
      %v2896 = vpop.permute.xlu0 %2895
      %2897 = vrot.lane.b32.xlu0 %v2806, 127
      %v2898 = vpop.permute.xlu0 %2897
      %2899 = vrot.lane.b32.xlu0 %v2807, 127
      %v2900 = vpop.permute.xlu0 %2899
      %2901 = vrot.lane.b32.xlu0 %v2808, 127
      %v2902 = vpop.permute.xlu0 %2901
      %2903 = vrot.lane.b32.xlu0 %v2809, 127
      %v2904 = vpop.permute.xlu0 %2903
      %2905 = vrot.lane.b32.xlu0 %v2810, 127
      %v2906 = vpop.permute.xlu0 %2905
      %v2907 = vsel %vm444, %v2884, %v2886
      %v2908 = vsel %vm444, %v2886, %v2888
      %v2909 = vsel %vm444, %v2890, %v2892
      %v2910 = vsel %vm444, %v2892, %v2894
      %v2911 = vsel %vm444, %v2896, %v2898
      %v2912 = vsel %vm444, %v2898, %v2900
      %v2913 = vsel %vm444, %v2902, %v2904
      %v2914 = vsel %vm444, %v2904, %v2906
      %2923 = vst [vmem:[#allocation2 + $0x108] sm:$0xff] %v2907
      %2924 = vst [vmem:[#allocation2 + $0x110] sm:$0xff] %v2908
      %2925 = vst [vmem:[#allocation2 + $0x128] sm:$0xff] %v2909
      %2926 = vst [vmem:[#allocation2 + $0x130] sm:$0xff] %v2910
      %2927 = vst [vmem:[#allocation2 + $0x148] sm:$0xff] %v2911
      %2928 = vst [vmem:[#allocation2 + $0x150] sm:$0xff] %v2912
      %2929 = vst [vmem:[#allocation2 + $0x168] sm:$0xff] %v2913
      %2930 = vst [vmem:[#allocation2 + $0x170] sm:$0xff] %v2914
      %v2931 = vld [vmem:[#allocation2] sm:$0xff]
      %v2932 = vld [vmem:[#allocation2 + $0x8] sm:$0xff]
      %v2933 = vld [vmem:[#allocation2 + $0x10] sm:$0xff]
      %v2934 = vld [vmem:[#allocation2 + $0x20] sm:$0xff]
      %v2935 = vld [vmem:[#allocation2 + $0x28] sm:$0xff]
      %v2936 = vld [vmem:[#allocation2 + $0x30] sm:$0xff]
      %v2937 = vld [vmem:[#allocation2 + $0x40] sm:$0xff]
      %v2938 = vld [vmem:[#allocation2 + $0x48] sm:$0xff]
      %v2939 = vld [vmem:[#allocation2 + $0x50] sm:$0xff]
      %v2940 = vld [vmem:[#allocation2 + $0x60] sm:$0xff]
      %v2941 = vld [vmem:[#allocation2 + $0x68] sm:$0xff]
      %v2942 = vld [vmem:[#allocation2 + $0x70] sm:$0xff]
      %v2943 = vld [vmem:[#allocation2 + $0x80] sm:$0xff]
      %v2944 = vld [vmem:[#allocation2 + $0x88] sm:$0xff]
      %v2945 = vld [vmem:[#allocation2 + $0x90] sm:$0xff]
      %v2946 = vld [vmem:[#allocation2 + $0xa0] sm:$0xff]
      %v2947 = vld [vmem:[#allocation2 + $0xa8] sm:$0xff]
      %v2948 = vld [vmem:[#allocation2 + $0xb0] sm:$0xff]
      %v2949 = vld [vmem:[#allocation2 + $0xc0] sm:$0xff]
      %v2950 = vld [vmem:[#allocation2 + $0xc8] sm:$0xff]
      %v2951 = vld [vmem:[#allocation2 + $0xd0] sm:$0xff]
      %v2952 = vld [vmem:[#allocation2 + $0xe0] sm:$0xff]
      %v2953 = vld [vmem:[#allocation2 + $0xe8] sm:$0xff]
      %v2954 = vld [vmem:[#allocation2 + $0xf0] sm:$0xff]
      %v2955 = vld [vmem:[#allocation2 + $0x100] sm:$0xff]
      %v2956 = vld [vmem:[#allocation2 + $0x108] sm:$0xff]
      %v2957 = vld [vmem:[#allocation2 + $0x110] sm:$0xff]
      %v2958 = vld [vmem:[#allocation2 + $0x120] sm:$0xff]
      %v2959 = vld [vmem:[#allocation2 + $0x128] sm:$0xff]
      %v2960 = vld [vmem:[#allocation2 + $0x130] sm:$0xff]
      %v2961 = vld [vmem:[#allocation2 + $0x140] sm:$0xff]
      %v2962 = vld [vmem:[#allocation2 + $0x148] sm:$0xff]
      %v2963 = vld [vmem:[#allocation2 + $0x150] sm:$0xff]
      %v2964 = vld [vmem:[#allocation2 + $0x160] sm:$0xff]
      %v2965 = vld [vmem:[#allocation2 + $0x168] sm:$0xff]
      %v2966 = vld [vmem:[#allocation2 + $0x170] sm:$0xff]
      %v2967 = vpack.c.bf16 %v2934, %v2931
      %v2968 = vpack.c.bf16 %v2935, %v2932
      %v2969 = vpack.c.bf16 %v2936, %v2933
      %v2970 = vpack.c.bf16 %v2940, %v2937
      %v2971 = vpack.c.bf16 %v2941, %v2938
      %v2972 = vpack.c.bf16 %v2942, %v2939
      %v2973 = vpack.c.bf16 %v2946, %v2943
      %v2974 = vpack.c.bf16 %v2947, %v2944
      %v2975 = vpack.c.bf16 %v2948, %v2945
      %v2976 = vpack.c.bf16 %v2952, %v2949
      %v2977 = vpack.c.bf16 %v2953, %v2950
      %v2978 = vpack.c.bf16 %v2954, %v2951
      %v2979 = vpack.c.bf16 %v2958, %v2955
      %v2980 = vpack.c.bf16 %v2959, %v2956
      %v2981 = vpack.c.bf16 %v2960, %v2957
      %v2982 = vpack.c.bf16 %v2964, %v2961
      %v2983 = vpack.c.bf16 %v2965, %v2962
      %v2984 = vpack.c.bf16 %v2966, %v2963
      %v3003 = vunpack.c.l.b16 %v2967
      %v3004 = vunpack.c.l.b16 %v2968
      %v3005 = vunpack.c.l.b16 %v2969
      %v3006 = vunpack.c.h.b16 %v2967
      %v3007 = vunpack.c.h.b16 %v2968
      %v3008 = vunpack.c.h.b16 %v2969
      %v3009 = vunpack.c.l.b16 %v2970
      %v3010 = vunpack.c.l.b16 %v2971
      %v3011 = vunpack.c.l.b16 %v2972
      %v3012 = vunpack.c.h.b16 %v2970
      %v3013 = vunpack.c.h.b16 %v2971
      %v3014 = vunpack.c.h.b16 %v2972
      %v3015 = vunpack.c.l.b16 %v2973
      %v3016 = vunpack.c.l.b16 %v2974
      %v3017 = vunpack.c.l.b16 %v2975
      %v3018 = vunpack.c.h.b16 %v2973
      %v3019 = vunpack.c.h.b16 %v2974
      %v3020 = vunpack.c.h.b16 %v2975
      %v3021 = vunpack.c.l.b16 %v2976
      %v3022 = vunpack.c.l.b16 %v2977
      %v3023 = vunpack.c.l.b16 %v2978
      %v3024 = vunpack.c.h.b16 %v2976
      %v3025 = vunpack.c.h.b16 %v2977
      %v3026 = vunpack.c.h.b16 %v2978
      %v3027 = vunpack.c.l.b16 %v2979
      %v3028 = vunpack.c.l.b16 %v2980
      %v3029 = vunpack.c.l.b16 %v2981
      %v3030 = vunpack.c.h.b16 %v2979
      %v3031 = vunpack.c.h.b16 %v2980
      %v3032 = vunpack.c.h.b16 %v2981
      %v3033 = vunpack.c.l.b16 %v2982
      %v3034 = vunpack.c.l.b16 %v2983
      %v3035 = vunpack.c.l.b16 %v2984
      %v3036 = vunpack.c.h.b16 %v2982
      %v3037 = vunpack.c.h.b16 %v2983
      %v3038 = vunpack.c.h.b16 %v2984
      %v3039 = vpack.c.b16 %v3004, %v3003
      %v3040 = vpack.c.b16 %v3005, %v3005
      %v3041 = vpack.c.b16 %v3007, %v3006
      %v3042 = vpack.c.b16 %v3008, %v3008
      %v3043 = vpack.c.b16 %v3010, %v3009
      %v3044 = vpack.c.b16 %v3011, %v3011
      %v3045 = vpack.c.b16 %v3013, %v3012
      %v3046 = vpack.c.b16 %v3014, %v3014
      %v3047 = vpack.c.b16 %v3016, %v3015
      %v3048 = vpack.c.b16 %v3017, %v3017
      %v3049 = vpack.c.b16 %v3019, %v3018
      %v3050 = vpack.c.b16 %v3020, %v3020
      %v3051 = vpack.c.b16 %v3022, %v3021
      %v3052 = vpack.c.b16 %v3023, %v3023
      %v3053 = vpack.c.b16 %v3025, %v3024
      %v3054 = vpack.c.b16 %v3026, %v3026
      %v3055 = vpack.c.b16 %v3028, %v3027
      %v3056 = vpack.c.b16 %v3029, %v3029
      %v3057 = vpack.c.b16 %v3031, %v3030
      %v3058 = vpack.c.b16 %v3032, %v3032
      %v3059 = vpack.c.b16 %v3034, %v3033
      %v3060 = vpack.c.b16 %v3035, %v3035
      %v3061 = vpack.c.b16 %v3037, %v3036
      %v3062 = vpack.c.b16 %v3038, %v3038
      %3063 = vrot.lane.b32.xlu0 %v3039, 16
      %v3064 = vpop.permute.xlu0 %3063
      %3065 = vrot.lane.b32.xlu0 %v3040, 16
      %v3066 = vpop.permute.xlu0 %3065
      %3067 = vrot.lane.b32.xlu0 %v3041, 16
      %v3068 = vpop.permute.xlu0 %3067
      %3069 = vrot.lane.b32.xlu0 %v3042, 16
      %v3070 = vpop.permute.xlu0 %3069
      %3071 = vrot.lane.b32.xlu0 %v3043, 16
      %v3072 = vpop.permute.xlu0 %3071
      %3073 = vrot.lane.b32.xlu0 %v3044, 16
      %v3074 = vpop.permute.xlu0 %3073
      %3075 = vrot.lane.b32.xlu0 %v3045, 16
      %v3076 = vpop.permute.xlu0 %3075
      %3077 = vrot.lane.b32.xlu0 %v3046, 16
      %v3078 = vpop.permute.xlu0 %3077
      %3079 = vrot.lane.b32.xlu0 %v3047, 16
      %v3080 = vpop.permute.xlu0 %3079
      %3081 = vrot.lane.b32.xlu0 %v3048, 16
      %v3082 = vpop.permute.xlu0 %3081
      %3083 = vrot.lane.b32.xlu0 %v3049, 16
      %v3084 = vpop.permute.xlu0 %3083
      %3085 = vrot.lane.b32.xlu0 %v3050, 16
      %v3086 = vpop.permute.xlu0 %3085
      %3087 = vrot.lane.b32.xlu0 %v3051, 16
      %v3088 = vpop.permute.xlu0 %3087
      %3089 = vrot.lane.b32.xlu0 %v3052, 16
      %v3090 = vpop.permute.xlu0 %3089
      %3091 = vrot.lane.b32.xlu0 %v3053, 16
      %v3092 = vpop.permute.xlu0 %3091
      %3093 = vrot.lane.b32.xlu0 %v3054, 16
      %v3094 = vpop.permute.xlu0 %3093
      %3095 = vrot.lane.b32.xlu0 %v3055, 16
      %v3096 = vpop.permute.xlu0 %3095
      %3097 = vrot.lane.b32.xlu0 %v3056, 16
      %v3098 = vpop.permute.xlu0 %3097
      %3099 = vrot.lane.b32.xlu0 %v3057, 16
      %v3100 = vpop.permute.xlu0 %3099
      %3101 = vrot.lane.b32.xlu0 %v3058, 16
      %v3102 = vpop.permute.xlu0 %3101
      %3103 = vrot.lane.b32.xlu0 %v3059, 16
      %v3104 = vpop.permute.xlu0 %3103
      %3105 = vrot.lane.b32.xlu0 %v3060, 16
      %v3106 = vpop.permute.xlu0 %3105
      %3107 = vrot.lane.b32.xlu0 %v3061, 16
      %v3108 = vpop.permute.xlu0 %3107
      %3109 = vrot.lane.b32.xlu0 %v3062, 16
      %v3110 = vpop.permute.xlu0 %3109
      %v3111 = vrot.slane %v3064, 4
      %v3112 = vrot.slane %v3066, 4
      %v3113 = vrot.slane %v3068, 4
      %v3114 = vrot.slane %v3070, 4
      %v3115 = vrot.slane %v3072, 4
      %v3116 = vrot.slane %v3074, 4
      %v3117 = vrot.slane %v3076, 4
      %v3118 = vrot.slane %v3078, 4
      %v3119 = vrot.slane %v3080, 4
      %v3120 = vrot.slane %v3082, 4
      %v3121 = vrot.slane %v3084, 4
      %v3122 = vrot.slane %v3086, 4
      %v3123 = vrot.slane %v3088, 4
      %v3124 = vrot.slane %v3090, 4
      %v3125 = vrot.slane %v3092, 4
      %v3126 = vrot.slane %v3094, 4
      %v3127 = vrot.slane %v3096, 4
      %v3128 = vrot.slane %v3098, 4
      %v3129 = vrot.slane %v3100, 4
      %v3130 = vrot.slane %v3102, 4
      %v3131 = vrot.slane %v3104, 4
      %v3132 = vrot.slane %v3106, 4
      %v3133 = vrot.slane %v3108, 4
      %v3134 = vrot.slane %v3110, 4
      %v3135 = vsel %vm903, %v3111, %v3112
      %v3136 = vsel %vm905, %v3064, %v3135
      %v3137 = vsel %vm903, %v3113, %v3114
      %v3138 = vsel %vm905, %v3068, %v3137
      %v3139 = vsel %vm903, %v3115, %v3116
      %v3140 = vsel %vm905, %v3072, %v3139
      %v3141 = vsel %vm903, %v3117, %v3118
      %v3142 = vsel %vm905, %v3076, %v3141
      %v3143 = vsel %vm903, %v3119, %v3120
      %v3144 = vsel %vm905, %v3080, %v3143
      %v3145 = vsel %vm903, %v3121, %v3122
      %v3146 = vsel %vm905, %v3084, %v3145
      %v3147 = vsel %vm903, %v3123, %v3124
      %v3148 = vsel %vm905, %v3088, %v3147
      %v3149 = vsel %vm903, %v3125, %v3126
      %v3150 = vsel %vm905, %v3092, %v3149
      %v3151 = vsel %vm903, %v3127, %v3128
      %v3152 = vsel %vm905, %v3096, %v3151
      %v3153 = vsel %vm903, %v3129, %v3130
      %v3154 = vsel %vm905, %v3100, %v3153
      %v3155 = vsel %vm903, %v3131, %v3132
      %v3156 = vsel %vm905, %v3104, %v3155
      %v3157 = vsel %vm903, %v3133, %v3134
      %v3158 = vsel %vm905, %v3108, %v3157
      %3171 = vst [vmem:[#allocation3] sm:$0xff] %v3136
      %3172 = vst [vmem:[#allocation3 + $0x8] sm:$0xff] %v3138
      %3173 = vst [vmem:[#allocation3 + $0x10] sm:$0xff] %v3140
      %3174 = vst [vmem:[#allocation3 + $0x18] sm:$0xff] %v3142
      %3175 = vst [vmem:[#allocation3 + $0x20] sm:$0xff] %v3144
      %3176 = vst [vmem:[#allocation3 + $0x28] sm:$0xff] %v3146
      %3177 = vst [vmem:[#allocation3 + $0x30] sm:$0xff] %v3148
      %3178 = vst [vmem:[#allocation3 + $0x38] sm:$0xff] %v3150
      %3179 = vst [vmem:[#allocation3 + $0x40] sm:$0xff] %v3152
      %3180 = vst [vmem:[#allocation3 + $0x48] sm:$0xff] %v3154
      %3181 = vst [vmem:[#allocation3 + $0x50] sm:$0xff] %v3156
      %3182 = vst [vmem:[#allocation3 + $0x58] sm:$0xff] %v3158
      %v3183 = vld [vmem:[#allocation2 + $0x8] sm:$0xff]
      %v3184 = vld [vmem:[#allocation2 + $0x10] sm:$0xff]
      %v3185 = vld [vmem:[#allocation2 + $0x28] sm:$0xff]
      %v3186 = vld [vmem:[#allocation2 + $0x30] sm:$0xff]
      %v3187 = vld [vmem:[#allocation2 + $0x48] sm:$0xff]
      %v3188 = vld [vmem:[#allocation2 + $0x50] sm:$0xff]
      %v3189 = vld [vmem:[#allocation2 + $0x68] sm:$0xff]
      %v3190 = vld [vmem:[#allocation2 + $0x70] sm:$0xff]
      %v3191 = vld [vmem:[#allocation2 + $0x88] sm:$0xff]
      %v3192 = vld [vmem:[#allocation2 + $0x90] sm:$0xff]
      %v3193 = vld [vmem:[#allocation2 + $0xa8] sm:$0xff]
      %v3194 = vld [vmem:[#allocation2 + $0xb0] sm:$0xff]
      %v3195 = vld [vmem:[#allocation2 + $0xc8] sm:$0xff]
      %v3196 = vld [vmem:[#allocation2 + $0xd0] sm:$0xff]
      %v3197 = vld [vmem:[#allocation2 + $0xe8] sm:$0xff]
      %v3198 = vld [vmem:[#allocation2 + $0xf0] sm:$0xff]
      %v3199 = vld [vmem:[#allocation2 + $0x108] sm:$0xff]
      %v3200 = vld [vmem:[#allocation2 + $0x110] sm:$0xff]
      %v3201 = vld [vmem:[#allocation2 + $0x128] sm:$0xff]
      %v3202 = vld [vmem:[#allocation2 + $0x130] sm:$0xff]
      %v3203 = vld [vmem:[#allocation2 + $0x148] sm:$0xff]
      %v3204 = vld [vmem:[#allocation2 + $0x150] sm:$0xff]
      %v3205 = vld [vmem:[#allocation2 + $0x168] sm:$0xff]
      %v3206 = vld [vmem:[#allocation2 + $0x170] sm:$0xff]
      %v3207 = vpack.c.bf16 %v3185, %v3183
      %v3208 = vpack.c.bf16 %v3186, %v3184
      %v3209 = vpack.c.bf16 %v3189, %v3187
      %v3210 = vpack.c.bf16 %v3190, %v3188
      %v3211 = vpack.c.bf16 %v3193, %v3191
      %v3212 = vpack.c.bf16 %v3194, %v3192
      %v3213 = vpack.c.bf16 %v3197, %v3195
      %v3214 = vpack.c.bf16 %v3198, %v3196
      %v3215 = vpack.c.bf16 %v3201, %v3199
      %v3216 = vpack.c.bf16 %v3202, %v3200
      %v3217 = vpack.c.bf16 %v3205, %v3203
      %v3218 = vpack.c.bf16 %v3206, %v3204
      %v3231 = vunpack.c.l.b16 %v3207
      %v3232 = vunpack.c.l.b16 %v3208
      %v3233 = vunpack.c.h.b16 %v3207
      %v3234 = vunpack.c.h.b16 %v3208
      %v3235 = vunpack.c.l.b16 %v3209
      %v3236 = vunpack.c.l.b16 %v3210
      %v3237 = vunpack.c.h.b16 %v3209
      %v3238 = vunpack.c.h.b16 %v3210
      %v3239 = vunpack.c.l.b16 %v3211
      %v3240 = vunpack.c.l.b16 %v3212
      %v3241 = vunpack.c.h.b16 %v3211
      %v3242 = vunpack.c.h.b16 %v3212
      %v3243 = vunpack.c.l.b16 %v3213
      %v3244 = vunpack.c.l.b16 %v3214
      %v3245 = vunpack.c.h.b16 %v3213
      %v3246 = vunpack.c.h.b16 %v3214
      %v3247 = vunpack.c.l.b16 %v3215
      %v3248 = vunpack.c.l.b16 %v3216
      %v3249 = vunpack.c.h.b16 %v3215
      %v3250 = vunpack.c.h.b16 %v3216
      %v3251 = vunpack.c.l.b16 %v3217
      %v3252 = vunpack.c.l.b16 %v3218
      %v3253 = vunpack.c.h.b16 %v3217
      %v3254 = vunpack.c.h.b16 %v3218
      %v3255 = vpack.c.b16 %v3232, %v3231
      %v3256 = vpack.c.b16 %v3234, %v3233
      %v3257 = vpack.c.b16 %v3236, %v3235
      %v3258 = vpack.c.b16 %v3238, %v3237
      %v3259 = vpack.c.b16 %v3240, %v3239
      %v3260 = vpack.c.b16 %v3242, %v3241
      %v3261 = vpack.c.b16 %v3244, %v3243
      %v3262 = vpack.c.b16 %v3246, %v3245
      %v3263 = vpack.c.b16 %v3248, %v3247
      %v3264 = vpack.c.b16 %v3250, %v3249
      %v3265 = vpack.c.b16 %v3252, %v3251
      %v3266 = vpack.c.b16 %v3254, %v3253
      %3279 = vst [vmem:[#allocation3 + $0x60] sm:$0xff] %v3255
      %3280 = vst [vmem:[#allocation3 + $0x68] sm:$0xff] %v3256
      %3281 = vst [vmem:[#allocation3 + $0x70] sm:$0xff] %v3257
      %3282 = vst [vmem:[#allocation3 + $0x78] sm:$0xff] %v3258
      %3283 = vst [vmem:[#allocation3 + $0x80] sm:$0xff] %v3259
      %3284 = vst [vmem:[#allocation3 + $0x88] sm:$0xff] %v3260
      %3285 = vst [vmem:[#allocation3 + $0x90] sm:$0xff] %v3261
      %3286 = vst [vmem:[#allocation3 + $0x98] sm:$0xff] %v3262
      %3287 = vst [vmem:[#allocation3 + $0xa0] sm:$0xff] %v3263
      %3288 = vst [vmem:[#allocation3 + $0xa8] sm:$0xff] %v3264
      %3289 = vst [vmem:[#allocation3 + $0xb0] sm:$0xff] %v3265
      %3290 = vst [vmem:[#allocation3 + $0xb8] sm:$0xff] %v3266
      %v3291 = vld [vmem:[#allocation2 + $0x8] sm:$0xff]
      %v3292 = vld [vmem:[#allocation2 + $0x10] sm:$0xff]
      %v3293 = vld [vmem:[#allocation2 + $0x18] sm:$0xff]
      %v3294 = vld [vmem:[#allocation2 + $0x28] sm:$0xff]
      %v3295 = vld [vmem:[#allocation2 + $0x30] sm:$0xff]
      %v3296 = vld [vmem:[#allocation2 + $0x38] sm:$0xff]
      %v3297 = vld [vmem:[#allocation2 + $0x48] sm:$0xff]
      %v3298 = vld [vmem:[#allocation2 + $0x50] sm:$0xff]
      %v3299 = vld [vmem:[#allocation2 + $0x58] sm:$0xff]
      %v3300 = vld [vmem:[#allocation2 + $0x68] sm:$0xff]
      %v3301 = vld [vmem:[#allocation2 + $0x70] sm:$0xff]
      %v3302 = vld [vmem:[#allocation2 + $0x78] sm:$0xff]
      %v3303 = vld [vmem:[#allocation2 + $0x88] sm:$0xff]
      %v3304 = vld [vmem:[#allocation2 + $0x90] sm:$0xff]
      %v3305 = vld [vmem:[#allocation2 + $0x98] sm:$0xff]
      %v3306 = vld [vmem:[#allocation2 + $0xa8] sm:$0xff]
      %v3307 = vld [vmem:[#allocation2 + $0xb0] sm:$0xff]
      %v3308 = vld [vmem:[#allocation2 + $0xb8] sm:$0xff]
      %v3309 = vld [vmem:[#allocation2 + $0xc8] sm:$0xff]
      %v3310 = vld [vmem:[#allocation2 + $0xd0] sm:$0xff]
      %v3311 = vld [vmem:[#allocation2 + $0xd8] sm:$0xff]
      %v3312 = vld [vmem:[#allocation2 + $0xe8] sm:$0xff]
      %v3313 = vld [vmem:[#allocation2 + $0xf0] sm:$0xff]
      %v3314 = vld [vmem:[#allocation2 + $0xf8] sm:$0xff]
      %v3315 = vld [vmem:[#allocation2 + $0x108] sm:$0xff]
      %v3316 = vld [vmem:[#allocation2 + $0x110] sm:$0xff]
      %v3317 = vld [vmem:[#allocation2 + $0x118] sm:$0xff]
      %v3318 = vld [vmem:[#allocation2 + $0x128] sm:$0xff]
      %v3319 = vld [vmem:[#allocation2 + $0x130] sm:$0xff]
      %v3320 = vld [vmem:[#allocation2 + $0x138] sm:$0xff]
      %v3321 = vld [vmem:[#allocation2 + $0x148] sm:$0xff]
      %v3322 = vld [vmem:[#allocation2 + $0x150] sm:$0xff]
      %v3323 = vld [vmem:[#allocation2 + $0x158] sm:$0xff]
      %v3324 = vld [vmem:[#allocation2 + $0x168] sm:$0xff]
      %v3325 = vld [vmem:[#allocation2 + $0x170] sm:$0xff]
      %v3326 = vld [vmem:[#allocation2 + $0x178] sm:$0xff]
      %v3327 = vpack.c.bf16 %v3294, %v3291
      %v3328 = vpack.c.bf16 %v3295, %v3292
      %v3329 = vpack.c.bf16 %v3296, %v3293
      %v3330 = vpack.c.bf16 %v3300, %v3297
      %v3331 = vpack.c.bf16 %v3301, %v3298
      %v3332 = vpack.c.bf16 %v3302, %v3299
      %v3333 = vpack.c.bf16 %v3306, %v3303
      %v3334 = vpack.c.bf16 %v3307, %v3304
      %v3335 = vpack.c.bf16 %v3308, %v3305
      %v3336 = vpack.c.bf16 %v3312, %v3309
      %v3337 = vpack.c.bf16 %v3313, %v3310
      %v3338 = vpack.c.bf16 %v3314, %v3311
      %v3339 = vpack.c.bf16 %v3318, %v3315
      %v3340 = vpack.c.bf16 %v3319, %v3316
      %v3341 = vpack.c.bf16 %v3320, %v3317
      %v3342 = vpack.c.bf16 %v3324, %v3321
      %v3343 = vpack.c.bf16 %v3325, %v3322
      %v3344 = vpack.c.bf16 %v3326, %v3323
      %v3363 = vunpack.c.l.b16 %v3327
      %v3364 = vunpack.c.l.b16 %v3328
      %v3365 = vunpack.c.l.b16 %v3329
      %v3366 = vunpack.c.h.b16 %v3327
      %v3367 = vunpack.c.h.b16 %v3328
      %v3368 = vunpack.c.h.b16 %v3329
      %v3369 = vunpack.c.l.b16 %v3330
      %v3370 = vunpack.c.l.b16 %v3331
      %v3371 = vunpack.c.l.b16 %v3332
      %v3372 = vunpack.c.h.b16 %v3330
      %v3373 = vunpack.c.h.b16 %v3331
      %v3374 = vunpack.c.h.b16 %v3332
      %v3375 = vunpack.c.l.b16 %v3333
      %v3376 = vunpack.c.l.b16 %v3334
      %v3377 = vunpack.c.l.b16 %v3335
      %v3378 = vunpack.c.h.b16 %v3333
      %v3379 = vunpack.c.h.b16 %v3334
      %v3380 = vunpack.c.h.b16 %v3335
      %v3381 = vunpack.c.l.b16 %v3336
      %v3382 = vunpack.c.l.b16 %v3337
      %v3383 = vunpack.c.l.b16 %v3338
      %v3384 = vunpack.c.h.b16 %v3336
      %v3385 = vunpack.c.h.b16 %v3337
      %v3386 = vunpack.c.h.b16 %v3338
      %v3387 = vunpack.c.l.b16 %v3339
      %v3388 = vunpack.c.l.b16 %v3340
      %v3389 = vunpack.c.l.b16 %v3341
      %v3390 = vunpack.c.h.b16 %v3339
      %v3391 = vunpack.c.h.b16 %v3340
      %v3392 = vunpack.c.h.b16 %v3341
      %v3393 = vunpack.c.l.b16 %v3342
      %v3394 = vunpack.c.l.b16 %v3343
      %v3395 = vunpack.c.l.b16 %v3344
      %v3396 = vunpack.c.h.b16 %v3342
      %v3397 = vunpack.c.h.b16 %v3343
      %v3398 = vunpack.c.h.b16 %v3344
      %v3399 = vpack.c.b16 %v3364, %v3363
      %v3400 = vpack.c.b16 %v3365, %v3365
      %v3401 = vpack.c.b16 %v3367, %v3366
      %v3402 = vpack.c.b16 %v3368, %v3368
      %v3403 = vpack.c.b16 %v3370, %v3369
      %v3404 = vpack.c.b16 %v3371, %v3371
      %v3405 = vpack.c.b16 %v3373, %v3372
      %v3406 = vpack.c.b16 %v3374, %v3374
      %v3407 = vpack.c.b16 %v3376, %v3375
      %v3408 = vpack.c.b16 %v3377, %v3377
      %v3409 = vpack.c.b16 %v3379, %v3378
      %v3410 = vpack.c.b16 %v3380, %v3380
      %v3411 = vpack.c.b16 %v3382, %v3381
      %v3412 = vpack.c.b16 %v3383, %v3383
      %v3413 = vpack.c.b16 %v3385, %v3384
      %v3414 = vpack.c.b16 %v3386, %v3386
      %v3415 = vpack.c.b16 %v3388, %v3387
      %v3416 = vpack.c.b16 %v3389, %v3389
      %v3417 = vpack.c.b16 %v3391, %v3390
      %v3418 = vpack.c.b16 %v3392, %v3392
      %v3419 = vpack.c.b16 %v3394, %v3393
      %v3420 = vpack.c.b16 %v3395, %v3395
      %v3421 = vpack.c.b16 %v3397, %v3396
      %v3422 = vpack.c.b16 %v3398, %v3398
      %3423 = vrot.lane.b32.xlu0 %v3399, 112
      %v3424 = vpop.permute.xlu0 %3423
      %3425 = vrot.lane.b32.xlu0 %v3400, 112
      %v3426 = vpop.permute.xlu0 %3425
      %3427 = vrot.lane.b32.xlu0 %v3401, 112
      %v3428 = vpop.permute.xlu0 %3427
      %3429 = vrot.lane.b32.xlu0 %v3402, 112
      %v3430 = vpop.permute.xlu0 %3429
      %3431 = vrot.lane.b32.xlu0 %v3403, 112
      %v3432 = vpop.permute.xlu0 %3431
      %3433 = vrot.lane.b32.xlu0 %v3404, 112
      %v3434 = vpop.permute.xlu0 %3433
      %3435 = vrot.lane.b32.xlu0 %v3405, 112
      %v3436 = vpop.permute.xlu0 %3435
      %3437 = vrot.lane.b32.xlu0 %v3406, 112
      %v3438 = vpop.permute.xlu0 %3437
      %3439 = vrot.lane.b32.xlu0 %v3407, 112
      %v3440 = vpop.permute.xlu0 %3439
      %3441 = vrot.lane.b32.xlu0 %v3408, 112
      %v3442 = vpop.permute.xlu0 %3441
      %3443 = vrot.lane.b32.xlu0 %v3409, 112
      %v3444 = vpop.permute.xlu0 %3443
      %3445 = vrot.lane.b32.xlu0 %v3410, 112
      %v3446 = vpop.permute.xlu0 %3445
      %3447 = vrot.lane.b32.xlu0 %v3411, 112
      %v3448 = vpop.permute.xlu0 %3447
      %3449 = vrot.lane.b32.xlu0 %v3412, 112
      %v3450 = vpop.permute.xlu0 %3449
      %3451 = vrot.lane.b32.xlu0 %v3413, 112
      %v3452 = vpop.permute.xlu0 %3451
      %3453 = vrot.lane.b32.xlu0 %v3414, 112
      %v3454 = vpop.permute.xlu0 %3453
      %3455 = vrot.lane.b32.xlu0 %v3415, 112
      %v3456 = vpop.permute.xlu0 %3455
      %3457 = vrot.lane.b32.xlu0 %v3416, 112
      %v3458 = vpop.permute.xlu0 %3457
      %3459 = vrot.lane.b32.xlu0 %v3417, 112
      %v3460 = vpop.permute.xlu0 %3459
      %3461 = vrot.lane.b32.xlu0 %v3418, 112
      %v3462 = vpop.permute.xlu0 %3461
      %3463 = vrot.lane.b32.xlu0 %v3419, 112
      %v3464 = vpop.permute.xlu0 %3463
      %3465 = vrot.lane.b32.xlu0 %v3420, 112
      %v3466 = vpop.permute.xlu0 %3465
      %3467 = vrot.lane.b32.xlu0 %v3421, 112
      %v3468 = vpop.permute.xlu0 %3467
      %3469 = vrot.lane.b32.xlu0 %v3422, 112
      %v3470 = vpop.permute.xlu0 %3469
      %v3471 = vrot.slane %v3424, 4
      %v3472 = vrot.slane %v3426, 4
      %v3473 = vrot.slane %v3428, 4
      %v3474 = vrot.slane %v3430, 4
      %v3475 = vrot.slane %v3432, 4
      %v3476 = vrot.slane %v3434, 4
      %v3477 = vrot.slane %v3436, 4
      %v3478 = vrot.slane %v3438, 4
      %v3479 = vrot.slane %v3440, 4
      %v3480 = vrot.slane %v3442, 4
      %v3481 = vrot.slane %v3444, 4
      %v3482 = vrot.slane %v3446, 4
      %v3483 = vrot.slane %v3448, 4
      %v3484 = vrot.slane %v3450, 4
      %v3485 = vrot.slane %v3452, 4
      %v3486 = vrot.slane %v3454, 4
      %v3487 = vrot.slane %v3456, 4
      %v3488 = vrot.slane %v3458, 4
      %v3489 = vrot.slane %v3460, 4
      %v3490 = vrot.slane %v3462, 4
      %v3491 = vrot.slane %v3464, 4
      %v3492 = vrot.slane %v3466, 4
      %v3493 = vrot.slane %v3468, 4
      %v3494 = vrot.slane %v3470, 4
      %v3495 = vsel %vm903, %v3471, %v3472
      %v3496 = vsel %vm1361, %v3424, %v3495
      %v3497 = vsel %vm903, %v3473, %v3474
      %v3498 = vsel %vm1361, %v3428, %v3497
      %v3499 = vsel %vm903, %v3475, %v3476
      %v3500 = vsel %vm1361, %v3432, %v3499
      %v3501 = vsel %vm903, %v3477, %v3478
      %v3502 = vsel %vm1361, %v3436, %v3501
      %v3503 = vsel %vm903, %v3479, %v3480
      %v3504 = vsel %vm1361, %v3440, %v3503
      %v3505 = vsel %vm903, %v3481, %v3482
      %v3506 = vsel %vm1361, %v3444, %v3505
      %v3507 = vsel %vm903, %v3483, %v3484
      %v3508 = vsel %vm1361, %v3448, %v3507
      %v3509 = vsel %vm903, %v3485, %v3486
      %v3510 = vsel %vm1361, %v3452, %v3509
      %v3511 = vsel %vm903, %v3487, %v3488
      %v3512 = vsel %vm1361, %v3456, %v3511
      %v3513 = vsel %vm903, %v3489, %v3490
      %v3514 = vsel %vm1361, %v3460, %v3513
      %v3515 = vsel %vm903, %v3491, %v3492
      %v3516 = vsel %vm1361, %v3464, %v3515
      %v3517 = vsel %vm903, %v3493, %v3494
      %v3518 = vsel %vm1361, %v3468, %v3517
      %3531 = vst [vmem:[#allocation3 + $0xc0] sm:$0xff] %v3496
      %3532 = vst [vmem:[#allocation3 + $0xc8] sm:$0xff] %v3498
      %3533 = vst [vmem:[#allocation3 + $0xd0] sm:$0xff] %v3500
      %3534 = vst [vmem:[#allocation3 + $0xd8] sm:$0xff] %v3502
      %3535 = vst [vmem:[#allocation3 + $0xe0] sm:$0xff] %v3504
      %3536 = vst [vmem:[#allocation3 + $0xe8] sm:$0xff] %v3506
      %3537 = vst [vmem:[#allocation3 + $0xf0] sm:$0xff] %v3508
      %3538 = vst [vmem:[#allocation3 + $0xf8] sm:$0xff] %v3510
      %3539 = vst [vmem:[#allocation3 + $0x100] sm:$0xff] %v3512
      %3540 = vst [vmem:[#allocation3 + $0x108] sm:$0xff] %v3514
      %3541 = vst [vmem:[#allocation3 + $0x110] sm:$0xff] %v3516
      %3542 = vst [vmem:[#allocation3 + $0x118] sm:$0xff] %v3518
      %v3543 = vld [vmem:[%s7] sm:$0x7]
      %v3544 = vld [vmem:[#allocation3] sm:$0xff]
      %v3545 = vld [vmem:[#allocation3 + $0x8] sm:$0xff]
      %v3546 = vld [vmem:[#allocation3 + $0x10] sm:$0xff]
      %v3547 = vld [vmem:[#allocation3 + $0x18] sm:$0xff]
      %v3548 = vld [vmem:[#allocation3 + $0x20] sm:$0xff]
      %v3549 = vld [vmem:[#allocation3 + $0x28] sm:$0xff]
      %v3550 = vld [vmem:[#allocation3 + $0x30] sm:$0xff]
      %v3551 = vld [vmem:[#allocation3 + $0x38] sm:$0xff]
      %v3552 = vld [vmem:[#allocation3 + $0x40] sm:$0xff]
      %v3553 = vld [vmem:[#allocation3 + $0x48] sm:$0xff]
      %v3554 = vld [vmem:[#allocation3 + $0x50] sm:$0xff]
      %v3555 = vld [vmem:[#allocation3 + $0x58] sm:$0xff]
      %v3556 = vld [vmem:[#allocation3 + $0x60] sm:$0xff]
      %v3557 = vld [vmem:[#allocation3 + $0x68] sm:$0xff]
      %v3558 = vld [vmem:[#allocation3 + $0x70] sm:$0xff]
      %v3559 = vld [vmem:[#allocation3 + $0x78] sm:$0xff]
      %v3560 = vld [vmem:[#allocation3 + $0x80] sm:$0xff]
      %v3561 = vld [vmem:[#allocation3 + $0x88] sm:$0xff]
      %v3562 = vld [vmem:[#allocation3 + $0x90] sm:$0xff]
      %v3563 = vld [vmem:[#allocation3 + $0x98] sm:$0xff]
      %v3564 = vld [vmem:[#allocation3 + $0xa0] sm:$0xff]
      %v3565 = vld [vmem:[#allocation3 + $0xa8] sm:$0xff]
      %v3566 = vld [vmem:[#allocation3 + $0xb0] sm:$0xff]
      %v3567 = vld [vmem:[#allocation3 + $0xb8] sm:$0xff]
      %v3568 = vld [vmem:[#allocation3 + $0xc0] sm:$0xff]
      %v3569 = vld [vmem:[#allocation3 + $0xc8] sm:$0xff]
      %v3570 = vld [vmem:[#allocation3 + $0xd0] sm:$0xff]
      %v3571 = vld [vmem:[#allocation3 + $0xd8] sm:$0xff]
      %v3572 = vld [vmem:[#allocation3 + $0xe0] sm:$0xff]
      %v3573 = vld [vmem:[#allocation3 + $0xe8] sm:$0xff]
      %v3574 = vld [vmem:[#allocation3 + $0xf0] sm:$0xff]
      %v3575 = vld [vmem:[#allocation3 + $0xf8] sm:$0xff]
      %v3576 = vld [vmem:[#allocation3 + $0x100] sm:$0xff]
      %v3577 = vld [vmem:[#allocation3 + $0x108] sm:$0xff]
      %v3578 = vld [vmem:[#allocation3 + $0x110] sm:$0xff]
      %v3579 = vld [vmem:[#allocation3 + $0x118] sm:$0xff]
      %v3580 = vld [vmem:[#allocation4] sm:$0x1]
      %3582 = vset.pattern.permute.xlu0 0
      %3583 = vperm.xlu0 %3582, %v3580
      %v3584 = vpop.permute.xlu0 %3583
      %v3586 = vlaneseq
      %v3587 = vshrl.u32 %v3586, 7
      %v3588 = vsub.s32 0, %v3587
      %v3589 = vrot.slane %v3584, %v3588
      %v3592 = vunpack.c.l.s4 1966171168
      %v3593 = vunpack.c.0.s8 %v3592
      %v3594 = vlaneseq
      %v3595 = vshrl.u32 %v3594, 7
      %v3596 = vsub.s32 %v3593, %v3595
      %v3597 = vrot.slane %v3543, %v3596
      %v3598 = vcombine.high %v3597, %v3597
      %v3600 = vunpack.c.l.s4 1966171168
      %v3601 = vunpack.c.0.s8 %v3600
      %v3602 = vlaneseq
      %v3603 = vshrl.u32 %v3602, 7
      %v3604 = vsub.s32 %v3601, %v3603
      %v3605 = vrot.slane %v3597, %v3604
      %v3607 = vunpack.c.l.s4 1966171168
      %v3608 = vunpack.c.0.s8 %v3607
      %v3609 = vlaneseq
      %v3610 = vshrl.u32 %v3609, 7
      %v3611 = vsub.s32 %v3608, %v3610
      %v3612 = vrot.slane %v3598, %v3611
      %v3613 = vcombine.high %v3605, %v3605
      %v3652 = vunpack.c.l.b16 %v3544
      %v3653 = vunpack.c.h.b16 %v3544
      %v3654 = vunpack.c.l.b16 %v3545
      %v3655 = vunpack.c.h.b16 %v3545
      %v3656 = vunpack.c.l.b16 %v3546
      %v3657 = vunpack.c.h.b16 %v3546
      %v3658 = vunpack.c.l.b16 %v3547
      %v3659 = vunpack.c.h.b16 %v3547
      %v3660 = vunpack.c.l.b16 %v3548
      %v3661 = vunpack.c.h.b16 %v3548
      %v3662 = vunpack.c.l.b16 %v3549
      %v3663 = vunpack.c.h.b16 %v3549
      %v3664 = vunpack.c.l.b16 %v3550
      %v3665 = vunpack.c.h.b16 %v3550
      %v3666 = vunpack.c.l.b16 %v3551
      %v3667 = vunpack.c.h.b16 %v3551
      %v3668 = vunpack.c.l.b16 %v3552
      %v3669 = vunpack.c.h.b16 %v3552
      %v3670 = vunpack.c.l.b16 %v3553
      %v3671 = vunpack.c.h.b16 %v3553
      %v3672 = vunpack.c.l.b16 %v3554
      %v3673 = vunpack.c.h.b16 %v3554
      %v3674 = vunpack.c.l.b16 %v3555
      %v3675 = vunpack.c.h.b16 %v3555
      %v3676 = vunpack.c.l.b16 %v3556
      %v3677 = vunpack.c.h.b16 %v3556
      %v3678 = vunpack.c.l.b16 %v3557
      %v3679 = vunpack.c.h.b16 %v3557
      %v3680 = vunpack.c.l.b16 %v3558
      %v3681 = vunpack.c.h.b16 %v3558
      %v3682 = vunpack.c.l.b16 %v3559
      %v3683 = vunpack.c.h.b16 %v3559
      %v3684 = vunpack.c.l.b16 %v3560
      %v3685 = vunpack.c.h.b16 %v3560
      %v3686 = vunpack.c.l.b16 %v3561
      %v3687 = vunpack.c.h.b16 %v3561
      %v3688 = vunpack.c.l.b16 %v3562
      %v3689 = vunpack.c.h.b16 %v3562
      %v3690 = vunpack.c.l.b16 %v3563
      %v3691 = vunpack.c.h.b16 %v3563
      %v3692 = vunpack.c.l.b16 %v3564
      %v3693 = vunpack.c.h.b16 %v3564
      %v3694 = vunpack.c.l.b16 %v3565
      %v3695 = vunpack.c.h.b16 %v3565
      %v3696 = vunpack.c.l.b16 %v3566
      %v3697 = vunpack.c.h.b16 %v3566
      %v3698 = vunpack.c.l.b16 %v3567
      %v3699 = vunpack.c.h.b16 %v3567
      %v3700 = vunpack.c.l.b16 %v3568
      %v3701 = vunpack.c.h.b16 %v3568
      %v3702 = vunpack.c.l.b16 %v3569
      %v3703 = vunpack.c.h.b16 %v3569
      %v3704 = vunpack.c.l.b16 %v3570
      %v3705 = vunpack.c.h.b16 %v3570
      %v3706 = vunpack.c.l.b16 %v3571
      %v3707 = vunpack.c.h.b16 %v3571
      %v3708 = vunpack.c.l.b16 %v3572
      %v3709 = vunpack.c.h.b16 %v3572
      %v3710 = vunpack.c.l.b16 %v3573
      %v3711 = vunpack.c.h.b16 %v3573
      %v3712 = vunpack.c.l.b16 %v3574
      %v3713 = vunpack.c.h.b16 %v3574
      %v3714 = vunpack.c.l.b16 %v3575
      %v3715 = vunpack.c.h.b16 %v3575
      %v3716 = vunpack.c.l.b16 %v3576
      %v3717 = vunpack.c.h.b16 %v3576
      %v3718 = vunpack.c.l.b16 %v3577
      %v3719 = vunpack.c.h.b16 %v3577
      %v3720 = vunpack.c.l.b16 %v3578
      %v3721 = vunpack.c.h.b16 %v3578
      %v3722 = vunpack.c.l.b16 %v3579
      %v3723 = vunpack.c.h.b16 %v3579
      %v3724 = vpack.c.b16 %v3654, %v3652
      %v3725 = vpack.c.b16 %v3655, %v3653
      %v3726 = vpack.c.b16 %v3658, %v3656
      %v3727 = vpack.c.b16 %v3659, %v3657
      %v3728 = vpack.c.b16 %v3662, %v3660
      %v3729 = vpack.c.b16 %v3663, %v3661
      %v3730 = vpack.c.b16 %v3666, %v3664
      %v3731 = vpack.c.b16 %v3667, %v3665
      %v3732 = vpack.c.b16 %v3670, %v3668
      %v3733 = vpack.c.b16 %v3671, %v3669
      %v3734 = vpack.c.b16 %v3674, %v3672
      %v3735 = vpack.c.b16 %v3675, %v3673
      %v3736 = vpack.c.b16 %v3678, %v3676
      %v3737 = vpack.c.b16 %v3679, %v3677
      %v3738 = vpack.c.b16 %v3682, %v3680
      %v3739 = vpack.c.b16 %v3683, %v3681
      %v3740 = vpack.c.b16 %v3686, %v3684
      %v3741 = vpack.c.b16 %v3687, %v3685
      %v3742 = vpack.c.b16 %v3690, %v3688
      %v3743 = vpack.c.b16 %v3691, %v3689
      %v3744 = vpack.c.b16 %v3694, %v3692
      %v3745 = vpack.c.b16 %v3695, %v3693
      %v3746 = vpack.c.b16 %v3698, %v3696
      %v3747 = vpack.c.b16 %v3699, %v3697
      %v3748 = vpack.c.b16 %v3702, %v3700
      %v3749 = vpack.c.b16 %v3703, %v3701
      %v3750 = vpack.c.b16 %v3706, %v3704
      %v3751 = vpack.c.b16 %v3707, %v3705
      %v3752 = vpack.c.b16 %v3710, %v3708
      %v3753 = vpack.c.b16 %v3711, %v3709
      %v3754 = vpack.c.b16 %v3714, %v3712
      %v3755 = vpack.c.b16 %v3715, %v3713
      %v3756 = vpack.c.b16 %v3718, %v3716
      %v3757 = vpack.c.b16 %v3719, %v3717
      %v3758 = vpack.c.b16 %v3722, %v3720
      %v3759 = vpack.c.b16 %v3723, %v3721
      %vm3796 = vcmask 261120
      %v3798 = vsel %vm3796, %v3613, 0
      %3800 = vmatprep.subr.bf16.mxu0 %v3725
      %3801 = vmatpush1.bf16.msra.mxu0 %v3724
      %3802 = vmatprep.subr.bf16.mxu0 %v3727
      %3803 = vmatpush1.bf16.msra.mxu0 %v3726
      %3804 = vmatprep.subr.bf16.mxu0 %v3729
      %3805 = vmatpush1.bf16.msra.mxu0 %v3728
      %3806 = vmatprep.subr.bf16.mxu0 %v3731
      %3807 = vmatpush1.bf16.msra.mxu0 %v3730
      %3808 = vmatprep.subr.bf16.mxu0 %v3733
      %3809 = vmatpush1.bf16.msra.mxu0 %v3732
      %3810 = vmatprep.subr.bf16.mxu0 %v3735
      %3811 = vmatpush1.bf16.msra.mxu0 %v3734
      %3812 = vmatprep.subr.bf16.mxu0 %v3737
      %3813 = vmatpush1.bf16.msra.mxu0 %v3736
      %3814 = vmatprep.subr.bf16.mxu0 %v3739
      %3815 = vmatpush1.bf16.msra.mxu0 %v3738
      %3816 = vmatprep.subr.bf16.mxu0 %v3741
      %3817 = vmatpush1.bf16.msra.mxu0 %v3740
      %3818 = vmatprep.subr.bf16.mxu0 %v3743
      %3819 = vmatpush1.bf16.msra.mxu0 %v3742
      %3820 = vmatprep.subr.bf16.mxu0 %v3745
      %3821 = vmatpush1.bf16.msra.mxu0 %v3744
      %3822 = vmatprep.subr.bf16.mxu0 %v3747
      %3823 = vmatpush1.bf16.msra.mxu0 %v3746
      %3824 = vmatprep.subr.bf16.mxu0 %v3749
      %3825 = vmatpush1.bf16.msra.mxu0 %v3748
      %3826 = vmatprep.subr.bf16.mxu0 %v3751
      %3827 = vmatpush1.bf16.msra.mxu0 %v3750
      %3828 = vmatprep.subr.bf16.mxu0 %v3753
      %3829 = vmatpush1.bf16.msra.mxu0 %v3752
      %3830 = vmatprep.subr.bf16.mxu0 %v3755
      %3831 = vmatpush1.bf16.msra.mxu0 %v3754
      %3832 = vmatprep.mubr.bf16.mxu0 %v3612
      %3833 = vmatmul.mubr.bf16.gmra.mrb[0].mxu0 %v3605
      %v3834 = vpop.f32.mrb[0].mxu0
      %v3835 = vadd.f32 %v3589, %v3834
      %v3836 = vpop.f32.mrb[0].mxu0
      %v3837 = vadd.f32 %v3589, %v3836
      %v3838 = vpop.f32.mrb[0].mxu0
      %v3839 = vpop.f32.mrb[0].mxu0
      %3840 = vdwg.mxu0
      %3841 = vmatprep.subr.bf16.mxu0 %v3757
      %3842 = vmatpush1.bf16.msra.mxu0 %v3756
      %3843 = vmatprep.subr.bf16.mxu0 %v3759
      %3844 = vmatpush1.bf16.msra.mxu0 %v3758
      %3845 = vmatprep.subr.bf16.mxu0 0
      %3846 = vmatpush1.bf16.msra.mxu0 0
      %3847 = vmatprep.subr.bf16.mxu0 0
      %3848 = vmatpush1.bf16.msra.mxu0 0
      %3849 = vmatprep.subr.bf16.mxu0 0
      %3850 = vmatpush1.bf16.msra.mxu0 0
      %3851 = vmatprep.subr.bf16.mxu0 0
      %3852 = vmatpush1.bf16.msra.mxu0 0
      %3853 = vmatprep.subr.bf16.mxu0 0
      %3854 = vmatpush1.bf16.msra.mxu0 0
      %3855 = vmatprep.subr.bf16.mxu0 0
      %3856 = vmatpush1.bf16.msra.mxu0 0
      %3857 = vmatprep.subr.bf16.mxu0 0
      %3858 = vmatpush1.bf16.msra.mxu0 0
      %3859 = vmatprep.subr.bf16.mxu0 0
      %3860 = vmatpush1.bf16.msra.mxu0 0
      %3861 = vmatprep.subr.bf16.mxu0 0
      %3862 = vmatpush1.bf16.msra.mxu0 0
      %3863 = vmatprep.subr.bf16.mxu0 0
      %3864 = vmatpush1.bf16.msra.mxu0 0
      %3865 = vmatprep.subr.bf16.mxu0 0
      %3866 = vmatpush1.bf16.msra.mxu0 0
      %3867 = vmatprep.subr.bf16.mxu0 0
      %3868 = vmatpush1.bf16.msra.mxu0 0
      %3869 = vmatprep.subr.bf16.mxu0 0
      %3870 = vmatpush1.bf16.msra.mxu0 0
      %3871 = vmatprep.subr.bf16.mxu0 0
      %3872 = vmatpush1.bf16.msra.mxu0 0
      %3873 = vmatprep.mubr.bf16.mxu0 0
      %3874 = vmatmul.mubr.bf16.gmra.mrb[0].mxu0 %v3798
      %v3875 = vpop.f32.mrb[0].mxu0
      %v3876 = vadd.f32 %v3835, %v3875
      %v3877 = vpop.f32.mrb[0].mxu0
      %v3878 = vadd.f32 %v3837, %v3877
      %v3879 = vpop.f32.mrb[0].mxu0
      %v3880 = vpop.f32.mrb[0].mxu0
      %3881 = vdwg.mxu0
      %vm3882 = vcmp.gt.f32.partialorder %v3876, 20.0
      %vm3883 = vcmp.gt.f32.partialorder %v3878, 20.0
      %v3884 = vmul.f32 %v3876, 1.442695
      %v3885 = vpow.pop %v3884
      %v3886 = vmul.f32 %v3878, 1.442695
      %v3887 = vpow.pop %v3886
      %v3888 = vadd.f32 %v3885, 1.0
      %v3889 = vlog2.pop %v3888
      %v3890 = vmul.f32 %v3889, 0.6931472
      %v3891 = vmul.f32 -0.5, %v3885
      %v3892 = vadd.f32 %v3891, 1.0
      %v3893 = vmul.f32 %v3892, %v3885
      %v3894 = vand.u32 2147483647, %v3885
      %vm3895 = vcmp.lt.f32.partialorder %v3894, 0.0004427343
      %v3896 = vsel %vm3895, %v3893, %v3890
      %v3897 = vadd.f32 %v3887, 1.0
      %v3898 = vlog2.pop %v3897
      %v3899 = vmul.f32 %v3898, 0.6931472
      %v3900 = vmul.f32 -0.5, %v3887
      %v3901 = vadd.f32 %v3900, 1.0
      %v3902 = vmul.f32 %v3901, %v3887
      %v3903 = vand.u32 2147483647, %v3887
      %vm3904 = vcmp.lt.f32.partialorder %v3903, 0.0004427343
      %v3905 = vsel %vm3904, %v3902, %v3899
      %v3906 = vsel %vm3882, %v3876, %v3896
      %v3907 = vsel %vm3883, %v3878, %v3905
      %v3910 = vcombine.low %v3906, %v3907
      %v3912 = vunpack.c.l.s4 1966171168
      %v3913 = vunpack.c.0.s8 %v3912
      %v3914 = vlaneseq
      %v3915 = vshrl.u32 %v3914, 7
      %v3916 = vsub.s32 %v3913, %v3915
      %v3917 = vrot.slane %v3910, %v3916
      %v3919 = vunpack.c.l.s4 1966171168
      %v3920 = vunpack.c.0.s8 %v3919
      %v3921 = vlaneseq
      %v3922 = vshrl.u32 %v3921, 7
      %v3923 = vsub.s32 %v3920, %v3922
      %v3924 = vrot.slane %v3917, %v3923
      %v3926 = vlaneseq
      %vm3927 = vcmp.ge.s32.totalorder %v3926, 0
      %vm3928 = vcmp.lt.s32.totalorder %v3926, 256
      %vm3929 = vmand %vm3927, %vm3928
      %3930 = vst.msk [vmem:[%s332] sm:$0x3] %vm3929, %v3924
      %p3931 = scmp.lt.s32.totalorder %s22, 1
      %s3932 = scalar_select %p3931, %s22, 1
      %s3933 = smul.addr %s3932, 2
      %s3934 = scalar_lea.vmem %s9, %s3933
      // Predicated region
      $region57: #{_lambda_.1} parent=55 // pred_check
        %p3935 = pneg %p234
      $region58: #{_lambda_.1} parent=55 // pred_check_branch
        %3937 = sbr.rel (%p3935) target = $region60
      $region59: #{_lambda_.1} parent=55 // pred_region
        _
      $region60: #{_lambda_.1} parent=55 // pred_fallthru
        _
    $region56: #{_lambda_.1} parent=5 // pred_fallthru
      _
    %p3938 = scmp.le.s32.totalorder 2, %s17
    // Predicated region
    $region61: #{_lambda_.1} parent=5 // pred_check
      %p3939 = pneg %p3938
    $region62: #{_lambda_.1} parent=5 // pred_check_branch
      %3941 = sbr.rel (%p3939) target = $region64
    $region63: #{_lambda_.1} parent=5 // pred_region
      %s3942 = ssub.s32 %s17, 2
      // Predicated region
      $region65: #{_lambda_.1} parent=63 // pred_check
        %p3943 = pneg %p240
      $region66: #{_lambda_.1} parent=63 // pred_check_branch
        %3945 = sbr.rel (%p3943) target = $region68
      $region67: #{_lambda_.1} parent=63 // pred_region
        %p3946 = scmp.lt.s32.totalorder %s23, 1
        %s3947 = scalar_select %p3946, %s23, 1
        %s3948 = smul.addr %s3947, 2
        %s3949 = scalar_lea.vmem %s9, %s3948
      $region68: #{_lambda_.1} parent=63 // pred_fallthru
        _
    $region64: #{_lambda_.1} parent=5 // pred_fallthru
      _
  $region6: #{_lambda_.1} parent=0 // loop_footer
    %s21 = sadd.s32 1, %s17
  $region7: #{_lambda_.1} parent=0 // loop_footer_branch
    %16 = sbr.rel target = $region3
  $region8: #{_lambda_.1} parent=0 // loop_exit
    _

</llo_original>
